<compile_context>
chip_gen: v6e
topology: v6e:2x2x1
jax: 0.10.0
libtpu: 0.0.40
codegen_flags: <defaults>
</compile_context>

<pallas_src>
import jax
import jax.numpy as jnp
from jax.experimental import pallas as pl
from jax.experimental.pallas import tpu as pltpu

D_MODEL = 32
NHEAD = 4
HEAD_DIM = D_MODEL // NHEAD
DIM_FF = 64
NUM_LAYERS = 2
EPS = 1e-5


# ------------------------- in-kernel helpers -------------------------

def _layernorm(x, w, b):
    mu = jnp.mean(x, axis=-1, keepdims=True)
    var = jnp.mean((x - mu) ** 2, axis=-1, keepdims=True)
    return (x - mu) * jax.lax.rsqrt(var + EPS) * w + b


# ------------------------- fused Pallas kernel -------------------------

def fused_encoder_kernel(x_ref, pos_ref,
                         wqk_ref, bqk_ref, wv_ref, bv_ref,
                         wo_ref, bo_ref, n1w_ref, n1b_ref,
                         w1_ref, b1_ref, w2_ref, b2_ref,
                         n2w_ref, n2b_ref,
                         nfw_ref, nfb_ref,
                         o_ref):
    BB, S, D = x_ref.shape
    N = BB * S                                   # all tokens in this block
    x = x_ref[...].reshape(N, D)                 # (N, D)
    pos = pos_ref[...].reshape(N, D)             # (N, D)
    scale = 1.0 / (HEAD_DIM ** 0.5)

    for l in range(NUM_LAYERS):                  # static unroll of the layer stack
        qk_in = x + pos                          # q and k get pos embedding, v does not

        # fused q/k projection: weights pre-transposed to (D, 2D)
        qk = jnp.dot(qk_in, wqk_ref[l],
                     preferred_element_type=jnp.float32) + bqk_ref[l]   # (N, 2D)
        v = jnp.dot(x, wv_ref[l],
                    preferred_element_type=jnp.float32) + bv_ref[l]      # (N, D)

        # batch- & head-batched attention: one contraction per stage, one softmax
        q = qk[:, :D_MODEL].reshape(BB, S, NHEAD, HEAD_DIM) \
                           .transpose(0, 2, 1, 3).reshape(BB * NHEAD, S, HEAD_DIM)
        k = qk[:, D_MODEL:].reshape(BB, S, NHEAD, HEAD_DIM) \
                           .transpose(0, 2, 1, 3).reshape(BB * NHEAD, S, HEAD_DIM)
        vh = v.reshape(BB, S, NHEAD, HEAD_DIM) \
              .transpose(0, 2, 1, 3).reshape(BB * NHEAD, S, HEAD_DIM)

        s = jnp.einsum('nqd,nkd->nqk', q, k,
                       preferred_element_type=jnp.float32) * scale       # (B*H,S,S)
        s = s - jnp.max(s, axis=-1, keepdims=True)
        p = jnp.exp(s)
        p = p * pl.reciprocal(jnp.sum(p, axis=-1, keepdims=True), approx=True)
        attn = jnp.einsum('nqk,nkd->nqd', p, vh,
                          preferred_element_type=jnp.float32)             # (B*H,S,dh)
        attn = attn.reshape(BB, NHEAD, S, HEAD_DIM) \
                   .transpose(0, 2, 1, 3).reshape(N, D_MODEL)

        attn = jnp.dot(attn, wo_ref[l],
                       preferred_element_type=jnp.float32) + bo_ref[l]

        # residual + norm1  (dropout = identity in eval)
        x = _layernorm(x + attn, n1w_ref[l], n1b_ref[l])

        # feed-forward: linear1 -> ReLU -> linear2
        ff = jnp.dot(x, w1_ref[l], preferred_element_type=jnp.float32) + b1_ref[l]
        ff = jnp.maximum(ff, 0.0)
        ff = jnp.dot(ff, w2_ref[l], preferred_element_type=jnp.float32) + b2_ref[l]

        # residual + norm2
        x = _layernorm(x + ff, n2w_ref[l], n2b_ref[l])

    # final TransformerEncoder norm (fused, no extra pallas_call)
    o_ref[...] = _layernorm(x, nfw_ref[...], nfb_ref[...]).reshape(BB, S, D)


# ------------------------- wrapper -------------------------

def _prepare_params(layer_params, norm_w, norm_b):
    """Pre-transpose / pre-split weights and stack across layers (done by XLA once)."""
    def stack(fn):
        return jnp.stack([fn(p) for p in layer_params], axis=0)

    packed = dict(
        wqk=stack(lambda p: p["in_w"][:2 * D_MODEL, :].T),    # (L, D, 2D)
        bqk=stack(lambda p: p["in_b"][:, :2 * D_MODEL]),      # (L, 1, 2D)
        wv=stack(lambda p: p["in_w"][2 * D_MODEL:, :].T),     # (L, D, D)
        bv=stack(lambda p: p["in_b"][:, 2 * D_MODEL:]),       # (L, 1, D)
        wo=stack(lambda p: p["out_w"].T),                     # (L, D, D)
        bo=stack(lambda p: p["out_b"]),                       # (L, 1, D)
        n1w=stack(lambda p: p["n1_w"]),                       # (L, 1, D)
        n1b=stack(lambda p: p["n1_b"]),
        w1=stack(lambda p: p["l1_w"].T),                      # (L, D, FF)
        b1=stack(lambda p: p["l1_b"]),                        # (L, 1, FF)
        w2=stack(lambda p: p["l2_w"].T),                      # (L, FF, D)
        b2=stack(lambda p: p["l2_b"]),                        # (L, 1, D)
        n2w=stack(lambda p: p["n2_w"]),
        n2b=stack(lambda p: p["n2_b"]),
    )
    order = ["wqk", "bqk", "wv", "bv", "wo", "bo", "n1w", "n1b",
             "w1", "b1", "w2", "b2", "n2w", "n2b"]
    return [packed[k] for k in order] + [norm_w, norm_b]


def transformer_encoder(src_sbd, pos_sbd, layer_params, norm_w, norm_b,
                        *, batch_block=None):
    """src_sbd, pos_sbd: (S, B, D). Returns (S, B, D)."""
    S, B, D = src_sbd.shape
    BB = B if batch_block is None else batch_block      # whole batch per step
    assert B % BB == 0
    n_blocks = B // BB

    x = jnp.transpose(src_sbd, (1, 0, 2))     # (B, S, D)
    pos = jnp.transpose(pos_sbd, (1, 0, 2))
    params = _prepare_params(layer_params, norm_w, norm_b)

    xmap = lambda i: (i, 0, 0)

    def const_spec(arr):
        nd = arr.ndim
        return pl.BlockSpec(arr.shape, lambda i, _nd=nd: (0,) * _nd)

    grid_spec = pltpu.PrefetchScalarGridSpec(
        num_scalar_prefetch=0,
        grid=(n_blocks,),
        in_specs=[pl.BlockSpec((BB, S, D), xmap),
                  pl.BlockSpec((BB, S, D), xmap)]
                 + [const_spec(a) for a in params],
        out_specs=pl.BlockSpec((BB, S, D), xmap),
    )
    out = pl.pallas_call(
        fused_encoder_kernel,
        out_shape=jax.ShapeDtypeStruct((B, S, D), jnp.float32),
        grid_spec=grid_spec,
        compiler_params=pltpu.CompilerParams(
            dimension_semantics=("parallel",)),
    )(x, pos, *params)
    return jnp.transpose(out, (1, 0, 2))


# ------------------------- pure-JAX reference -------------------------

def _ref_ln(x, w, b):
    mu = jnp.mean(x, axis=-1, keepdims=True)
    var = jnp.mean((x - mu) ** 2, axis=-1, keepdims=True)
    return (x - mu) * jax.lax.rsqrt(var + EPS) * w + b


def ref_encoder_layer(x, pos, p):
    B, S, D = x.shape
    qk = x + pos
    Wq, Wk, Wv = jnp.split(p["in_w"], 3, axis=0)
    bq, bk, bv = jnp.split(p["in_b"][0], 3)
    q = qk @ Wq.T + bq
    k = qk @ Wk.T + bk
    v = x @ Wv.T + bv
    dh = D // NHEAD
    q = q.reshape(B, S, NHEAD, dh).transpose(0, 2, 1, 3)
    k = k.reshape(B, S, NHEAD, dh).transpose(0, 2, 1, 3)
    v = v.reshape(B, S, NHEAD, dh).transpose(0, 2, 1, 3)
    s = jnp.einsum("bhqd,bhkd->bhqk", q, k) / (dh ** 0.5)
    a = jax.nn.softmax(s, axis=-1)
    o = jnp.einsum("bhqk,bhkd->bhqd", a, v).transpose(0, 2, 1, 3).reshape(B, S, D)
    o = o @ p["out_w"].T + p["out_b"][0]
    x1 = _ref_ln(x + o, p["n1_w"][0], p["n1_b"][0])
    ff = jnp.maximum(x1 @ p["l1_w"].T + p["l1_b"][0], 0.0)
    ff = ff @ p["l2_w"].T + p["l2_b"][0]
    return _ref_ln(x1 + ff, p["n2_w"][0], p["n2_b"][0])


# ------------------------- params -------------------------

def init_layer_params(key):
    ks = jax.random.split(key, 8)
    s = 0.05
    return dict(
        in_w=jax.random.normal(ks[0], (3 * D_MODEL, D_MODEL), jnp.float32) * s,
        in_b=jax.random.normal(ks[1], (1, 3 * D_MODEL), jnp.float32) * s,
        out_w=jax.random.normal(ks[2], (D_MODEL, D_MODEL), jnp.float32) * s,
        out_b=jax.random.normal(ks[3], (1, D_MODEL), jnp.float32) * s,
        n1_w=jnp.ones((1, D_MODEL), jnp.float32),
        n1_b=jnp.zeros((1, D_MODEL), jnp.float32),
        l1_w=jax.random.normal(ks[4], (DIM_FF, D_MODEL), jnp.float32) * s,
        l1_b=jax.random.normal(ks[5], (1, DIM_FF), jnp.float32) * s,
        l2_w=jax.random.normal(ks[6], (D_MODEL, DIM_FF), jnp.float32) * s,
        l2_b=jax.random.normal(ks[7], (1, D_MODEL), jnp.float32) * s,
        n2_w=jnp.ones((1, D_MODEL), jnp.float32),
        n2_b=jnp.zeros((1, D_MODEL), jnp.float32),
    )


if __name__ == "__main__":
    S, B = 8, 2
    key = jax.random.PRNGKey(0)
    k_src, k_pos, k_params = jax.random.split(key, 3)
    src = jax.random.normal(k_src, (S, B, D_MODEL), jnp.float32)
    pos = jax.random.normal(k_pos, (S, B, D_MODEL), jnp.float32)

    layer_keys = jax.random.split(k_params, NUM_LAYERS)
    layer_params = [init_layer_params(layer_keys[i]) for i in range(NUM_LAYERS)]
    norm_w = jnp.ones((1, D_MODEL), jnp.float32)
    norm_b = jnp.zeros((1, D_MODEL), jnp.float32)

    fwd = jax.jit(transformer_encoder)
    out = fwd(src, pos, layer_params, norm_w, norm_b)
    out = jax.block_until_ready(out)
    assert out.shape == (S, B, D_MODEL)
    assert bool(jnp.all(jnp.isfinite(out)))

    # pure-JAX reference check
    x = jnp.transpose(src, (1, 0, 2))
    pos_bsd = jnp.transpose(pos, (1, 0, 2))
    ref = x
    for p in layer_params:
        ref = ref_encoder_layer(ref, pos_bsd, p)
    ref = _ref_ln(ref, norm_w[0], norm_b[0])
    ref = jnp.transpose(ref, (1, 0, 2))
    err = float(jnp.max(jnp.abs(out - ref)))
    assert err < 5e-3, f"mismatch vs reference: {err}"

    print("KERNEL_OK")
</pallas_src>

<mosaic_0001>
module attributes {stable_mosaic.version = 11 : i64} {
  func.func @fused_encoder_kernel(%arg0: i32, %arg1: memref<2x8x32xf32, #tpu.memory_space<vmem>>, %arg2: memref<2x8x32xf32, #tpu.memory_space<vmem>>, %arg3: memref<2x32x64xf32, #tpu.memory_space<vmem>>, %arg4: memref<2x1x64xf32, #tpu.memory_space<vmem>>, %arg5: memref<2x32x32xf32, #tpu.memory_space<vmem>>, %arg6: memref<2x1x32xf32, #tpu.memory_space<vmem>>, %arg7: memref<2x32x32xf32, #tpu.memory_space<vmem>>, %arg8: memref<2x1x32xf32, #tpu.memory_space<vmem>>, %arg9: memref<2x1x32xf32, #tpu.memory_space<vmem>>, %arg10: memref<2x1x32xf32, #tpu.memory_space<vmem>>, %arg11: memref<2x32x64xf32, #tpu.memory_space<vmem>>, %arg12: memref<2x1x64xf32, #tpu.memory_space<vmem>>, %arg13: memref<2x64x32xf32, #tpu.memory_space<vmem>>, %arg14: memref<2x1x32xf32, #tpu.memory_space<vmem>>, %arg15: memref<2x1x32xf32, #tpu.memory_space<vmem>>, %arg16: memref<2x1x32xf32, #tpu.memory_space<vmem>>, %arg17: memref<1x32xf32, #tpu.memory_space<vmem>>, %arg18: memref<1x32xf32, #tpu.memory_space<vmem>>, %arg19: memref<2x8x32xf32, #tpu.memory_space<vmem>>) attributes {dimension_semantics = [#tpu.dimension_semantics<parallel>], iteration_bounds = array<i64: 1>, scalar_prefetch = 0 : i64, scratch_operands = 0 : i64, tpu.core_type = #tpu.core_type<tc>, window_params = [{transform_indices = @transform_0, window_bounds = array<i64: 2, 8, 32>}, {transform_indices = @transform_1, window_bounds = array<i64: 2, 8, 32>}, {pipeline_mode = #tpu.pipeline_mode<synchronous>, transform_indices = @transform_2, window_bounds = array<i64: 2, 32, 64>}, {pipeline_mode = #tpu.pipeline_mode<synchronous>, transform_indices = @transform_3, window_bounds = array<i64: 2, 1, 64>}, {pipeline_mode = #tpu.pipeline_mode<synchronous>, transform_indices = @transform_4, window_bounds = array<i64: 2, 32, 32>}, {pipeline_mode = #tpu.pipeline_mode<synchronous>, transform_indices = @transform_5, window_bounds = array<i64: 2, 1, 32>}, {pipeline_mode = #tpu.pipeline_mode<synchronous>, transform_indices = @transform_6, window_bounds = array<i64: 2, 32, 32>}, {pipeline_mode = #tpu.pipeline_mode<synchronous>, transform_indices = @transform_7, window_bounds = array<i64: 2, 1, 32>}, {pipeline_mode = #tpu.pipeline_mode<synchronous>, transform_indices = @transform_8, window_bounds = array<i64: 2, 1, 32>}, {pipeline_mode = #tpu.pipeline_mode<synchronous>, transform_indices = @transform_9, window_bounds = array<i64: 2, 1, 32>}, {pipeline_mode = #tpu.pipeline_mode<synchronous>, transform_indices = @transform_10, window_bounds = array<i64: 2, 32, 64>}, {pipeline_mode = #tpu.pipeline_mode<synchronous>, transform_indices = @transform_11, window_bounds = array<i64: 2, 1, 64>}, {pipeline_mode = #tpu.pipeline_mode<synchronous>, transform_indices = @transform_12, window_bounds = array<i64: 2, 64, 32>}, {pipeline_mode = #tpu.pipeline_mode<synchronous>, transform_indices = @transform_13, window_bounds = array<i64: 2, 1, 32>}, {pipeline_mode = #tpu.pipeline_mode<synchronous>, transform_indices = @transform_14, window_bounds = array<i64: 2, 1, 32>}, {pipeline_mode = #tpu.pipeline_mode<synchronous>, transform_indices = @transform_15, window_bounds = array<i64: 2, 1, 32>}, {pipeline_mode = #tpu.pipeline_mode<synchronous>, transform_indices = @transform_16, window_bounds = array<i64: 1, 32>}, {pipeline_mode = #tpu.pipeline_mode<synchronous>, transform_indices = @transform_17, window_bounds = array<i64: 1, 32>}, {transform_indices = @transform_18, window_bounds = array<i64: 2, 8, 32>}]} {
    %c0 = arith.constant 0 : index
    %c0_0 = arith.constant 0 : index
    %c0_1 = arith.constant 0 : index
    %0 = vector.load %arg1[%c0, %c0_0, %c0_1] : memref<2x8x32xf32, #tpu.memory_space<vmem>>, vector<2x8x32xf32>
    %1 = vector.shape_cast %0 : vector<2x8x32xf32> to vector<16x32xf32>
    %c0_2 = arith.constant 0 : index
    %c0_3 = arith.constant 0 : index
    %c0_4 = arith.constant 0 : index
    %2 = vector.load %arg2[%c0_2, %c0_3, %c0_4] : memref<2x8x32xf32, #tpu.memory_space<vmem>>, vector<2x8x32xf32>
    %3 = vector.shape_cast %2 : vector<2x8x32xf32> to vector<16x32xf32>
    %4 = arith.addf %1, %3 : vector<16x32xf32>
    %c0_5 = arith.constant 0 : index
    %c0_6 = arith.constant 0 : index
    %c0_7 = arith.constant 0 : index
    %5 = vector.load %arg3[%c0_5, %c0_6, %c0_7] : memref<2x32x64xf32, #tpu.memory_space<vmem>>, vector<1x32x64xf32>
    %6 = vector.shape_cast %5 : vector<1x32x64xf32> to vector<32x64xf32>
    %cst = arith.constant dense<0.000000e+00> : vector<16x64xf32>
    %7 = tpu.matmul %4, %6, %cst {dimension_numbers = #tpu.dot_dimension_numbers<[1], [0], [0], [1], [0, 0, 1, 1], [], []>} : vector<16x32xf32>, vector<32x64xf32>, vector<16x64xf32> -> vector<16x64xf32>
    %c0_8 = arith.constant 0 : index
    %c0_9 = arith.constant 0 : index
    %c0_10 = arith.constant 0 : index
    %8 = vector.load %arg4[%c0_8, %c0_9, %c0_10] : memref<2x1x64xf32, #tpu.memory_space<vmem>>, vector<1x1x64xf32>
    %9 = vector.shape_cast %8 : vector<1x1x64xf32> to vector<1x64xf32>
    %10 = vector.broadcast %9 : vector<1x64xf32> to vector<16x64xf32>
    %11 = arith.addf %7, %10 : vector<16x64xf32>
    %c0_11 = arith.constant 0 : index
    %c0_12 = arith.constant 0 : index
    %c0_13 = arith.constant 0 : index
    %12 = vector.load %arg5[%c0_11, %c0_12, %c0_13] : memref<2x32x32xf32, #tpu.memory_space<vmem>>, vector<1x32x32xf32>
    %13 = vector.shape_cast %12 : vector<1x32x32xf32> to vector<32x32xf32>
    %cst_14 = arith.constant dense<0.000000e+00> : vector<16x32xf32>
    %14 = tpu.matmul %1, %13, %cst_14 {dimension_numbers = #tpu.dot_dimension_numbers<[1], [0], [0], [1], [0, 0, 1, 1], [], []>} : vector<16x32xf32>, vector<32x32xf32>, vector<16x32xf32> -> vector<16x32xf32>
    %c0_15 = arith.constant 0 : index
    %c0_16 = arith.constant 0 : index
    %c0_17 = arith.constant 0 : index
    %15 = vector.load %arg6[%c0_15, %c0_16, %c0_17] : memref<2x1x32xf32, #tpu.memory_space<vmem>>, vector<1x1x32xf32>
    %16 = vector.shape_cast %15 : vector<1x1x32xf32> to vector<1x32xf32>
    %17 = vector.broadcast %16 : vector<1x32xf32> to vector<16x32xf32>
    %18 = arith.addf %14, %17 : vector<16x32xf32>
    %19 = vector.extract_strided_slice %11 {offsets = [0, 0], sizes = [16, 32], strides = [1, 1]} : vector<16x64xf32> to vector<16x32xf32>
    %20 = vector.shape_cast %19 : vector<16x32xf32> to vector<2x8x4x8xf32>
    %21 = tpu.transpose %20, [0, 2, 1, 3] : vector<2x8x4x8xf32> -> vector<2x4x8x8xf32>
    %22 = vector.shape_cast %21 : vector<2x4x8x8xf32> to vector<8x8x8xf32>
    %23 = vector.extract_strided_slice %11 {offsets = [0, 32], sizes = [16, 32], strides = [1, 1]} : vector<16x64xf32> to vector<16x32xf32>
    %24 = vector.shape_cast %23 : vector<16x32xf32> to vector<2x8x4x8xf32>
    %25 = tpu.transpose %24, [0, 2, 1, 3] : vector<2x8x4x8xf32> -> vector<2x4x8x8xf32>
    %26 = vector.shape_cast %25 : vector<2x4x8x8xf32> to vector<8x8x8xf32>
    %27 = vector.shape_cast %18 : vector<16x32xf32> to vector<2x8x4x8xf32>
    %28 = tpu.transpose %27, [0, 2, 1, 3] : vector<2x8x4x8xf32> -> vector<2x4x8x8xf32>
    %29 = vector.shape_cast %28 : vector<2x4x8x8xf32> to vector<8x8x8xf32>
    "tpu.trace_start"() <{level = 10 : i32, message = "nqd,nkd->nqk"}> : () -> ()
    %cst_18 = arith.constant dense<0.000000e+00> : vector<8x8x8xf32>
    %30 = tpu.matmul %22, %26, %cst_18 {dimension_numbers = #tpu.dot_dimension_numbers<[2], [2], [1], [1], [0, 0, 0, 1, 1, 1], [0], [0]>} : vector<8x8x8xf32>, vector<8x8x8xf32>, vector<8x8x8xf32> -> vector<8x8x8xf32>
    "tpu.trace_stop"() : () -> ()
    %cst_19 = arith.constant 0.353553385 : f32
    %31 = vector.broadcast %cst_19 : f32 to vector<8x8x8xf32>
    %32 = arith.mulf %30, %31 : vector<8x8x8xf32>
    %cst_20 = arith.constant dense<0xFF800000> : vector<8x8xf32>
    %33 = vector.multi_reduction <maximumf>, %32, %cst_20 [2] : vector<8x8x8xf32> to vector<8x8xf32>
    %34 = vector.shape_cast %33 : vector<8x8xf32> to vector<8x8x1xf32>
    %35 = vector.broadcast %34 : vector<8x8x1xf32> to vector<8x8x8xf32>
    %36 = arith.subf %32, %35 : vector<8x8x8xf32>
    %37 = math.exp %36 : vector<8x8x8xf32>
    %cst_21 = arith.constant dense<0.000000e+00> : vector<8x8xf32>
    %38 = vector.multi_reduction <add>, %37, %cst_21 [2] : vector<8x8x8xf32> to vector<8x8xf32>
    %39 = vector.shape_cast %38 : vector<8x8xf32> to vector<8x8x1xf32>
    %40 = tpu.reciprocal %39 {approx = true} : vector<8x8x1xf32> -> vector<8x8x1xf32>
    %41 = vector.broadcast %40 : vector<8x8x1xf32> to vector<8x8x8xf32>
    %42 = arith.mulf %37, %41 : vector<8x8x8xf32>
    "tpu.trace_start"() <{level = 10 : i32, message = "nqk,nkd->nqd"}> : () -> ()
    %cst_22 = arith.constant dense<0.000000e+00> : vector<8x8x8xf32>
    %43 = tpu.matmul %42, %29, %cst_22 {dimension_numbers = #tpu.dot_dimension_numbers<[2], [1], [1], [2], [0, 0, 0, 1, 1, 2], [0], [0]>} : vector<8x8x8xf32>, vector<8x8x8xf32>, vector<8x8x8xf32> -> vector<8x8x8xf32>
    "tpu.trace_stop"() : () -> ()
    %44 = vector.shape_cast %43 : vector<8x8x8xf32> to vector<2x4x8x8xf32>
    %45 = tpu.transpose %44, [0, 2, 1, 3] : vector<2x4x8x8xf32> -> vector<2x8x4x8xf32>
    %46 = vector.shape_cast %45 : vector<2x8x4x8xf32> to vector<16x32xf32>
    %c0_23 = arith.constant 0 : index
    %c0_24 = arith.constant 0 : index
    %c0_25 = arith.constant 0 : index
    %47 = vector.load %arg7[%c0_23, %c0_24, %c0_25] : memref<2x32x32xf32, #tpu.memory_space<vmem>>, vector<1x32x32xf32>
    %48 = vector.shape_cast %47 : vector<1x32x32xf32> to vector<32x32xf32>
    %cst_26 = arith.constant dense<0.000000e+00> : vector<16x32xf32>
    %49 = tpu.matmul %46, %48, %cst_26 {dimension_numbers = #tpu.dot_dimension_numbers<[1], [0], [0], [1], [0, 0, 1, 1], [], []>} : vector<16x32xf32>, vector<32x32xf32>, vector<16x32xf32> -> vector<16x32xf32>
    %c0_27 = arith.constant 0 : index
    %c0_28 = arith.constant 0 : index
    %c0_29 = arith.constant 0 : index
    %50 = vector.load %arg8[%c0_27, %c0_28, %c0_29] : memref<2x1x32xf32, #tpu.memory_space<vmem>>, vector<1x1x32xf32>
    %51 = vector.shape_cast %50 : vector<1x1x32xf32> to vector<1x32xf32>
    %52 = vector.broadcast %51 : vector<1x32xf32> to vector<16x32xf32>
    %53 = arith.addf %49, %52 : vector<16x32xf32>
    %54 = arith.addf %1, %53 : vector<16x32xf32>
    %c0_30 = arith.constant 0 : index
    %c0_31 = arith.constant 0 : index
    %c0_32 = arith.constant 0 : index
    %55 = vector.load %arg9[%c0_30, %c0_31, %c0_32] : memref<2x1x32xf32, #tpu.memory_space<vmem>>, vector<1x1x32xf32>
    %56 = vector.shape_cast %55 : vector<1x1x32xf32> to vector<1x32xf32>
    %c0_33 = arith.constant 0 : index
    %c0_34 = arith.constant 0 : index
    %c0_35 = arith.constant 0 : index
    %57 = vector.load %arg10[%c0_33, %c0_34, %c0_35] : memref<2x1x32xf32, #tpu.memory_space<vmem>>, vector<1x1x32xf32>
    %58 = vector.shape_cast %57 : vector<1x1x32xf32> to vector<1x32xf32>
    %cst_36 = arith.constant dense<0.000000e+00> : vector<16xf32>
    %59 = vector.multi_reduction <add>, %54, %cst_36 [1] : vector<16x32xf32> to vector<16xf32>
    %60 = vector.shape_cast %59 : vector<16xf32> to vector<16x1xf32>
    %cst_37 = arith.constant 3.200000e+01 : f32
    %61 = vector.broadcast %cst_37 : f32 to vector<16x1xf32>
    %62 = arith.divf %60, %61 : vector<16x1xf32>
    %63 = vector.broadcast %62 : vector<16x1xf32> to vector<16x32xf32>
    %64 = arith.subf %54, %63 : vector<16x32xf32>
    %65 = arith.mulf %64, %64 : vector<16x32xf32>
    %cst_38 = arith.constant dense<0.000000e+00> : vector<16xf32>
    %66 = vector.multi_reduction <add>, %65, %cst_38 [1] : vector<16x32xf32> to vector<16xf32>
    %67 = vector.shape_cast %66 : vector<16xf32> to vector<16x1xf32>
    %cst_39 = arith.constant 3.200000e+01 : f32
    %68 = vector.broadcast %cst_39 : f32 to vector<16x1xf32>
    %69 = arith.divf %67, %68 : vector<16x1xf32>
    %70 = vector.broadcast %62 : vector<16x1xf32> to vector<16x32xf32>
    %71 = arith.subf %54, %70 : vector<16x32xf32>
    %cst_40 = arith.constant 9.99999974E-6 : f32
    %72 = vector.broadcast %cst_40 : f32 to vector<16x1xf32>
    %73 = arith.addf %69, %72 : vector<16x1xf32>
    %74 = math.rsqrt %73 : vector<16x1xf32>
    %75 = vector.broadcast %74 : vector<16x1xf32> to vector<16x32xf32>
    %76 = arith.mulf %71, %75 : vector<16x32xf32>
    %77 = vector.broadcast %56 : vector<1x32xf32> to vector<16x32xf32>
    %78 = arith.mulf %76, %77 : vector<16x32xf32>
    %79 = vector.broadcast %58 : vector<1x32xf32> to vector<16x32xf32>
    %80 = arith.addf %78, %79 : vector<16x32xf32>
    %c0_41 = arith.constant 0 : index
    %c0_42 = arith.constant 0 : index
    %c0_43 = arith.constant 0 : index
    %81 = vector.load %arg11[%c0_41, %c0_42, %c0_43] : memref<2x32x64xf32, #tpu.memory_space<vmem>>, vector<1x32x64xf32>
    %82 = vector.shape_cast %81 : vector<1x32x64xf32> to vector<32x64xf32>
    %cst_44 = arith.constant dense<0.000000e+00> : vector<16x64xf32>
    %83 = tpu.matmul %80, %82, %cst_44 {dimension_numbers = #tpu.dot_dimension_numbers<[1], [0], [0], [1], [0, 0, 1, 1], [], []>} : vector<16x32xf32>, vector<32x64xf32>, vector<16x64xf32> -> vector<16x64xf32>
    %c0_45 = arith.constant 0 : index
    %c0_46 = arith.constant 0 : index
    %c0_47 = arith.constant 0 : index
    %84 = vector.load %arg12[%c0_45, %c0_46, %c0_47] : memref<2x1x64xf32, #tpu.memory_space<vmem>>, vector<1x1x64xf32>
    %85 = vector.shape_cast %84 : vector<1x1x64xf32> to vector<1x64xf32>
    %86 = vector.broadcast %85 : vector<1x64xf32> to vector<16x64xf32>
    %87 = arith.addf %83, %86 : vector<16x64xf32>
    %cst_48 = arith.constant 0.000000e+00 : f32
    %88 = vector.broadcast %cst_48 : f32 to vector<16x64xf32>
    %89 = arith.maximumf %87, %88 : vector<16x64xf32>
    %c0_49 = arith.constant 0 : index
    %c0_50 = arith.constant 0 : index
    %c0_51 = arith.constant 0 : index
    %90 = vector.load %arg13[%c0_49, %c0_50, %c0_51] : memref<2x64x32xf32, #tpu.memory_space<vmem>>, vector<1x64x32xf32>
    %91 = vector.shape_cast %90 : vector<1x64x32xf32> to vector<64x32xf32>
    %cst_52 = arith.constant dense<0.000000e+00> : vector<16x32xf32>
    %92 = tpu.matmul %89, %91, %cst_52 {dimension_numbers = #tpu.dot_dimension_numbers<[1], [0], [0], [1], [0, 0, 1, 1], [], []>} : vector<16x64xf32>, vector<64x32xf32>, vector<16x32xf32> -> vector<16x32xf32>
    %c0_53 = arith.constant 0 : index
    %c0_54 = arith.constant 0 : index
    %c0_55 = arith.constant 0 : index
    %93 = vector.load %arg14[%c0_53, %c0_54, %c0_55] : memref<2x1x32xf32, #tpu.memory_space<vmem>>, vector<1x1x32xf32>
    %94 = vector.shape_cast %93 : vector<1x1x32xf32> to vector<1x32xf32>
    %95 = vector.broadcast %94 : vector<1x32xf32> to vector<16x32xf32>
    %96 = arith.addf %92, %95 : vector<16x32xf32>
    %97 = arith.addf %80, %96 : vector<16x32xf32>
    %c0_56 = arith.constant 0 : index
    %c0_57 = arith.constant 0 : index
    %c0_58 = arith.constant 0 : index
    %98 = vector.load %arg15[%c0_56, %c0_57, %c0_58] : memref<2x1x32xf32, #tpu.memory_space<vmem>>, vector<1x1x32xf32>
    %99 = vector.shape_cast %98 : vector<1x1x32xf32> to vector<1x32xf32>
    %c0_59 = arith.constant 0 : index
    %c0_60 = arith.constant 0 : index
    %c0_61 = arith.constant 0 : index
    %100 = vector.load %arg16[%c0_59, %c0_60, %c0_61] : memref<2x1x32xf32, #tpu.memory_space<vmem>>, vector<1x1x32xf32>
    %101 = vector.shape_cast %100 : vector<1x1x32xf32> to vector<1x32xf32>
    %cst_62 = arith.constant dense<0.000000e+00> : vector<16xf32>
    %102 = vector.multi_reduction <add>, %97, %cst_62 [1] : vector<16x32xf32> to vector<16xf32>
    %103 = vector.shape_cast %102 : vector<16xf32> to vector<16x1xf32>
    %cst_63 = arith.constant 3.200000e+01 : f32
    %104 = vector.broadcast %cst_63 : f32 to vector<16x1xf32>
    %105 = arith.divf %103, %104 : vector<16x1xf32>
    %106 = vector.broadcast %105 : vector<16x1xf32> to vector<16x32xf32>
    %107 = arith.subf %97, %106 : vector<16x32xf32>
    %108 = arith.mulf %107, %107 : vector<16x32xf32>
    %cst_64 = arith.constant dense<0.000000e+00> : vector<16xf32>
    %109 = vector.multi_reduction <add>, %108, %cst_64 [1] : vector<16x32xf32> to vector<16xf32>
    %110 = vector.shape_cast %109 : vector<16xf32> to vector<16x1xf32>
    %cst_65 = arith.constant 3.200000e+01 : f32
    %111 = vector.broadcast %cst_65 : f32 to vector<16x1xf32>
    %112 = arith.divf %110, %111 : vector<16x1xf32>
    %113 = vector.broadcast %105 : vector<16x1xf32> to vector<16x32xf32>
    %114 = arith.subf %97, %113 : vector<16x32xf32>
    %cst_66 = arith.constant 9.99999974E-6 : f32
    %115 = vector.broadcast %cst_66 : f32 to vector<16x1xf32>
    %116 = arith.addf %112, %115 : vector<16x1xf32>
    %117 = math.rsqrt %116 : vector<16x1xf32>
    %118 = vector.broadcast %117 : vector<16x1xf32> to vector<16x32xf32>
    %119 = arith.mulf %114, %118 : vector<16x32xf32>
    %120 = vector.broadcast %99 : vector<1x32xf32> to vector<16x32xf32>
    %121 = arith.mulf %119, %120 : vector<16x32xf32>
    %122 = vector.broadcast %101 : vector<1x32xf32> to vector<16x32xf32>
    %123 = arith.addf %121, %122 : vector<16x32xf32>
    %124 = arith.addf %123, %3 : vector<16x32xf32>
    %c1 = arith.constant 1 : index
    %c0_67 = arith.constant 0 : index
    %c0_68 = arith.constant 0 : index
    %125 = vector.load %arg3[%c1, %c0_67, %c0_68] : memref<2x32x64xf32, #tpu.memory_space<vmem>>, vector<1x32x64xf32>
    %126 = vector.shape_cast %125 : vector<1x32x64xf32> to vector<32x64xf32>
    %cst_69 = arith.constant dense<0.000000e+00> : vector<16x64xf32>
    %127 = tpu.matmul %124, %126, %cst_69 {dimension_numbers = #tpu.dot_dimension_numbers<[1], [0], [0], [1], [0, 0, 1, 1], [], []>} : vector<16x32xf32>, vector<32x64xf32>, vector<16x64xf32> -> vector<16x64xf32>
    %c1_70 = arith.constant 1 : index
    %c0_71 = arith.constant 0 : index
    %c0_72 = arith.constant 0 : index
    %128 = vector.load %arg4[%c1_70, %c0_71, %c0_72] : memref<2x1x64xf32, #tpu.memory_space<vmem>>, vector<1x1x64xf32>
    %129 = vector.shape_cast %128 : vector<1x1x64xf32> to vector<1x64xf32>
    %130 = vector.broadcast %129 : vector<1x64xf32> to vector<16x64xf32>
    %131 = arith.addf %127, %130 : vector<16x64xf32>
    %c1_73 = arith.constant 1 : index
    %c0_74 = arith.constant 0 : index
    %c0_75 = arith.constant 0 : index
    %132 = vector.load %arg5[%c1_73, %c0_74, %c0_75] : memref<2x32x32xf32, #tpu.memory_space<vmem>>, vector<1x32x32xf32>
    %133 = vector.shape_cast %132 : vector<1x32x32xf32> to vector<32x32xf32>
    %cst_76 = arith.constant dense<0.000000e+00> : vector<16x32xf32>
    %134 = tpu.matmul %123, %133, %cst_76 {dimension_numbers = #tpu.dot_dimension_numbers<[1], [0], [0], [1], [0, 0, 1, 1], [], []>} : vector<16x32xf32>, vector<32x32xf32>, vector<16x32xf32> -> vector<16x32xf32>
    %c1_77 = arith.constant 1 : index
    %c0_78 = arith.constant 0 : index
    %c0_79 = arith.constant 0 : index
    %135 = vector.load %arg6[%c1_77, %c0_78, %c0_79] : memref<2x1x32xf32, #tpu.memory_space<vmem>>, vector<1x1x32xf32>
    %136 = vector.shape_cast %135 : vector<1x1x32xf32> to vector<1x32xf32>
    %137 = vector.broadcast %136 : vector<1x32xf32> to vector<16x32xf32>
    %138 = arith.addf %134, %137 : vector<16x32xf32>
    %139 = vector.extract_strided_slice %131 {offsets = [0, 0], sizes = [16, 32], strides = [1, 1]} : vector<16x64xf32> to vector<16x32xf32>
    %140 = vector.shape_cast %139 : vector<16x32xf32> to vector<2x8x4x8xf32>
    %141 = tpu.transpose %140, [0, 2, 1, 3] : vector<2x8x4x8xf32> -> vector<2x4x8x8xf32>
    %142 = vector.shape_cast %141 : vector<2x4x8x8xf32> to vector<8x8x8xf32>
    %143 = vector.extract_strided_slice %131 {offsets = [0, 32], sizes = [16, 32], strides = [1, 1]} : vector<16x64xf32> to vector<16x32xf32>
    %144 = vector.shape_cast %143 : vector<16x32xf32> to vector<2x8x4x8xf32>
    %145 = tpu.transpose %144, [0, 2, 1, 3] : vector<2x8x4x8xf32> -> vector<2x4x8x8xf32>
    %146 = vector.shape_cast %145 : vector<2x4x8x8xf32> to vector<8x8x8xf32>
    %147 = vector.shape_cast %138 : vector<16x32xf32> to vector<2x8x4x8xf32>
    %148 = tpu.transpose %147, [0, 2, 1, 3] : vector<2x8x4x8xf32> -> vector<2x4x8x8xf32>
    %149 = vector.shape_cast %148 : vector<2x4x8x8xf32> to vector<8x8x8xf32>
    "tpu.trace_start"() <{level = 10 : i32, message = "nqd,nkd->nqk"}> : () -> ()
    %cst_80 = arith.constant dense<0.000000e+00> : vector<8x8x8xf32>
    %150 = tpu.matmul %142, %146, %cst_80 {dimension_numbers = #tpu.dot_dimension_numbers<[2], [2], [1], [1], [0, 0, 0, 1, 1, 1], [0], [0]>} : vector<8x8x8xf32>, vector<8x8x8xf32>, vector<8x8x8xf32> -> vector<8x8x8xf32>
    "tpu.trace_stop"() : () -> ()
    %cst_81 = arith.constant 0.353553385 : f32
    %151 = vector.broadcast %cst_81 : f32 to vector<8x8x8xf32>
    %152 = arith.mulf %150, %151 : vector<8x8x8xf32>
    %cst_82 = arith.constant dense<0xFF800000> : vector<8x8xf32>
    %153 = vector.multi_reduction <maximumf>, %152, %cst_82 [2] : vector<8x8x8xf32> to vector<8x8xf32>
    %154 = vector.shape_cast %153 : vector<8x8xf32> to vector<8x8x1xf32>
    %155 = vector.broadcast %154 : vector<8x8x1xf32> to vector<8x8x8xf32>
    %156 = arith.subf %152, %155 : vector<8x8x8xf32>
    %157 = math.exp %156 : vector<8x8x8xf32>
    %cst_83 = arith.constant dense<0.000000e+00> : vector<8x8xf32>
    %158 = vector.multi_reduction <add>, %157, %cst_83 [2] : vector<8x8x8xf32> to vector<8x8xf32>
    %159 = vector.shape_cast %158 : vector<8x8xf32> to vector<8x8x1xf32>
    %160 = tpu.reciprocal %159 {approx = true} : vector<8x8x1xf32> -> vector<8x8x1xf32>
    %161 = vector.broadcast %160 : vector<8x8x1xf32> to vector<8x8x8xf32>
    %162 = arith.mulf %157, %161 : vector<8x8x8xf32>
    "tpu.trace_start"() <{level = 10 : i32, message = "nqk,nkd->nqd"}> : () -> ()
    %cst_84 = arith.constant dense<0.000000e+00> : vector<8x8x8xf32>
    %163 = tpu.matmul %162, %149, %cst_84 {dimension_numbers = #tpu.dot_dimension_numbers<[2], [1], [1], [2], [0, 0, 0, 1, 1, 2], [0], [0]>} : vector<8x8x8xf32>, vector<8x8x8xf32>, vector<8x8x8xf32> -> vector<8x8x8xf32>
    "tpu.trace_stop"() : () -> ()
    %164 = vector.shape_cast %163 : vector<8x8x8xf32> to vector<2x4x8x8xf32>
    %165 = tpu.transpose %164, [0, 2, 1, 3] : vector<2x4x8x8xf32> -> vector<2x8x4x8xf32>
    %166 = vector.shape_cast %165 : vector<2x8x4x8xf32> to vector<16x32xf32>
    %c1_85 = arith.constant 1 : index
    %c0_86 = arith.constant 0 : index
    %c0_87 = arith.constant 0 : index
    %167 = vector.load %arg7[%c1_85, %c0_86, %c0_87] : memref<2x32x32xf32, #tpu.memory_space<vmem>>, vector<1x32x32xf32>
    %168 = vector.shape_cast %167 : vector<1x32x32xf32> to vector<32x32xf32>
    %cst_88 = arith.constant dense<0.000000e+00> : vector<16x32xf32>
    %169 = tpu.matmul %166, %168, %cst_88 {dimension_numbers = #tpu.dot_dimension_numbers<[1], [0], [0], [1], [0, 0, 1, 1], [], []>} : vector<16x32xf32>, vector<32x32xf32>, vector<16x32xf32> -> vector<16x32xf32>
    %c1_89 = arith.constant 1 : index
    %c0_90 = arith.constant 0 : index
    %c0_91 = arith.constant 0 : index
    %170 = vector.load %arg8[%c1_89, %c0_90, %c0_91] : memref<2x1x32xf32, #tpu.memory_space<vmem>>, vector<1x1x32xf32>
    %171 = vector.shape_cast %170 : vector<1x1x32xf32> to vector<1x32xf32>
    %172 = vector.broadcast %171 : vector<1x32xf32> to vector<16x32xf32>
    %173 = arith.addf %169, %172 : vector<16x32xf32>
    %174 = arith.addf %123, %173 : vector<16x32xf32>
    %c1_92 = arith.constant 1 : index
    %c0_93 = arith.constant 0 : index
    %c0_94 = arith.constant 0 : index
    %175 = vector.load %arg9[%c1_92, %c0_93, %c0_94] : memref<2x1x32xf32, #tpu.memory_space<vmem>>, vector<1x1x32xf32>
    %176 = vector.shape_cast %175 : vector<1x1x32xf32> to vector<1x32xf32>
    %c1_95 = arith.constant 1 : index
    %c0_96 = arith.constant 0 : index
    %c0_97 = arith.constant 0 : index
    %177 = vector.load %arg10[%c1_95, %c0_96, %c0_97] : memref<2x1x32xf32, #tpu.memory_space<vmem>>, vector<1x1x32xf32>
    %178 = vector.shape_cast %177 : vector<1x1x32xf32> to vector<1x32xf32>
    %cst_98 = arith.constant dense<0.000000e+00> : vector<16xf32>
    %179 = vector.multi_reduction <add>, %174, %cst_98 [1] : vector<16x32xf32> to vector<16xf32>
    %180 = vector.shape_cast %179 : vector<16xf32> to vector<16x1xf32>
    %cst_99 = arith.constant 3.200000e+01 : f32
    %181 = vector.broadcast %cst_99 : f32 to vector<16x1xf32>
    %182 = arith.divf %180, %181 : vector<16x1xf32>
    %183 = vector.broadcast %182 : vector<16x1xf32> to vector<16x32xf32>
    %184 = arith.subf %174, %183 : vector<16x32xf32>
    %185 = arith.mulf %184, %184 : vector<16x32xf32>
    %cst_100 = arith.constant dense<0.000000e+00> : vector<16xf32>
    %186 = vector.multi_reduction <add>, %185, %cst_100 [1] : vector<16x32xf32> to vector<16xf32>
    %187 = vector.shape_cast %186 : vector<16xf32> to vector<16x1xf32>
    %cst_101 = arith.constant 3.200000e+01 : f32
    %188 = vector.broadcast %cst_101 : f32 to vector<16x1xf32>
    %189 = arith.divf %187, %188 : vector<16x1xf32>
    %190 = vector.broadcast %182 : vector<16x1xf32> to vector<16x32xf32>
    %191 = arith.subf %174, %190 : vector<16x32xf32>
    %cst_102 = arith.constant 9.99999974E-6 : f32
    %192 = vector.broadcast %cst_102 : f32 to vector<16x1xf32>
    %193 = arith.addf %189, %192 : vector<16x1xf32>
    %194 = math.rsqrt %193 : vector<16x1xf32>
    %195 = vector.broadcast %194 : vector<16x1xf32> to vector<16x32xf32>
    %196 = arith.mulf %191, %195 : vector<16x32xf32>
    %197 = vector.broadcast %176 : vector<1x32xf32> to vector<16x32xf32>
    %198 = arith.mulf %196, %197 : vector<16x32xf32>
    %199 = vector.broadcast %178 : vector<1x32xf32> to vector<16x32xf32>
    %200 = arith.addf %198, %199 : vector<16x32xf32>
    %c1_103 = arith.constant 1 : index
    %c0_104 = arith.constant 0 : index
    %c0_105 = arith.constant 0 : index
    %201 = vector.load %arg11[%c1_103, %c0_104, %c0_105] : memref<2x32x64xf32, #tpu.memory_space<vmem>>, vector<1x32x64xf32>
    %202 = vector.shape_cast %201 : vector<1x32x64xf32> to vector<32x64xf32>
    %cst_106 = arith.constant dense<0.000000e+00> : vector<16x64xf32>
    %203 = tpu.matmul %200, %202, %cst_106 {dimension_numbers = #tpu.dot_dimension_numbers<[1], [0], [0], [1], [0, 0, 1, 1], [], []>} : vector<16x32xf32>, vector<32x64xf32>, vector<16x64xf32> -> vector<16x64xf32>
    %c1_107 = arith.constant 1 : index
    %c0_108 = arith.constant 0 : index
    %c0_109 = arith.constant 0 : index
    %204 = vector.load %arg12[%c1_107, %c0_108, %c0_109] : memref<2x1x64xf32, #tpu.memory_space<vmem>>, vector<1x1x64xf32>
    %205 = vector.shape_cast %204 : vector<1x1x64xf32> to vector<1x64xf32>
    %206 = vector.broadcast %205 : vector<1x64xf32> to vector<16x64xf32>
    %207 = arith.addf %203, %206 : vector<16x64xf32>
    %cst_110 = arith.constant 0.000000e+00 : f32
    %208 = vector.broadcast %cst_110 : f32 to vector<16x64xf32>
    %209 = arith.maximumf %207, %208 : vector<16x64xf32>
    %c1_111 = arith.constant 1 : index
    %c0_112 = arith.constant 0 : index
    %c0_113 = arith.constant 0 : index
    %210 = vector.load %arg13[%c1_111, %c0_112, %c0_113] : memref<2x64x32xf32, #tpu.memory_space<vmem>>, vector<1x64x32xf32>
    %211 = vector.shape_cast %210 : vector<1x64x32xf32> to vector<64x32xf32>
    %cst_114 = arith.constant dense<0.000000e+00> : vector<16x32xf32>
    %212 = tpu.matmul %209, %211, %cst_114 {dimension_numbers = #tpu.dot_dimension_numbers<[1], [0], [0], [1], [0, 0, 1, 1], [], []>} : vector<16x64xf32>, vector<64x32xf32>, vector<16x32xf32> -> vector<16x32xf32>
    %c1_115 = arith.constant 1 : index
    %c0_116 = arith.constant 0 : index
    %c0_117 = arith.constant 0 : index
    %213 = vector.load %arg14[%c1_115, %c0_116, %c0_117] : memref<2x1x32xf32, #tpu.memory_space<vmem>>, vector<1x1x32xf32>
    %214 = vector.shape_cast %213 : vector<1x1x32xf32> to vector<1x32xf32>
    %215 = vector.broadcast %214 : vector<1x32xf32> to vector<16x32xf32>
    %216 = arith.addf %212, %215 : vector<16x32xf32>
    %217 = arith.addf %200, %216 : vector<16x32xf32>
    %c1_118 = arith.constant 1 : index
    %c0_119 = arith.constant 0 : index
    %c0_120 = arith.constant 0 : index
    %218 = vector.load %arg15[%c1_118, %c0_119, %c0_120] : memref<2x1x32xf32, #tpu.memory_space<vmem>>, vector<1x1x32xf32>
    %219 = vector.shape_cast %218 : vector<1x1x32xf32> to vector<1x32xf32>
    %c1_121 = arith.constant 1 : index
    %c0_122 = arith.constant 0 : index
    %c0_123 = arith.constant 0 : index
    %220 = vector.load %arg16[%c1_121, %c0_122, %c0_123] : memref<2x1x32xf32, #tpu.memory_space<vmem>>, vector<1x1x32xf32>
    %221 = vector.shape_cast %220 : vector<1x1x32xf32> to vector<1x32xf32>
    %cst_124 = arith.constant dense<0.000000e+00> : vector<16xf32>
    %222 = vector.multi_reduction <add>, %217, %cst_124 [1] : vector<16x32xf32> to vector<16xf32>
    %223 = vector.shape_cast %222 : vector<16xf32> to vector<16x1xf32>
    %cst_125 = arith.constant 3.200000e+01 : f32
    %224 = vector.broadcast %cst_125 : f32 to vector<16x1xf32>
    %225 = arith.divf %223, %224 : vector<16x1xf32>
    %226 = vector.broadcast %225 : vector<16x1xf32> to vector<16x32xf32>
    %227 = arith.subf %217, %226 : vector<16x32xf32>
    %228 = arith.mulf %227, %227 : vector<16x32xf32>
    %cst_126 = arith.constant dense<0.000000e+00> : vector<16xf32>
    %229 = vector.multi_reduction <add>, %228, %cst_126 [1] : vector<16x32xf32> to vector<16xf32>
    %230 = vector.shape_cast %229 : vector<16xf32> to vector<16x1xf32>
    %cst_127 = arith.constant 3.200000e+01 : f32
    %231 = vector.broadcast %cst_127 : f32 to vector<16x1xf32>
    %232 = arith.divf %230, %231 : vector<16x1xf32>
    %233 = vector.broadcast %225 : vector<16x1xf32> to vector<16x32xf32>
    %234 = arith.subf %217, %233 : vector<16x32xf32>
    %cst_128 = arith.constant 9.99999974E-6 : f32
    %235 = vector.broadcast %cst_128 : f32 to vector<16x1xf32>
    %236 = arith.addf %232, %235 : vector<16x1xf32>
    %237 = math.rsqrt %236 : vector<16x1xf32>
    %238 = vector.broadcast %237 : vector<16x1xf32> to vector<16x32xf32>
    %239 = arith.mulf %234, %238 : vector<16x32xf32>
    %240 = vector.broadcast %219 : vector<1x32xf32> to vector<16x32xf32>
    %241 = arith.mulf %239, %240 : vector<16x32xf32>
    %242 = vector.broadcast %221 : vector<1x32xf32> to vector<16x32xf32>
    %243 = arith.addf %241, %242 : vector<16x32xf32>
    %c0_129 = arith.constant 0 : index
    %c0_130 = arith.constant 0 : index
    %244 = vector.load %arg17[%c0_129, %c0_130] : memref<1x32xf32, #tpu.memory_space<vmem>>, vector<1x32xf32>
    %c0_131 = arith.constant 0 : index
    %c0_132 = arith.constant 0 : index
    %245 = vector.load %arg18[%c0_131, %c0_132] : memref<1x32xf32, #tpu.memory_space<vmem>>, vector<1x32xf32>
    %cst_133 = arith.constant dense<0.000000e+00> : vector<16xf32>
    %246 = vector.multi_reduction <add>, %243, %cst_133 [1] : vector<16x32xf32> to vector<16xf32>
    %247 = vector.shape_cast %246 : vector<16xf32> to vector<16x1xf32>
    %cst_134 = arith.constant 3.200000e+01 : f32
    %248 = vector.broadcast %cst_134 : f32 to vector<16x1xf32>
    %249 = arith.divf %247, %248 : vector<16x1xf32>
    %250 = vector.broadcast %249 : vector<16x1xf32> to vector<16x32xf32>
    %251 = arith.subf %243, %250 : vector<16x32xf32>
    %252 = arith.mulf %251, %251 : vector<16x32xf32>
    %cst_135 = arith.constant dense<0.000000e+00> : vector<16xf32>
    %253 = vector.multi_reduction <add>, %252, %cst_135 [1] : vector<16x32xf32> to vector<16xf32>
    %254 = vector.shape_cast %253 : vector<16xf32> to vector<16x1xf32>
    %cst_136 = arith.constant 3.200000e+01 : f32
    %255 = vector.broadcast %cst_136 : f32 to vector<16x1xf32>
    %256 = arith.divf %254, %255 : vector<16x1xf32>
    %257 = vector.broadcast %249 : vector<16x1xf32> to vector<16x32xf32>
    %258 = arith.subf %243, %257 : vector<16x32xf32>
    %cst_137 = arith.constant 9.99999974E-6 : f32
    %259 = vector.broadcast %cst_137 : f32 to vector<16x1xf32>
    %260 = arith.addf %256, %259 : vector<16x1xf32>
    %261 = math.rsqrt %260 : vector<16x1xf32>
    %262 = vector.broadcast %261 : vector<16x1xf32> to vector<16x32xf32>
    %263 = arith.mulf %258, %262 : vector<16x32xf32>
    %264 = vector.broadcast %244 : vector<1x32xf32> to vector<16x32xf32>
    %265 = arith.mulf %263, %264 : vector<16x32xf32>
    %266 = vector.broadcast %245 : vector<1x32xf32> to vector<16x32xf32>
    %267 = arith.addf %265, %266 : vector<16x32xf32>
    %268 = vector.shape_cast %267 : vector<16x32xf32> to vector<2x8x32xf32>
    %c0_138 = arith.constant 0 : index
    %c0_139 = arith.constant 0 : index
    %c0_140 = arith.constant 0 : index
    %269 = vector.load %arg19[%c0_138, %c0_139, %c0_140] : memref<2x8x32xf32, #tpu.memory_space<vmem>>, vector<2x8x32xf32>
    tpu.vector_store %arg19[%c0_138, %c0_139, %c0_140], %268 {strides = array<i32>} : memref<2x8x32xf32, #tpu.memory_space<vmem>>, vector<2x8x32xf32>,
    return
  }
  func.func @transform_0(%arg0: i32) -> (i32, i32, i32) {
    %c0_i32 = arith.constant 0 : i32
    %c0_i32_0 = arith.constant 0 : i32
    %c0_i32_1 = arith.constant 0 : i32
    return %arg0, %c0_i32, %c0_i32_0 : i32, i32, i32
  }
  func.func @transform_1(%arg0: i32) -> (i32, i32, i32) {
    %c0_i32 = arith.constant 0 : i32
    %c0_i32_0 = arith.constant 0 : i32
    %c0_i32_1 = arith.constant 0 : i32
    return %arg0, %c0_i32, %c0_i32_0 : i32, i32, i32
  }
  func.func @transform_2(%arg0: i32) -> (i32, i32, i32) {
    %c0_i32 = arith.constant 0 : i32
    %c0_i32_0 = arith.constant 0 : i32
    %c0_i32_1 = arith.constant 0 : i32
    %c0_i32_2 = arith.constant 0 : i32
    return %c0_i32, %c0_i32_0, %c0_i32_1 : i32, i32, i32
  }
  func.func @transform_3(%arg0: i32) -> (i32, i32, i32) {
    %c0_i32 = arith.constant 0 : i32
    %c0_i32_0 = arith.constant 0 : i32
    %c0_i32_1 = arith.constant 0 : i32
    %c0_i32_2 = arith.constant 0 : i32
    return %c0_i32, %c0_i32_0, %c0_i32_1 : i32, i32, i32
  }
  func.func @transform_4(%arg0: i32) -> (i32, i32, i32) {
    %c0_i32 = arith.constant 0 : i32
    %c0_i32_0 = arith.constant 0 : i32
    %c0_i32_1 = arith.constant 0 : i32
    %c0_i32_2 = arith.constant 0 : i32
    return %c0_i32, %c0_i32_0, %c0_i32_1 : i32, i32, i32
  }
  func.func @transform_5(%arg0: i32) -> (i32, i32, i32) {
    %c0_i32 = arith.constant 0 : i32
    %c0_i32_0 = arith.constant 0 : i32
    %c0_i32_1 = arith.constant 0 : i32
    %c0_i32_2 = arith.constant 0 : i32
    return %c0_i32, %c0_i32_0, %c0_i32_1 : i32, i32, i32
  }
  func.func @transform_6(%arg0: i32) -> (i32, i32, i32) {
    %c0_i32 = arith.constant 0 : i32
    %c0_i32_0 = arith.constant 0 : i32
    %c0_i32_1 = arith.constant 0 : i32
    %c0_i32_2 = arith.constant 0 : i32
    return %c0_i32, %c0_i32_0, %c0_i32_1 : i32, i32, i32
  }
  func.func @transform_7(%arg0: i32) -> (i32, i32, i32) {
    %c0_i32 = arith.constant 0 : i32
    %c0_i32_0 = arith.constant 0 : i32
    %c0_i32_1 = arith.constant 0 : i32
    %c0_i32_2 = arith.constant 0 : i32
    return %c0_i32, %c0_i32_0, %c0_i32_1 : i32, i32, i32
  }
  func.func @transform_8(%arg0: i32) -> (i32, i32, i32) {
    %c0_i32 = arith.constant 0 : i32
    %c0_i32_0 = arith.constant 0 : i32
    %c0_i32_1 = arith.constant 0 : i32
    %c0_i32_2 = arith.constant 0 : i32
    return %c0_i32, %c0_i32_0, %c0_i32_1 : i32, i32, i32
  }
  func.func @transform_9(%arg0: i32) -> (i32, i32, i32) {
    %c0_i32 = arith.constant 0 : i32
    %c0_i32_0 = arith.constant 0 : i32
    %c0_i32_1 = arith.constant 0 : i32
    %c0_i32_2 = arith.constant 0 : i32
    return %c0_i32, %c0_i32_0, %c0_i32_1 : i32, i32, i32
  }
  func.func @transform_10(%arg0: i32) -> (i32, i32, i32) {
    %c0_i32 = arith.constant 0 : i32
    %c0_i32_0 = arith.constant 0 : i32
    %c0_i32_1 = arith.constant 0 : i32
    %c0_i32_2 = arith.constant 0 : i32
    return %c0_i32, %c0_i32_0, %c0_i32_1 : i32, i32, i32
  }
  func.func @transform_11(%arg0: i32) -> (i32, i32, i32) {
    %c0_i32 = arith.constant 0 : i32
    %c0_i32_0 = arith.constant 0 : i32
    %c0_i32_1 = arith.constant 0 : i32
    %c0_i32_2 = arith.constant 0 : i32
    return %c0_i32, %c0_i32_0, %c0_i32_1 : i32, i32, i32
  }
  func.func @transform_12(%arg0: i32) -> (i32, i32, i32) {
    %c0_i32 = arith.constant 0 : i32
    %c0_i32_0 = arith.constant 0 : i32
    %c0_i32_1 = arith.constant 0 : i32
    %c0_i32_2 = arith.constant 0 : i32
    return %c0_i32, %c0_i32_0, %c0_i32_1 : i32, i32, i32
  }
  func.func @transform_13(%arg0: i32) -> (i32, i32, i32) {
    %c0_i32 = arith.constant 0 : i32
    %c0_i32_0 = arith.constant 0 : i32
    %c0_i32_1 = arith.constant 0 : i32
    %c0_i32_2 = arith.constant 0 : i32
    return %c0_i32, %c0_i32_0, %c0_i32_1 : i32, i32, i32
  }
  func.func @transform_14(%arg0: i32) -> (i32, i32, i32) {
    %c0_i32 = arith.constant 0 : i32
    %c0_i32_0 = arith.constant 0 : i32
    %c0_i32_1 = arith.constant 0 : i32
    %c0_i32_2 = arith.constant 0 : i32
    return %c0_i32, %c0_i32_0, %c0_i32_1 : i32, i32, i32
  }
  func.func @transform_15(%arg0: i32) -> (i32, i32, i32) {
    %c0_i32 = arith.constant 0 : i32
    %c0_i32_0 = arith.constant 0 : i32
    %c0_i32_1 = arith.constant 0 : i32
    %c0_i32_2 = arith.constant 0 : i32
    return %c0_i32, %c0_i32_0, %c0_i32_1 : i32, i32, i32
  }
  func.func @transform_16(%arg0: i32) -> (i32, i32) {
    %c0_i32 = arith.constant 0 : i32
    %c0_i32_0 = arith.constant 0 : i32
    %c0_i32_1 = arith.constant 0 : i32
    return %c0_i32, %c0_i32_0 : i32, i32
  }
  func.func @transform_17(%arg0: i32) -> (i32, i32) {
    %c0_i32 = arith.constant 0 : i32
    %c0_i32_0 = arith.constant 0 : i32
    %c0_i32_1 = arith.constant 0 : i32
    return %c0_i32, %c0_i32_0 : i32, i32
  }
  func.func @transform_18(%arg0: i32) -> (i32, i32, i32) {
    %c0_i32 = arith.constant 0 : i32
    %c0_i32_0 = arith.constant 0 : i32
    %c0_i32_1 = arith.constant 0 : i32
    return %arg0, %c0_i32, %c0_i32_0 : i32, i32, i32
  }
}

</mosaic_0001>

<llo_original>
// kernel: transformer_encoder.1
$region0: #{transformer_encoder.1}
  #allocation0 [shape = 'u32[]', space=smem, size = 0x4, offset = 0x4, fixed_abs, tag = 'smem constant byte address 0x4 - core index']
  #allocation1 [shape = 'u32[144,128]{1,0:T(1,128)}', space=vmem, size = 0x12000, scoped, tag = 'internal scratch']
  %s0 = inlined_call_operand.vmem [shape: f32[2,8,32], index: 0, kind: input, shape index: {}]
  %s1 = inlined_call_operand.vmem [shape: f32[2,8,32], index: 1, kind: input, shape index: {}]
  %s2 = inlined_call_operand.vmem [shape: f32[2,32,64], index: 2, kind: input, shape index: {}]
  %s3 = inlined_call_operand.vmem [shape: f32[2,1,64], index: 3, kind: input, shape index: {}]
  %s4 = inlined_call_operand.vmem [shape: f32[2,32,32], index: 4, kind: input, shape index: {}]
  %s5 = inlined_call_operand.vmem [shape: f32[2,1,32], index: 5, kind: input, shape index: {}]
  %s6 = inlined_call_operand.vmem [shape: f32[2,32,32], index: 6, kind: input, shape index: {}]
  %s7 = inlined_call_operand.vmem [shape: f32[2,1,32], index: 7, kind: input, shape index: {}]
  %s8 = inlined_call_operand.vmem [shape: f32[2,1,32], index: 8, kind: input, shape index: {}]
  %s9 = inlined_call_operand.vmem [shape: f32[2,1,32], index: 9, kind: input, shape index: {}]
  %s10 = inlined_call_operand.vmem [shape: f32[2,32,64], index: 10, kind: input, shape index: {}]
  %s11 = inlined_call_operand.vmem [shape: f32[2,1,64], index: 11, kind: input, shape index: {}]
  %s12 = inlined_call_operand.vmem [shape: f32[2,64,32], index: 12, kind: input, shape index: {}]
  %s13 = inlined_call_operand.vmem [shape: f32[2,1,32], index: 13, kind: input, shape index: {}]
  %s14 = inlined_call_operand.vmem [shape: f32[2,1,32], index: 14, kind: input, shape index: {}]
  %s15 = inlined_call_operand.vmem [shape: f32[2,1,32], index: 15, kind: input, shape index: {}]
  %s16 = inlined_call_operand.vmem [shape: f32[1,32], index: 16, kind: input, shape index: {}]
  %s17 = inlined_call_operand.vmem [shape: f32[1,32], index: 17, kind: input, shape index: {}]
  %s18 = inlined_call_operand.vmem [shape: f32[2,8,32], index: 18, kind: output, shape index: {}]
  %s19 = sld [smem:[#allocation0]]
  $region82: #{transformer_encoder.1} parent=0
    _
  %s21 = ssub.s32 1, %s19
  %s22 = scalar_select 0, %s21, %s19
  // Predicated region
  $region2: #{transformer_encoder.1} parent=0 // pred_check
    _
  $region3: #{transformer_encoder.1} parent=0 // pred_check_branch
    %24 = sbr.rel (0) target = $region5
  $region4: #{transformer_encoder.1} parent=0 // pred_region
    _
  $region5: #{transformer_encoder.1} parent=0 // pred_fallthru
    _
  // Predicated region
  $region6: #{transformer_encoder.1} parent=0 // pred_check
    _
  $region7: #{transformer_encoder.1} parent=0 // pred_check_branch
    %26 = sbr.rel (0) target = $region9
  $region8: #{transformer_encoder.1} parent=0 // pred_region
    _
  $region9: #{transformer_encoder.1} parent=0 // pred_fallthru
    _
  // Predicated region
  $region10: #{transformer_encoder.1} parent=0 // pred_check
    _
  $region11: #{transformer_encoder.1} parent=0 // pred_check_branch
    %28 = sbr.rel (0) target = $region13
  $region12: #{transformer_encoder.1} parent=0 // pred_region
    _
  $region13: #{transformer_encoder.1} parent=0 // pred_fallthru
    _
  // Predicated region
  $region14: #{transformer_encoder.1} parent=0 // pred_check
    _
  $region15: #{transformer_encoder.1} parent=0 // pred_check_branch
    %30 = sbr.rel (0) target = $region17
  $region16: #{transformer_encoder.1} parent=0 // pred_region
    _
  $region17: #{transformer_encoder.1} parent=0 // pred_fallthru
    _
  // Predicated region
  $region18: #{transformer_encoder.1} parent=0 // pred_check
    _
  $region19: #{transformer_encoder.1} parent=0 // pred_check_branch
    %32 = sbr.rel (0) target = $region21
  $region20: #{transformer_encoder.1} parent=0 // pred_region
    _
  $region21: #{transformer_encoder.1} parent=0 // pred_fallthru
    _
  // Predicated region
  $region22: #{transformer_encoder.1} parent=0 // pred_check
    _
  $region23: #{transformer_encoder.1} parent=0 // pred_check_branch
    %34 = sbr.rel (0) target = $region25
  $region24: #{transformer_encoder.1} parent=0 // pred_region
    _
  $region25: #{transformer_encoder.1} parent=0 // pred_fallthru
    _
  // Predicated region
  $region26: #{transformer_encoder.1} parent=0 // pred_check
    _
  $region27: #{transformer_encoder.1} parent=0 // pred_check_branch
    %36 = sbr.rel (0) target = $region29
  $region28: #{transformer_encoder.1} parent=0 // pred_region
    _
  $region29: #{transformer_encoder.1} parent=0 // pred_fallthru
    _
  // Predicated region
  $region30: #{transformer_encoder.1} parent=0 // pred_check
    _
  $region31: #{transformer_encoder.1} parent=0 // pred_check_branch
    %38 = sbr.rel (0) target = $region33
  $region32: #{transformer_encoder.1} parent=0 // pred_region
    _
  $region33: #{transformer_encoder.1} parent=0 // pred_fallthru
    _
  // Predicated region
  $region34: #{transformer_encoder.1} parent=0 // pred_check
    _
  $region35: #{transformer_encoder.1} parent=0 // pred_check_branch
    %40 = sbr.rel (0) target = $region37
  $region36: #{transformer_encoder.1} parent=0 // pred_region
    _
  $region37: #{transformer_encoder.1} parent=0 // pred_fallthru
    _
  // Predicated region
  $region38: #{transformer_encoder.1} parent=0 // pred_check
    _
  $region39: #{transformer_encoder.1} parent=0 // pred_check_branch
    %42 = sbr.rel (0) target = $region41
  $region40: #{transformer_encoder.1} parent=0 // pred_region
    _
  $region41: #{transformer_encoder.1} parent=0 // pred_fallthru
    _
  // Predicated region
  $region42: #{transformer_encoder.1} parent=0 // pred_check
    _
  $region43: #{transformer_encoder.1} parent=0 // pred_check_branch
    %44 = sbr.rel (0) target = $region45
  $region44: #{transformer_encoder.1} parent=0 // pred_region
    _
  $region45: #{transformer_encoder.1} parent=0 // pred_fallthru
    _
  // Predicated region
  $region46: #{transformer_encoder.1} parent=0 // pred_check
    _
  $region47: #{transformer_encoder.1} parent=0 // pred_check_branch
    %46 = sbr.rel (0) target = $region49
  $region48: #{transformer_encoder.1} parent=0 // pred_region
    _
  $region49: #{transformer_encoder.1} parent=0 // pred_fallthru
    _
  // Predicated region
  $region50: #{transformer_encoder.1} parent=0 // pred_check
    _
  $region51: #{transformer_encoder.1} parent=0 // pred_check_branch
    %48 = sbr.rel (0) target = $region53
  $region52: #{transformer_encoder.1} parent=0 // pred_region
    _
  $region53: #{transformer_encoder.1} parent=0 // pred_fallthru
    _
  // Predicated region
  $region54: #{transformer_encoder.1} parent=0 // pred_check
    _
  $region55: #{transformer_encoder.1} parent=0 // pred_check_branch
    %50 = sbr.rel (0) target = $region57
  $region56: #{transformer_encoder.1} parent=0 // pred_region
    _
  $region57: #{transformer_encoder.1} parent=0 // pred_fallthru
    _
  // Predicated region
  $region58: #{transformer_encoder.1} parent=0 // pred_check
    _
  $region59: #{transformer_encoder.1} parent=0 // pred_check_branch
    %52 = sbr.rel (0) target = $region61
  $region60: #{transformer_encoder.1} parent=0 // pred_region
    _
  $region61: #{transformer_encoder.1} parent=0 // pred_fallthru
    _
  // Predicated region
  $region62: #{transformer_encoder.1} parent=0 // pred_check
    _
  $region63: #{transformer_encoder.1} parent=0 // pred_check_branch
    %54 = sbr.rel (0) target = $region65
  $region64: #{transformer_encoder.1} parent=0 // pred_region
    _
  $region65: #{transformer_encoder.1} parent=0 // pred_fallthru
    _
  // Predicated region
  $region66: #{transformer_encoder.1} parent=0 // pred_check
    _
  $region67: #{transformer_encoder.1} parent=0 // pred_check_branch
    %56 = sbr.rel (0) target = $region69
  $region68: #{transformer_encoder.1} parent=0 // pred_region
    _
  $region69: #{transformer_encoder.1} parent=0 // pred_fallthru
    _
  // Predicated region
  $region70: #{transformer_encoder.1} parent=0 // pred_check
    _
  $region71: #{transformer_encoder.1} parent=0 // pred_check_branch
    %58 = sbr.rel (0) target = $region73
  $region72: #{transformer_encoder.1} parent=0 // pred_region
    _
  $region73: #{transformer_encoder.1} parent=0 // pred_fallthru
    _
  %v59 = vld [vmem:[%s0] sm:$0xff]
  %v60 = vld [vmem:[%s0 + $0x8] sm:$0xff]
  %v61 = vld [vmem:[%s1] sm:$0xff]
  %v62 = vld [vmem:[%s1 + $0x8] sm:$0xff]
  %v63 = vadd.f32 %v59, %v61
  %v64 = vadd.f32 %v60, %v62
  %v65 = vld [vmem:[%s2] sm:$0xff]
  %v66 = vld [vmem:[%s2 + $0x8] sm:$0xff]
  %v67 = vld [vmem:[%s2 + $0x10] sm:$0xff]
  %v68 = vld [vmem:[%s2 + $0x18] sm:$0xff]
  %v69 = vld [vmem:[%s3] sm:$0x1]
  %v71 = vlaneseq
  %v72 = vshrl.u32 %v71, 7
  %v73 = vsub.s32 0, %v72
  %v74 = vrot.slane %v69, %v73
  %vm76 = vcmask 261120
  %v78 = vsel %vm76, %v63, 0
  %v81 = vsel %vm76, %v64, 0
  %83 = vmatprep.subr.mxu0 0.0
  %84 = vmatpush1.msra.mxu0 0.0
  %85 = vmatprep.subr.mxu0 0.0
  %86 = vmatpush1.msra.mxu0 0.0
  %87 = vmatprep.subr.mxu0 0.0
  %88 = vmatpush1.msra.mxu0 0.0
  %89 = vmatprep.subr.mxu0 0.0
  %90 = vmatpush1.msra.mxu0 0.0
  %91 = vmatprep.subr.mxu0 0.0
  %92 = vmatpush1.msra.mxu0 0.0
  %93 = vmatprep.subr.mxu0 0.0
  %94 = vmatpush1.msra.mxu0 0.0
  %95 = vmatprep.subr.mxu0 0.0
  %96 = vmatpush1.msra.mxu0 0.0
  %97 = vmatprep.subr.mxu0 0.0
  %98 = vmatpush1.msra.mxu0 0.0
  %99 = vmatprep.subr.mxu0 0.0
  %100 = vmatpush1.msra.mxu0 0.0
  %101 = vmatprep.subr.mxu0 0.0
  %102 = vmatpush1.msra.mxu0 0.0
  %103 = vmatprep.subr.mxu0 0.0
  %104 = vmatpush1.msra.mxu0 0.0
  %105 = vmatprep.subr.mxu0 0.0
  %106 = vmatpush1.msra.mxu0 0.0
  %107 = vmatprep.subr.mxu0 0.0
  %108 = vmatpush1.msra.mxu0 %v68
  %109 = vmatprep.subr.mxu0 0.0
  %110 = vmatpush1.msra.mxu0 %v67
  %111 = vmatprep.subr.mxu0 0.0
  %112 = vmatpush1.msra.mxu0 %v66
  %113 = vmatprep.subr.mxu0 0.0
  %114 = vmatpush1.msra.mxu0 %v65
  %115 = vmatprep.subr.mxu0 0.0
  %116 = vmatpush2.msra.mxu0 0.0
  %117 = vmatprep.subr.mxu0 0.0
  %118 = vmatpush2.msra.mxu0 0.0
  %119 = vmatprep.subr.mxu0 0.0
  %120 = vmatpush2.msra.mxu0 0.0
  %121 = vmatprep.subr.mxu0 0.0
  %122 = vmatpush2.msra.mxu0 0.0
  %123 = vmatprep.subr.mxu0 0.0
  %124 = vmatpush2.msra.mxu0 0.0
  %125 = vmatprep.subr.mxu0 0.0
  %126 = vmatpush2.msra.mxu0 0.0
  %127 = vmatprep.subr.mxu0 0.0
  %128 = vmatpush2.msra.mxu0 0.0
  %129 = vmatprep.subr.mxu0 0.0
  %130 = vmatpush2.msra.mxu0 0.0
  %131 = vmatprep.subr.mxu0 0.0
  %132 = vmatpush2.msra.mxu0 0.0
  %133 = vmatprep.subr.mxu0 0.0
  %134 = vmatpush2.msra.mxu0 0.0
  %135 = vmatprep.subr.mxu0 0.0
  %136 = vmatpush2.msra.mxu0 0.0
  %137 = vmatprep.subr.mxu0 0.0
  %138 = vmatpush2.msra.mxu0 0.0
  %139 = vmatprep.subr.mxu0 0.0
  %140 = vmatpush2.msra.mxu0 0.0
  %141 = vmatprep.subr.mxu0 0.0
  %142 = vmatpush2.msra.mxu0 0.0
  %143 = vmatprep.subr.mxu0 0.0
  %144 = vmatpush2.msra.mxu0 0.0
  %145 = vmatprep.subr.mxu0 0.0
  %146 = vmatpush2.msra.mxu0 0.0
  %147 = vmatprep.mubr.f32.mxu0 0.0
  %148 = vmatmul.mubr.f32.gmra.mxu0 %v78
  %v149 = vpop.f32.mrf.mxu0
  %v150 = vadd.f32 %v74, %v149
  %v151 = vpop.f32.mrf.mxu0
  %152 = vmatprep.mubr.f32.mxu0 0.0
  %153 = vmatmul.mubr.f32.gmra.mxu0 %v81
  %v154 = vpop.f32.mrf.mxu0
  %v155 = vadd.f32 %v74, %v154
  %v156 = vpop.f32.mrf.mxu0
  %157 = vdwg.mxu0
  %v158 = vld [vmem:[%s4] sm:$0xff]
  %v159 = vld [vmem:[%s4 + $0x8] sm:$0xff]
  %v160 = vld [vmem:[%s4 + $0x10] sm:$0xff]
  %v161 = vld [vmem:[%s4 + $0x18] sm:$0xff]
  %v162 = vld [vmem:[%s5] sm:$0x1]
  %v164 = vlaneseq
  %v165 = vshrl.u32 %v164, 7
  %v166 = vsub.s32 0, %v165
  %v167 = vrot.slane %v162, %v166
  %v170 = vsel %vm76, %v59, 0
  %v173 = vsel %vm76, %v60, 0
  %175 = vmatprep.subr.mxu0 0.0
  %176 = vmatpush1.msra.mxu0 0.0
  %177 = vmatprep.subr.mxu0 0.0
  %178 = vmatpush1.msra.mxu0 0.0
  %179 = vmatprep.subr.mxu0 0.0
  %180 = vmatpush1.msra.mxu0 0.0
  %181 = vmatprep.subr.mxu0 0.0
  %182 = vmatpush1.msra.mxu0 0.0
  %183 = vmatprep.subr.mxu0 0.0
  %184 = vmatpush1.msra.mxu0 0.0
  %185 = vmatprep.subr.mxu0 0.0
  %186 = vmatpush1.msra.mxu0 0.0
  %187 = vmatprep.subr.mxu0 0.0
  %188 = vmatpush1.msra.mxu0 0.0
  %189 = vmatprep.subr.mxu0 0.0
  %190 = vmatpush1.msra.mxu0 0.0
  %191 = vmatprep.subr.mxu0 0.0
  %192 = vmatpush1.msra.mxu0 0.0
  %193 = vmatprep.subr.mxu0 0.0
  %194 = vmatpush1.msra.mxu0 0.0
  %195 = vmatprep.subr.mxu0 0.0
  %196 = vmatpush1.msra.mxu0 0.0
  %197 = vmatprep.subr.mxu0 0.0
  %198 = vmatpush1.msra.mxu0 0.0
  %199 = vmatprep.subr.mxu0 0.0
  %200 = vmatpush1.msra.mxu0 %v161
  %201 = vmatprep.subr.mxu0 0.0
  %202 = vmatpush1.msra.mxu0 %v160
  %203 = vmatprep.subr.mxu0 0.0
  %204 = vmatpush1.msra.mxu0 %v159
  %205 = vmatprep.subr.mxu0 0.0
  %206 = vmatpush1.msra.mxu0 %v158
  %207 = vmatprep.subr.mxu0 0.0
  %208 = vmatpush2.msra.mxu0 0.0
  %209 = vmatprep.subr.mxu0 0.0
  %210 = vmatpush2.msra.mxu0 0.0
  %211 = vmatprep.subr.mxu0 0.0
  %212 = vmatpush2.msra.mxu0 0.0
  %213 = vmatprep.subr.mxu0 0.0
  %214 = vmatpush2.msra.mxu0 0.0
  %215 = vmatprep.subr.mxu0 0.0
  %216 = vmatpush2.msra.mxu0 0.0
  %217 = vmatprep.subr.mxu0 0.0
  %218 = vmatpush2.msra.mxu0 0.0
  %219 = vmatprep.subr.mxu0 0.0
  %220 = vmatpush2.msra.mxu0 0.0
  %221 = vmatprep.subr.mxu0 0.0
  %222 = vmatpush2.msra.mxu0 0.0
  %223 = vmatprep.subr.mxu0 0.0
  %224 = vmatpush2.msra.mxu0 0.0
  %225 = vmatprep.subr.mxu0 0.0
  %226 = vmatpush2.msra.mxu0 0.0
  %227 = vmatprep.subr.mxu0 0.0
  %228 = vmatpush2.msra.mxu0 0.0
  %229 = vmatprep.subr.mxu0 0.0
  %230 = vmatpush2.msra.mxu0 0.0
  %231 = vmatprep.subr.mxu0 0.0
  %232 = vmatpush2.msra.mxu0 0.0
  %233 = vmatprep.subr.mxu0 0.0
  %234 = vmatpush2.msra.mxu0 0.0
  %235 = vmatprep.subr.mxu0 0.0
  %236 = vmatpush2.msra.mxu0 0.0
  %237 = vmatprep.subr.mxu0 0.0
  %238 = vmatpush2.msra.mxu0 0.0
  %239 = vmatprep.mubr.f32.mxu0 0.0
  %240 = vmatmul.mubr.f32.gmra.mxu0 %v170
  %v241 = vpop.f32.mrf.mxu0
  %v242 = vadd.f32 %v167, %v241
  %v243 = vpop.f32.mrf.mxu0
  %244 = vmatprep.mubr.f32.mxu0 0.0
  %245 = vmatmul.mubr.f32.gmra.mxu0 %v173
  %v246 = vpop.f32.mrf.mxu0
  %v247 = vadd.f32 %v167, %v246
  %v248 = vpop.f32.mrf.mxu0
  %249 = vdwg.mxu0
  %252 = vrot.lane.b32.xlu0 %v150, 120
  %v253 = vpop.permute.xlu0 %252
  %254 = vrot.lane.b32.xlu0 %v155, 120
  %v255 = vpop.permute.xlu0 %254
  %258 = vrot.lane.b32.xlu0 %v150, 112
  %v259 = vpop.permute.xlu0 %258
  %260 = vrot.lane.b32.xlu0 %v155, 112
  %v261 = vpop.permute.xlu0 %260
  %264 = vrot.lane.b32.xlu0 %v150, 104
  %v265 = vpop.permute.xlu0 %264
  %266 = vrot.lane.b32.xlu0 %v155, 104
  %v267 = vpop.permute.xlu0 %266
  %v270 = vcombine.low %v150, %v259
  %v271 = vcombine.high %v150, %v259
  %v273 = vunpack.c.l.s4 1983009808
  %v274 = vunpack.c.0.s8 %v273
  %v275 = vlaneseq
  %v276 = vshrl.u32 %v275, 7
  %v277 = vsub.s32 %v274, %v276
  %v278 = vrot.slane %v270, %v277
  %v280 = vunpack.c.l.s4 1983009808
  %v281 = vunpack.c.0.s8 %v280
  %v282 = vlaneseq
  %v283 = vshrl.u32 %v282, 7
  %v284 = vsub.s32 %v281, %v283
  %v285 = vrot.slane %v271, %v284
  %v286 = vcombine.low %v253, %v265
  %v287 = vcombine.high %v253, %v265
  %v289 = vunpack.c.l.s4 1983009808
  %v290 = vunpack.c.0.s8 %v289
  %v291 = vlaneseq
  %v292 = vshrl.u32 %v291, 7
  %v293 = vsub.s32 %v290, %v292
  %v294 = vrot.slane %v286, %v293
  %v296 = vunpack.c.l.s4 1983009808
  %v297 = vunpack.c.0.s8 %v296
  %v298 = vlaneseq
  %v299 = vshrl.u32 %v298, 7
  %v300 = vsub.s32 %v297, %v299
  %v301 = vrot.slane %v287, %v300
  %v302 = vcombine.low %v278, %v294
  %v303 = vcombine.high %v278, %v294
  %v305 = vunpack.c.l.s4 1934713408
  %v306 = vunpack.c.0.s8 %v305
  %v307 = vlaneseq
  %v308 = vshrl.u32 %v307, 7
  %v309 = vsub.s32 %v306, %v308
  %v310 = vrot.slane %v302, %v309
  %v312 = vunpack.c.l.s4 1934713408
  %v313 = vunpack.c.0.s8 %v312
  %v314 = vlaneseq
  %v315 = vshrl.u32 %v314, 7
  %v316 = vsub.s32 %v313, %v315
  %v317 = vrot.slane %v303, %v316
  %v318 = vcombine.low %v285, %v301
  %v319 = vcombine.high %v285, %v301
  %v321 = vunpack.c.l.s4 1934713408
  %v322 = vunpack.c.0.s8 %v321
  %v323 = vlaneseq
  %v324 = vshrl.u32 %v323, 7
  %v325 = vsub.s32 %v322, %v324
  %v326 = vrot.slane %v318, %v325
  %v328 = vunpack.c.l.s4 1934713408
  %v329 = vunpack.c.0.s8 %v328
  %v330 = vlaneseq
  %v331 = vshrl.u32 %v330, 7
  %v332 = vsub.s32 %v329, %v331
  %v333 = vrot.slane %v319, %v332
  %v334 = vcombine.high %v310, 0.0
  %v335 = vcombine.high %v317, 0.0
  %v336 = vcombine.high %v326, 0.0
  %v337 = vcombine.high %v333, 0.0
  %v338 = vcombine.low %v155, %v261
  %v339 = vcombine.high %v155, %v261
  %v341 = vunpack.c.l.s4 1983009808
  %v342 = vunpack.c.0.s8 %v341
  %v343 = vlaneseq
  %v344 = vshrl.u32 %v343, 7
  %v345 = vsub.s32 %v342, %v344
  %v346 = vrot.slane %v338, %v345
  %v348 = vunpack.c.l.s4 1983009808
  %v349 = vunpack.c.0.s8 %v348
  %v350 = vlaneseq
  %v351 = vshrl.u32 %v350, 7
  %v352 = vsub.s32 %v349, %v351
  %v353 = vrot.slane %v339, %v352
  %v354 = vcombine.low %v255, %v267
  %v355 = vcombine.high %v255, %v267
  %v357 = vunpack.c.l.s4 1983009808
  %v358 = vunpack.c.0.s8 %v357
  %v359 = vlaneseq
  %v360 = vshrl.u32 %v359, 7
  %v361 = vsub.s32 %v358, %v360
  %v362 = vrot.slane %v354, %v361
  %v364 = vunpack.c.l.s4 1983009808
  %v365 = vunpack.c.0.s8 %v364
  %v366 = vlaneseq
  %v367 = vshrl.u32 %v366, 7
  %v368 = vsub.s32 %v365, %v367
  %v369 = vrot.slane %v355, %v368
  %v370 = vcombine.low %v346, %v362
  %v371 = vcombine.high %v346, %v362
  %v373 = vunpack.c.l.s4 1934713408
  %v374 = vunpack.c.0.s8 %v373
  %v375 = vlaneseq
  %v376 = vshrl.u32 %v375, 7
  %v377 = vsub.s32 %v374, %v376
  %v378 = vrot.slane %v370, %v377
  %v380 = vunpack.c.l.s4 1934713408
  %v381 = vunpack.c.0.s8 %v380
  %v382 = vlaneseq
  %v383 = vshrl.u32 %v382, 7
  %v384 = vsub.s32 %v381, %v383
  %v385 = vrot.slane %v371, %v384
  %v386 = vcombine.low %v353, %v369
  %v387 = vcombine.high %v353, %v369
  %v389 = vunpack.c.l.s4 1934713408
  %v390 = vunpack.c.0.s8 %v389
  %v391 = vlaneseq
  %v392 = vshrl.u32 %v391, 7
  %v393 = vsub.s32 %v390, %v392
  %v394 = vrot.slane %v386, %v393
  %v396 = vunpack.c.l.s4 1934713408
  %v397 = vunpack.c.0.s8 %v396
  %v398 = vlaneseq
  %v399 = vshrl.u32 %v398, 7
  %v400 = vsub.s32 %v397, %v399
  %v401 = vrot.slane %v387, %v400
  %v402 = vcombine.high %v378, 0.0
  %v403 = vcombine.high %v385, 0.0
  %v404 = vcombine.high %v394, 0.0
  %v405 = vcombine.high %v401, 0.0
  %v406 = vcombine.low %v310, %v317
  %v408 = vunpack.c.l.s4 1983009808
  %v409 = vunpack.c.0.s8 %v408
  %v410 = vlaneseq
  %v411 = vshrl.u32 %v410, 7
  %v412 = vsub.s32 %v409, %v411
  %v413 = vrot.slane %v406, %v412
  %v414 = vcombine.low %v334, %v335
  %v416 = vunpack.c.l.s4 1983009808
  %v417 = vunpack.c.0.s8 %v416
  %v418 = vlaneseq
  %v419 = vshrl.u32 %v418, 7
  %v420 = vsub.s32 %v417, %v419
  %v421 = vrot.slane %v414, %v420
  %v422 = vcombine.low %v326, %v333
  %v424 = vunpack.c.l.s4 1983009808
  %v425 = vunpack.c.0.s8 %v424
  %v426 = vlaneseq
  %v427 = vshrl.u32 %v426, 7
  %v428 = vsub.s32 %v425, %v427
  %v429 = vrot.slane %v422, %v428
  %v430 = vcombine.low %v336, %v337
  %v432 = vunpack.c.l.s4 1983009808
  %v433 = vunpack.c.0.s8 %v432
  %v434 = vlaneseq
  %v435 = vshrl.u32 %v434, 7
  %v436 = vsub.s32 %v433, %v435
  %v437 = vrot.slane %v430, %v436
  %v438 = vcombine.low %v413, %v421
  %v439 = vcombine.high %v413, %v421
  %v441 = vunpack.c.l.s4 1934713408
  %v442 = vunpack.c.0.s8 %v441
  %v443 = vlaneseq
  %v444 = vshrl.u32 %v443, 7
  %v445 = vsub.s32 %v442, %v444
  %v446 = vrot.slane %v438, %v445
  %v448 = vunpack.c.l.s4 1934713408
  %v449 = vunpack.c.0.s8 %v448
  %v450 = vlaneseq
  %v451 = vshrl.u32 %v450, 7
  %v452 = vsub.s32 %v449, %v451
  %v453 = vrot.slane %v439, %v452
  %v454 = vcombine.low %v429, %v437
  %v455 = vcombine.high %v429, %v437
  %v457 = vunpack.c.l.s4 1934713408
  %v458 = vunpack.c.0.s8 %v457
  %v459 = vlaneseq
  %v460 = vshrl.u32 %v459, 7
  %v461 = vsub.s32 %v458, %v460
  %v462 = vrot.slane %v454, %v461
  %v464 = vunpack.c.l.s4 1934713408
  %v465 = vunpack.c.0.s8 %v464
  %v466 = vlaneseq
  %v467 = vshrl.u32 %v466, 7
  %v468 = vsub.s32 %v465, %v467
  %v469 = vrot.slane %v455, %v468
  %v470 = vcombine.low %v446, %v462
  %v471 = vcombine.high %v446, %v462
  %v472 = vcombine.low %v453, %v469
  %v473 = vcombine.high %v453, %v469
  %v474 = vcombine.low %v378, %v385
  %v476 = vunpack.c.l.s4 1983009808
  %v477 = vunpack.c.0.s8 %v476
  %v478 = vlaneseq
  %v479 = vshrl.u32 %v478, 7
  %v480 = vsub.s32 %v477, %v479
  %v481 = vrot.slane %v474, %v480
  %v482 = vcombine.low %v402, %v403
  %v484 = vunpack.c.l.s4 1983009808
  %v485 = vunpack.c.0.s8 %v484
  %v486 = vlaneseq
  %v487 = vshrl.u32 %v486, 7
  %v488 = vsub.s32 %v485, %v487
  %v489 = vrot.slane %v482, %v488
  %v490 = vcombine.low %v394, %v401
  %v492 = vunpack.c.l.s4 1983009808
  %v493 = vunpack.c.0.s8 %v492
  %v494 = vlaneseq
  %v495 = vshrl.u32 %v494, 7
  %v496 = vsub.s32 %v493, %v495
  %v497 = vrot.slane %v490, %v496
  %v498 = vcombine.low %v404, %v405
  %v500 = vunpack.c.l.s4 1983009808
  %v501 = vunpack.c.0.s8 %v500
  %v502 = vlaneseq
  %v503 = vshrl.u32 %v502, 7
  %v504 = vsub.s32 %v501, %v503
  %v505 = vrot.slane %v498, %v504
  %v506 = vcombine.low %v481, %v489
  %v507 = vcombine.high %v481, %v489
  %v509 = vunpack.c.l.s4 1934713408
  %v510 = vunpack.c.0.s8 %v509
  %v511 = vlaneseq
  %v512 = vshrl.u32 %v511, 7
  %v513 = vsub.s32 %v510, %v512
  %v514 = vrot.slane %v506, %v513
  %v516 = vunpack.c.l.s4 1934713408
  %v517 = vunpack.c.0.s8 %v516
  %v518 = vlaneseq
  %v519 = vshrl.u32 %v518, 7
  %v520 = vsub.s32 %v517, %v519
  %v521 = vrot.slane %v507, %v520
  %v522 = vcombine.low %v497, %v505
  %v523 = vcombine.high %v497, %v505
  %v525 = vunpack.c.l.s4 1934713408
  %v526 = vunpack.c.0.s8 %v525
  %v527 = vlaneseq
  %v528 = vshrl.u32 %v527, 7
  %v529 = vsub.s32 %v526, %v528
  %v530 = vrot.slane %v522, %v529
  %v532 = vunpack.c.l.s4 1934713408
  %v533 = vunpack.c.0.s8 %v532
  %v534 = vlaneseq
  %v535 = vshrl.u32 %v534, 7
  %v536 = vsub.s32 %v533, %v535
  %v537 = vrot.slane %v523, %v536
  %v538 = vcombine.low %v514, %v530
  %v539 = vcombine.high %v514, %v530
  %v540 = vcombine.low %v521, %v537
  %v541 = vcombine.high %v521, %v537
  %542 = vrot.lane.b32.xlu0 %v150, 96
  %v543 = vpop.permute.xlu0 %542
  %544 = vrot.lane.b32.xlu0 %v155, 96
  %v545 = vpop.permute.xlu0 %544
  %546 = vrot.lane.b32.xlu0 %v253, 96
  %v547 = vpop.permute.xlu0 %546
  %548 = vrot.lane.b32.xlu0 %v255, 96
  %v549 = vpop.permute.xlu0 %548
  %550 = vrot.lane.b32.xlu0 %v259, 96
  %v551 = vpop.permute.xlu0 %550
  %552 = vrot.lane.b32.xlu0 %v261, 96
  %v553 = vpop.permute.xlu0 %552
  %554 = vrot.lane.b32.xlu0 %v265, 96
  %v555 = vpop.permute.xlu0 %554
  %556 = vrot.lane.b32.xlu0 %v267, 96
  %v557 = vpop.permute.xlu0 %556
  %v566 = vcombine.low %v543, %v551
  %v567 = vcombine.high %v543, %v551
  %v569 = vunpack.c.l.s4 1983009808
  %v570 = vunpack.c.0.s8 %v569
  %v571 = vlaneseq
  %v572 = vshrl.u32 %v571, 7
  %v573 = vsub.s32 %v570, %v572
  %v574 = vrot.slane %v566, %v573
  %v576 = vunpack.c.l.s4 1983009808
  %v577 = vunpack.c.0.s8 %v576
  %v578 = vlaneseq
  %v579 = vshrl.u32 %v578, 7
  %v580 = vsub.s32 %v577, %v579
  %v581 = vrot.slane %v567, %v580
  %v582 = vcombine.low %v547, %v555
  %v583 = vcombine.high %v547, %v555
  %v585 = vunpack.c.l.s4 1983009808
  %v586 = vunpack.c.0.s8 %v585
  %v587 = vlaneseq
  %v588 = vshrl.u32 %v587, 7
  %v589 = vsub.s32 %v586, %v588
  %v590 = vrot.slane %v582, %v589
  %v592 = vunpack.c.l.s4 1983009808
  %v593 = vunpack.c.0.s8 %v592
  %v594 = vlaneseq
  %v595 = vshrl.u32 %v594, 7
  %v596 = vsub.s32 %v593, %v595
  %v597 = vrot.slane %v583, %v596
  %v598 = vcombine.low %v574, %v590
  %v599 = vcombine.high %v574, %v590
  %v601 = vunpack.c.l.s4 1934713408
  %v602 = vunpack.c.0.s8 %v601
  %v603 = vlaneseq
  %v604 = vshrl.u32 %v603, 7
  %v605 = vsub.s32 %v602, %v604
  %v606 = vrot.slane %v598, %v605
  %v608 = vunpack.c.l.s4 1934713408
  %v609 = vunpack.c.0.s8 %v608
  %v610 = vlaneseq
  %v611 = vshrl.u32 %v610, 7
  %v612 = vsub.s32 %v609, %v611
  %v613 = vrot.slane %v599, %v612
  %v614 = vcombine.low %v581, %v597
  %v615 = vcombine.high %v581, %v597
  %v617 = vunpack.c.l.s4 1934713408
  %v618 = vunpack.c.0.s8 %v617
  %v619 = vlaneseq
  %v620 = vshrl.u32 %v619, 7
  %v621 = vsub.s32 %v618, %v620
  %v622 = vrot.slane %v614, %v621
  %v624 = vunpack.c.l.s4 1934713408
  %v625 = vunpack.c.0.s8 %v624
  %v626 = vlaneseq
  %v627 = vshrl.u32 %v626, 7
  %v628 = vsub.s32 %v625, %v627
  %v629 = vrot.slane %v615, %v628
  %v630 = vcombine.high %v606, 0.0
  %v631 = vcombine.high %v613, 0.0
  %v632 = vcombine.high %v622, 0.0
  %v633 = vcombine.high %v629, 0.0
  %v634 = vcombine.low %v545, %v553
  %v635 = vcombine.high %v545, %v553
  %v637 = vunpack.c.l.s4 1983009808
  %v638 = vunpack.c.0.s8 %v637
  %v639 = vlaneseq
  %v640 = vshrl.u32 %v639, 7
  %v641 = vsub.s32 %v638, %v640
  %v642 = vrot.slane %v634, %v641
  %v644 = vunpack.c.l.s4 1983009808
  %v645 = vunpack.c.0.s8 %v644
  %v646 = vlaneseq
  %v647 = vshrl.u32 %v646, 7
  %v648 = vsub.s32 %v645, %v647
  %v649 = vrot.slane %v635, %v648
  %v650 = vcombine.low %v549, %v557
  %v651 = vcombine.high %v549, %v557
  %v653 = vunpack.c.l.s4 1983009808
  %v654 = vunpack.c.0.s8 %v653
  %v655 = vlaneseq
  %v656 = vshrl.u32 %v655, 7
  %v657 = vsub.s32 %v654, %v656
  %v658 = vrot.slane %v650, %v657
  %v660 = vunpack.c.l.s4 1983009808
  %v661 = vunpack.c.0.s8 %v660
  %v662 = vlaneseq
  %v663 = vshrl.u32 %v662, 7
  %v664 = vsub.s32 %v661, %v663
  %v665 = vrot.slane %v651, %v664
  %v666 = vcombine.low %v642, %v658
  %v667 = vcombine.high %v642, %v658
  %v669 = vunpack.c.l.s4 1934713408
  %v670 = vunpack.c.0.s8 %v669
  %v671 = vlaneseq
  %v672 = vshrl.u32 %v671, 7
  %v673 = vsub.s32 %v670, %v672
  %v674 = vrot.slane %v666, %v673
  %v676 = vunpack.c.l.s4 1934713408
  %v677 = vunpack.c.0.s8 %v676
  %v678 = vlaneseq
  %v679 = vshrl.u32 %v678, 7
  %v680 = vsub.s32 %v677, %v679
  %v681 = vrot.slane %v667, %v680
  %v682 = vcombine.low %v649, %v665
  %v683 = vcombine.high %v649, %v665
  %v685 = vunpack.c.l.s4 1934713408
  %v686 = vunpack.c.0.s8 %v685
  %v687 = vlaneseq
  %v688 = vshrl.u32 %v687, 7
  %v689 = vsub.s32 %v686, %v688
  %v690 = vrot.slane %v682, %v689
  %v692 = vunpack.c.l.s4 1934713408
  %v693 = vunpack.c.0.s8 %v692
  %v694 = vlaneseq
  %v695 = vshrl.u32 %v694, 7
  %v696 = vsub.s32 %v693, %v695
  %v697 = vrot.slane %v683, %v696
  %v698 = vcombine.high %v674, 0.0
  %v699 = vcombine.high %v681, 0.0
  %v700 = vcombine.high %v690, 0.0
  %v701 = vcombine.high %v697, 0.0
  %v702 = vcombine.low %v606, %v613
  %v704 = vunpack.c.l.s4 1983009808
  %v705 = vunpack.c.0.s8 %v704
  %v706 = vlaneseq
  %v707 = vshrl.u32 %v706, 7
  %v708 = vsub.s32 %v705, %v707
  %v709 = vrot.slane %v702, %v708
  %v710 = vcombine.low %v630, %v631
  %v712 = vunpack.c.l.s4 1983009808
  %v713 = vunpack.c.0.s8 %v712
  %v714 = vlaneseq
  %v715 = vshrl.u32 %v714, 7
  %v716 = vsub.s32 %v713, %v715
  %v717 = vrot.slane %v710, %v716
  %v718 = vcombine.low %v622, %v629
  %v720 = vunpack.c.l.s4 1983009808
  %v721 = vunpack.c.0.s8 %v720
  %v722 = vlaneseq
  %v723 = vshrl.u32 %v722, 7
  %v724 = vsub.s32 %v721, %v723
  %v725 = vrot.slane %v718, %v724
  %v726 = vcombine.low %v632, %v633
  %v728 = vunpack.c.l.s4 1983009808
  %v729 = vunpack.c.0.s8 %v728
  %v730 = vlaneseq
  %v731 = vshrl.u32 %v730, 7
  %v732 = vsub.s32 %v729, %v731
  %v733 = vrot.slane %v726, %v732
  %v734 = vcombine.low %v709, %v717
  %v735 = vcombine.high %v709, %v717
  %v737 = vunpack.c.l.s4 1934713408
  %v738 = vunpack.c.0.s8 %v737
  %v739 = vlaneseq
  %v740 = vshrl.u32 %v739, 7
  %v741 = vsub.s32 %v738, %v740
  %v742 = vrot.slane %v734, %v741
  %v744 = vunpack.c.l.s4 1934713408
  %v745 = vunpack.c.0.s8 %v744
  %v746 = vlaneseq
  %v747 = vshrl.u32 %v746, 7
  %v748 = vsub.s32 %v745, %v747
  %v749 = vrot.slane %v735, %v748
  %v750 = vcombine.low %v725, %v733
  %v751 = vcombine.high %v725, %v733
  %v753 = vunpack.c.l.s4 1934713408
  %v754 = vunpack.c.0.s8 %v753
  %v755 = vlaneseq
  %v756 = vshrl.u32 %v755, 7
  %v757 = vsub.s32 %v754, %v756
  %v758 = vrot.slane %v750, %v757
  %v760 = vunpack.c.l.s4 1934713408
  %v761 = vunpack.c.0.s8 %v760
  %v762 = vlaneseq
  %v763 = vshrl.u32 %v762, 7
  %v764 = vsub.s32 %v761, %v763
  %v765 = vrot.slane %v751, %v764
  %v766 = vcombine.low %v742, %v758
  %v767 = vcombine.high %v742, %v758
  %v768 = vcombine.low %v749, %v765
  %v769 = vcombine.high %v749, %v765
  %v770 = vcombine.low %v674, %v681
  %v772 = vunpack.c.l.s4 1983009808
  %v773 = vunpack.c.0.s8 %v772
  %v774 = vlaneseq
  %v775 = vshrl.u32 %v774, 7
  %v776 = vsub.s32 %v773, %v775
  %v777 = vrot.slane %v770, %v776
  %v778 = vcombine.low %v698, %v699
  %v780 = vunpack.c.l.s4 1983009808
  %v781 = vunpack.c.0.s8 %v780
  %v782 = vlaneseq
  %v783 = vshrl.u32 %v782, 7
  %v784 = vsub.s32 %v781, %v783
  %v785 = vrot.slane %v778, %v784
  %v786 = vcombine.low %v690, %v697
  %v788 = vunpack.c.l.s4 1983009808
  %v789 = vunpack.c.0.s8 %v788
  %v790 = vlaneseq
  %v791 = vshrl.u32 %v790, 7
  %v792 = vsub.s32 %v789, %v791
  %v793 = vrot.slane %v786, %v792
  %v794 = vcombine.low %v700, %v701
  %v796 = vunpack.c.l.s4 1983009808
  %v797 = vunpack.c.0.s8 %v796
  %v798 = vlaneseq
  %v799 = vshrl.u32 %v798, 7
  %v800 = vsub.s32 %v797, %v799
  %v801 = vrot.slane %v794, %v800
  %v802 = vcombine.low %v777, %v785
  %v803 = vcombine.high %v777, %v785
  %v805 = vunpack.c.l.s4 1934713408
  %v806 = vunpack.c.0.s8 %v805
  %v807 = vlaneseq
  %v808 = vshrl.u32 %v807, 7
  %v809 = vsub.s32 %v806, %v808
  %v810 = vrot.slane %v802, %v809
  %v812 = vunpack.c.l.s4 1934713408
  %v813 = vunpack.c.0.s8 %v812
  %v814 = vlaneseq
  %v815 = vshrl.u32 %v814, 7
  %v816 = vsub.s32 %v813, %v815
  %v817 = vrot.slane %v803, %v816
  %v818 = vcombine.low %v793, %v801
  %v819 = vcombine.high %v793, %v801
  %v821 = vunpack.c.l.s4 1934713408
  %v822 = vunpack.c.0.s8 %v821
  %v823 = vlaneseq
  %v824 = vshrl.u32 %v823, 7
  %v825 = vsub.s32 %v822, %v824
  %v826 = vrot.slane %v818, %v825
  %v828 = vunpack.c.l.s4 1934713408
  %v829 = vunpack.c.0.s8 %v828
  %v830 = vlaneseq
  %v831 = vshrl.u32 %v830, 7
  %v832 = vsub.s32 %v829, %v831
  %v833 = vrot.slane %v819, %v832
  %v834 = vcombine.low %v810, %v826
  %v835 = vcombine.high %v810, %v826
  %v836 = vcombine.low %v817, %v833
  %v837 = vcombine.high %v817, %v833
  %840 = vrot.lane.b32.xlu0 %v242, 120
  %v841 = vpop.permute.xlu0 %840
  %842 = vrot.lane.b32.xlu0 %v247, 120
  %v843 = vpop.permute.xlu0 %842
  %846 = vrot.lane.b32.xlu0 %v242, 112
  %v847 = vpop.permute.xlu0 %846
  %848 = vrot.lane.b32.xlu0 %v247, 112
  %v849 = vpop.permute.xlu0 %848
  %852 = vrot.lane.b32.xlu0 %v242, 104
  %v853 = vpop.permute.xlu0 %852
  %854 = vrot.lane.b32.xlu0 %v247, 104
  %v855 = vpop.permute.xlu0 %854
  %v858 = vcombine.low %v242, %v847
  %v859 = vcombine.high %v242, %v847
  %v861 = vunpack.c.l.s4 1983009808
  %v862 = vunpack.c.0.s8 %v861
  %v863 = vlaneseq
  %v864 = vshrl.u32 %v863, 7
  %v865 = vsub.s32 %v862, %v864
  %v866 = vrot.slane %v858, %v865
  %v868 = vunpack.c.l.s4 1983009808
  %v869 = vunpack.c.0.s8 %v868
  %v870 = vlaneseq
  %v871 = vshrl.u32 %v870, 7
  %v872 = vsub.s32 %v869, %v871
  %v873 = vrot.slane %v859, %v872
  %v874 = vcombine.low %v841, %v853
  %v875 = vcombine.high %v841, %v853
  %v877 = vunpack.c.l.s4 1983009808
  %v878 = vunpack.c.0.s8 %v877
  %v879 = vlaneseq
  %v880 = vshrl.u32 %v879, 7
  %v881 = vsub.s32 %v878, %v880
  %v882 = vrot.slane %v874, %v881
  %v884 = vunpack.c.l.s4 1983009808
  %v885 = vunpack.c.0.s8 %v884
  %v886 = vlaneseq
  %v887 = vshrl.u32 %v886, 7
  %v888 = vsub.s32 %v885, %v887
  %v889 = vrot.slane %v875, %v888
  %v890 = vcombine.low %v866, %v882
  %v891 = vcombine.high %v866, %v882
  %v893 = vunpack.c.l.s4 1934713408
  %v894 = vunpack.c.0.s8 %v893
  %v895 = vlaneseq
  %v896 = vshrl.u32 %v895, 7
  %v897 = vsub.s32 %v894, %v896
  %v898 = vrot.slane %v890, %v897
  %v900 = vunpack.c.l.s4 1934713408
  %v901 = vunpack.c.0.s8 %v900
  %v902 = vlaneseq
  %v903 = vshrl.u32 %v902, 7
  %v904 = vsub.s32 %v901, %v903
  %v905 = vrot.slane %v891, %v904
  %v906 = vcombine.low %v873, %v889
  %v907 = vcombine.high %v873, %v889
  %v909 = vunpack.c.l.s4 1934713408
  %v910 = vunpack.c.0.s8 %v909
  %v911 = vlaneseq
  %v912 = vshrl.u32 %v911, 7
  %v913 = vsub.s32 %v910, %v912
  %v914 = vrot.slane %v906, %v913
  %v916 = vunpack.c.l.s4 1934713408
  %v917 = vunpack.c.0.s8 %v916
  %v918 = vlaneseq
  %v919 = vshrl.u32 %v918, 7
  %v920 = vsub.s32 %v917, %v919
  %v921 = vrot.slane %v907, %v920
  %v922 = vcombine.high %v898, 0.0
  %v923 = vcombine.high %v905, 0.0
  %v924 = vcombine.high %v914, 0.0
  %v925 = vcombine.high %v921, 0.0
  %v926 = vcombine.low %v247, %v849
  %v927 = vcombine.high %v247, %v849
  %v929 = vunpack.c.l.s4 1983009808
  %v930 = vunpack.c.0.s8 %v929
  %v931 = vlaneseq
  %v932 = vshrl.u32 %v931, 7
  %v933 = vsub.s32 %v930, %v932
  %v934 = vrot.slane %v926, %v933
  %v936 = vunpack.c.l.s4 1983009808
  %v937 = vunpack.c.0.s8 %v936
  %v938 = vlaneseq
  %v939 = vshrl.u32 %v938, 7
  %v940 = vsub.s32 %v937, %v939
  %v941 = vrot.slane %v927, %v940
  %v942 = vcombine.low %v843, %v855
  %v943 = vcombine.high %v843, %v855
  %v945 = vunpack.c.l.s4 1983009808
  %v946 = vunpack.c.0.s8 %v945
  %v947 = vlaneseq
  %v948 = vshrl.u32 %v947, 7
  %v949 = vsub.s32 %v946, %v948
  %v950 = vrot.slane %v942, %v949
  %v952 = vunpack.c.l.s4 1983009808
  %v953 = vunpack.c.0.s8 %v952
  %v954 = vlaneseq
  %v955 = vshrl.u32 %v954, 7
  %v956 = vsub.s32 %v953, %v955
  %v957 = vrot.slane %v943, %v956
  %v958 = vcombine.low %v934, %v950
  %v959 = vcombine.high %v934, %v950
  %v961 = vunpack.c.l.s4 1934713408
  %v962 = vunpack.c.0.s8 %v961
  %v963 = vlaneseq
  %v964 = vshrl.u32 %v963, 7
  %v965 = vsub.s32 %v962, %v964
  %v966 = vrot.slane %v958, %v965
  %v968 = vunpack.c.l.s4 1934713408
  %v969 = vunpack.c.0.s8 %v968
  %v970 = vlaneseq
  %v971 = vshrl.u32 %v970, 7
  %v972 = vsub.s32 %v969, %v971
  %v973 = vrot.slane %v959, %v972
  %v974 = vcombine.low %v941, %v957
  %v975 = vcombine.high %v941, %v957
  %v977 = vunpack.c.l.s4 1934713408
  %v978 = vunpack.c.0.s8 %v977
  %v979 = vlaneseq
  %v980 = vshrl.u32 %v979, 7
  %v981 = vsub.s32 %v978, %v980
  %v982 = vrot.slane %v974, %v981
  %v984 = vunpack.c.l.s4 1934713408
  %v985 = vunpack.c.0.s8 %v984
  %v986 = vlaneseq
  %v987 = vshrl.u32 %v986, 7
  %v988 = vsub.s32 %v985, %v987
  %v989 = vrot.slane %v975, %v988
  %v990 = vcombine.high %v966, 0.0
  %v991 = vcombine.high %v973, 0.0
  %v992 = vcombine.high %v982, 0.0
  %v993 = vcombine.high %v989, 0.0
  %v994 = vcombine.low %v898, %v905
  %v996 = vunpack.c.l.s4 1983009808
  %v997 = vunpack.c.0.s8 %v996
  %v998 = vlaneseq
  %v999 = vshrl.u32 %v998, 7
  %v1000 = vsub.s32 %v997, %v999
  %v1001 = vrot.slane %v994, %v1000
  %v1002 = vcombine.low %v922, %v923
  %v1004 = vunpack.c.l.s4 1983009808
  %v1005 = vunpack.c.0.s8 %v1004
  %v1006 = vlaneseq
  %v1007 = vshrl.u32 %v1006, 7
  %v1008 = vsub.s32 %v1005, %v1007
  %v1009 = vrot.slane %v1002, %v1008
  %v1010 = vcombine.low %v914, %v921
  %v1012 = vunpack.c.l.s4 1983009808
  %v1013 = vunpack.c.0.s8 %v1012
  %v1014 = vlaneseq
  %v1015 = vshrl.u32 %v1014, 7
  %v1016 = vsub.s32 %v1013, %v1015
  %v1017 = vrot.slane %v1010, %v1016
  %v1018 = vcombine.low %v924, %v925
  %v1020 = vunpack.c.l.s4 1983009808
  %v1021 = vunpack.c.0.s8 %v1020
  %v1022 = vlaneseq
  %v1023 = vshrl.u32 %v1022, 7
  %v1024 = vsub.s32 %v1021, %v1023
  %v1025 = vrot.slane %v1018, %v1024
  %v1026 = vcombine.low %v1001, %v1009
  %v1027 = vcombine.high %v1001, %v1009
  %v1029 = vunpack.c.l.s4 1934713408
  %v1030 = vunpack.c.0.s8 %v1029
  %v1031 = vlaneseq
  %v1032 = vshrl.u32 %v1031, 7
  %v1033 = vsub.s32 %v1030, %v1032
  %v1034 = vrot.slane %v1026, %v1033
  %v1036 = vunpack.c.l.s4 1934713408
  %v1037 = vunpack.c.0.s8 %v1036
  %v1038 = vlaneseq
  %v1039 = vshrl.u32 %v1038, 7
  %v1040 = vsub.s32 %v1037, %v1039
  %v1041 = vrot.slane %v1027, %v1040
  %v1042 = vcombine.low %v1017, %v1025
  %v1043 = vcombine.high %v1017, %v1025
  %v1045 = vunpack.c.l.s4 1934713408
  %v1046 = vunpack.c.0.s8 %v1045
  %v1047 = vlaneseq
  %v1048 = vshrl.u32 %v1047, 7
  %v1049 = vsub.s32 %v1046, %v1048
  %v1050 = vrot.slane %v1042, %v1049
  %v1052 = vunpack.c.l.s4 1934713408
  %v1053 = vunpack.c.0.s8 %v1052
  %v1054 = vlaneseq
  %v1055 = vshrl.u32 %v1054, 7
  %v1056 = vsub.s32 %v1053, %v1055
  %v1057 = vrot.slane %v1043, %v1056
  %v1058 = vcombine.low %v1034, %v1050
  %v1059 = vcombine.high %v1034, %v1050
  %v1060 = vcombine.low %v1041, %v1057
  %v1061 = vcombine.high %v1041, %v1057
  %v1062 = vcombine.low %v966, %v973
  %v1064 = vunpack.c.l.s4 1983009808
  %v1065 = vunpack.c.0.s8 %v1064
  %v1066 = vlaneseq
  %v1067 = vshrl.u32 %v1066, 7
  %v1068 = vsub.s32 %v1065, %v1067
  %v1069 = vrot.slane %v1062, %v1068
  %v1070 = vcombine.low %v990, %v991
  %v1072 = vunpack.c.l.s4 1983009808
  %v1073 = vunpack.c.0.s8 %v1072
  %v1074 = vlaneseq
  %v1075 = vshrl.u32 %v1074, 7
  %v1076 = vsub.s32 %v1073, %v1075
  %v1077 = vrot.slane %v1070, %v1076
  %v1078 = vcombine.low %v982, %v989
  %v1080 = vunpack.c.l.s4 1983009808
  %v1081 = vunpack.c.0.s8 %v1080
  %v1082 = vlaneseq
  %v1083 = vshrl.u32 %v1082, 7
  %v1084 = vsub.s32 %v1081, %v1083
  %v1085 = vrot.slane %v1078, %v1084
  %v1086 = vcombine.low %v992, %v993
  %v1088 = vunpack.c.l.s4 1983009808
  %v1089 = vunpack.c.0.s8 %v1088
  %v1090 = vlaneseq
  %v1091 = vshrl.u32 %v1090, 7
  %v1092 = vsub.s32 %v1089, %v1091
  %v1093 = vrot.slane %v1086, %v1092
  %v1094 = vcombine.low %v1069, %v1077
  %v1095 = vcombine.high %v1069, %v1077
  %v1097 = vunpack.c.l.s4 1934713408
  %v1098 = vunpack.c.0.s8 %v1097
  %v1099 = vlaneseq
  %v1100 = vshrl.u32 %v1099, 7
  %v1101 = vsub.s32 %v1098, %v1100
  %v1102 = vrot.slane %v1094, %v1101
  %v1104 = vunpack.c.l.s4 1934713408
  %v1105 = vunpack.c.0.s8 %v1104
  %v1106 = vlaneseq
  %v1107 = vshrl.u32 %v1106, 7
  %v1108 = vsub.s32 %v1105, %v1107
  %v1109 = vrot.slane %v1095, %v1108
  %v1110 = vcombine.low %v1085, %v1093
  %v1111 = vcombine.high %v1085, %v1093
  %v1113 = vunpack.c.l.s4 1934713408
  %v1114 = vunpack.c.0.s8 %v1113
  %v1115 = vlaneseq
  %v1116 = vshrl.u32 %v1115, 7
  %v1117 = vsub.s32 %v1114, %v1116
  %v1118 = vrot.slane %v1110, %v1117
  %v1120 = vunpack.c.l.s4 1934713408
  %v1121 = vunpack.c.0.s8 %v1120
  %v1122 = vlaneseq
  %v1123 = vshrl.u32 %v1122, 7
  %v1124 = vsub.s32 %v1121, %v1123
  %v1125 = vrot.slane %v1111, %v1124
  %v1126 = vcombine.low %v1102, %v1118
  %v1127 = vcombine.high %v1102, %v1118
  %v1128 = vcombine.low %v1109, %v1125
  %v1129 = vcombine.high %v1109, %v1125
  %vm1130 = vcmask 64512
  %v1132 = vsel %vm1130, %v470, 0
  %v1135 = vsel %vm1130, %v766, 0
  %1137 = vmatprep.subr.mxu0 0.0
  %1138 = vmatpush1.xpose.msra.mxu0 0.0
  %1139 = vmatprep.subr.mxu0 0.0
  %1140 = vmatpush1.xpose.msra.mxu0 0.0
  %1141 = vmatprep.subr.mxu0 0.0
  %1142 = vmatpush1.xpose.msra.mxu0 0.0
  %1143 = vmatprep.subr.mxu0 0.0
  %1144 = vmatpush1.xpose.msra.mxu0 0.0
  %1145 = vmatprep.subr.mxu0 0.0
  %1146 = vmatpush1.xpose.msra.mxu0 0.0
  %1147 = vmatprep.subr.mxu0 0.0
  %1148 = vmatpush1.xpose.msra.mxu0 0.0
  %1149 = vmatprep.subr.mxu0 0.0
  %1150 = vmatpush1.xpose.msra.mxu0 0.0
  %1151 = vmatprep.subr.mxu0 0.0
  %1152 = vmatpush1.xpose.msra.mxu0 0.0
  %1153 = vmatprep.subr.mxu0 0.0
  %1154 = vmatpush1.xpose.msra.mxu0 0.0
  %1155 = vmatprep.subr.mxu0 0.0
  %1156 = vmatpush1.xpose.msra.mxu0 0.0
  %1157 = vmatprep.subr.mxu0 0.0
  %1158 = vmatpush1.xpose.msra.mxu0 0.0
  %1159 = vmatprep.subr.mxu0 0.0
  %1160 = vmatpush1.xpose.msra.mxu0 0.0
  %1161 = vmatprep.subr.mxu0 0.0
  %1162 = vmatpush1.xpose.msra.mxu0 0.0
  %1163 = vmatprep.subr.mxu0 0.0
  %1164 = vmatpush1.xpose.msra.mxu0 0.0
  %1165 = vmatprep.subr.mxu0 0.0
  %1166 = vmatpush1.xpose.msra.mxu0 0.0
  %1167 = vmatprep.subr.mxu0 0.0
  %1168 = vmatpush1.xpose.msra.mxu0 %v1135
  %1169 = vmatprep.subr.mxu0 0.0
  %1170 = vmatpush2.xpose.msra.mxu0 0.0
  %1171 = vmatprep.subr.mxu0 0.0
  %1172 = vmatpush2.xpose.msra.mxu0 0.0
  %1173 = vmatprep.subr.mxu0 0.0
  %1174 = vmatpush2.xpose.msra.mxu0 0.0
  %1175 = vmatprep.subr.mxu0 0.0
  %1176 = vmatpush2.xpose.msra.mxu0 0.0
  %1177 = vmatprep.subr.mxu0 0.0
  %1178 = vmatpush2.xpose.msra.mxu0 0.0
  %1179 = vmatprep.subr.mxu0 0.0
  %1180 = vmatpush2.xpose.msra.mxu0 0.0
  %1181 = vmatprep.subr.mxu0 0.0
  %1182 = vmatpush2.xpose.msra.mxu0 0.0
  %1183 = vmatprep.subr.mxu0 0.0
  %1184 = vmatpush2.xpose.msra.mxu0 0.0
  %1185 = vmatprep.subr.mxu0 0.0
  %1186 = vmatpush2.xpose.msra.mxu0 0.0
  %1187 = vmatprep.subr.mxu0 0.0
  %1188 = vmatpush2.xpose.msra.mxu0 0.0
  %1189 = vmatprep.subr.mxu0 0.0
  %1190 = vmatpush2.xpose.msra.mxu0 0.0
  %1191 = vmatprep.subr.mxu0 0.0
  %1192 = vmatpush2.xpose.msra.mxu0 0.0
  %1193 = vmatprep.subr.mxu0 0.0
  %1194 = vmatpush2.xpose.msra.mxu0 0.0
  %1195 = vmatprep.subr.mxu0 0.0
  %1196 = vmatpush2.xpose.msra.mxu0 0.0
  %1197 = vmatprep.subr.mxu0 0.0
  %1198 = vmatpush2.xpose.msra.mxu0 0.0
  %1199 = vmatprep.subr.mxu0 0.0
  %1200 = vmatpush2.xpose.msra.mxu0 0.0
  %1201 = vmatprep.mubr.f32.mxu0 0.0
  %1202 = vmatmul.mubr.f32.gmra.mxu0 %v1132
  %v1203 = vpop.f32.mrf.mxu0
  %v1204 = vadd.f32 0.0, %v1203
  %v1205 = vpop.f32.mrf.mxu0
  %1206 = vdwg.mxu0
  %v1208 = vsel %vm1130, %v471, 0
  %v1211 = vsel %vm1130, %v767, 0
  %1213 = vmatprep.subr.mxu0 0.0
  %1214 = vmatpush1.xpose.msra.mxu0 0.0
  %1215 = vmatprep.subr.mxu0 0.0
  %1216 = vmatpush1.xpose.msra.mxu0 0.0
  %1217 = vmatprep.subr.mxu0 0.0
  %1218 = vmatpush1.xpose.msra.mxu0 0.0
  %1219 = vmatprep.subr.mxu0 0.0
  %1220 = vmatpush1.xpose.msra.mxu0 0.0
  %1221 = vmatprep.subr.mxu0 0.0
  %1222 = vmatpush1.xpose.msra.mxu0 0.0
  %1223 = vmatprep.subr.mxu0 0.0
  %1224 = vmatpush1.xpose.msra.mxu0 0.0
  %1225 = vmatprep.subr.mxu0 0.0
  %1226 = vmatpush1.xpose.msra.mxu0 0.0
  %1227 = vmatprep.subr.mxu0 0.0
  %1228 = vmatpush1.xpose.msra.mxu0 0.0
  %1229 = vmatprep.subr.mxu0 0.0
  %1230 = vmatpush1.xpose.msra.mxu0 0.0
  %1231 = vmatprep.subr.mxu0 0.0
  %1232 = vmatpush1.xpose.msra.mxu0 0.0
  %1233 = vmatprep.subr.mxu0 0.0
  %1234 = vmatpush1.xpose.msra.mxu0 0.0
  %1235 = vmatprep.subr.mxu0 0.0
  %1236 = vmatpush1.xpose.msra.mxu0 0.0
  %1237 = vmatprep.subr.mxu0 0.0
  %1238 = vmatpush1.xpose.msra.mxu0 0.0
  %1239 = vmatprep.subr.mxu0 0.0
  %1240 = vmatpush1.xpose.msra.mxu0 0.0
  %1241 = vmatprep.subr.mxu0 0.0
  %1242 = vmatpush1.xpose.msra.mxu0 0.0
  %1243 = vmatprep.subr.mxu0 0.0
  %1244 = vmatpush1.xpose.msra.mxu0 %v1211
  %1245 = vmatprep.subr.mxu0 0.0
  %1246 = vmatpush2.xpose.msra.mxu0 0.0
  %1247 = vmatprep.subr.mxu0 0.0
  %1248 = vmatpush2.xpose.msra.mxu0 0.0
  %1249 = vmatprep.subr.mxu0 0.0
  %1250 = vmatpush2.xpose.msra.mxu0 0.0
  %1251 = vmatprep.subr.mxu0 0.0
  %1252 = vmatpush2.xpose.msra.mxu0 0.0
  %1253 = vmatprep.subr.mxu0 0.0
  %1254 = vmatpush2.xpose.msra.mxu0 0.0
  %1255 = vmatprep.subr.mxu0 0.0
  %1256 = vmatpush2.xpose.msra.mxu0 0.0
  %1257 = vmatprep.subr.mxu0 0.0
  %1258 = vmatpush2.xpose.msra.mxu0 0.0
  %1259 = vmatprep.subr.mxu0 0.0
  %1260 = vmatpush2.xpose.msra.mxu0 0.0
  %1261 = vmatprep.subr.mxu0 0.0
  %1262 = vmatpush2.xpose.msra.mxu0 0.0
  %1263 = vmatprep.subr.mxu0 0.0
  %1264 = vmatpush2.xpose.msra.mxu0 0.0
  %1265 = vmatprep.subr.mxu0 0.0
  %1266 = vmatpush2.xpose.msra.mxu0 0.0
  %1267 = vmatprep.subr.mxu0 0.0
  %1268 = vmatpush2.xpose.msra.mxu0 0.0
  %1269 = vmatprep.subr.mxu0 0.0
  %1270 = vmatpush2.xpose.msra.mxu0 0.0
  %1271 = vmatprep.subr.mxu0 0.0
  %1272 = vmatpush2.xpose.msra.mxu0 0.0
  %1273 = vmatprep.subr.mxu0 0.0
  %1274 = vmatpush2.xpose.msra.mxu0 0.0
  %1275 = vmatprep.subr.mxu0 0.0
  %1276 = vmatpush2.xpose.msra.mxu0 0.0
  %1277 = vmatprep.mubr.f32.mxu0 0.0
  %1278 = vmatmul.mubr.f32.gmra.mxu0 %v1208
  %v1279 = vpop.f32.mrf.mxu0
  %v1280 = vadd.f32 0.0, %v1279
  %v1281 = vpop.f32.mrf.mxu0
  %1282 = vdwg.mxu0
  %v1284 = vsel %vm1130, %v472, 0
  %v1287 = vsel %vm1130, %v768, 0
  %1289 = vmatprep.subr.mxu0 0.0
  %1290 = vmatpush1.xpose.msra.mxu0 0.0
  %1291 = vmatprep.subr.mxu0 0.0
  %1292 = vmatpush1.xpose.msra.mxu0 0.0
  %1293 = vmatprep.subr.mxu0 0.0
  %1294 = vmatpush1.xpose.msra.mxu0 0.0
  %1295 = vmatprep.subr.mxu0 0.0
  %1296 = vmatpush1.xpose.msra.mxu0 0.0
  %1297 = vmatprep.subr.mxu0 0.0
  %1298 = vmatpush1.xpose.msra.mxu0 0.0
  %1299 = vmatprep.subr.mxu0 0.0
  %1300 = vmatpush1.xpose.msra.mxu0 0.0
  %1301 = vmatprep.subr.mxu0 0.0
  %1302 = vmatpush1.xpose.msra.mxu0 0.0
  %1303 = vmatprep.subr.mxu0 0.0
  %1304 = vmatpush1.xpose.msra.mxu0 0.0
  %1305 = vmatprep.subr.mxu0 0.0
  %1306 = vmatpush1.xpose.msra.mxu0 0.0
  %1307 = vmatprep.subr.mxu0 0.0
  %1308 = vmatpush1.xpose.msra.mxu0 0.0
  %1309 = vmatprep.subr.mxu0 0.0
  %1310 = vmatpush1.xpose.msra.mxu0 0.0
  %1311 = vmatprep.subr.mxu0 0.0
  %1312 = vmatpush1.xpose.msra.mxu0 0.0
  %1313 = vmatprep.subr.mxu0 0.0
  %1314 = vmatpush1.xpose.msra.mxu0 0.0
  %1315 = vmatprep.subr.mxu0 0.0
  %1316 = vmatpush1.xpose.msra.mxu0 0.0
  %1317 = vmatprep.subr.mxu0 0.0
  %1318 = vmatpush1.xpose.msra.mxu0 0.0
  %1319 = vmatprep.subr.mxu0 0.0
  %1320 = vmatpush1.xpose.msra.mxu0 %v1287
  %1321 = vmatprep.subr.mxu0 0.0
  %1322 = vmatpush2.xpose.msra.mxu0 0.0
  %1323 = vmatprep.subr.mxu0 0.0
  %1324 = vmatpush2.xpose.msra.mxu0 0.0
  %1325 = vmatprep.subr.mxu0 0.0
  %1326 = vmatpush2.xpose.msra.mxu0 0.0
  %1327 = vmatprep.subr.mxu0 0.0
  %1328 = vmatpush2.xpose.msra.mxu0 0.0
  %1329 = vmatprep.subr.mxu0 0.0
  %1330 = vmatpush2.xpose.msra.mxu0 0.0
  %1331 = vmatprep.subr.mxu0 0.0
  %1332 = vmatpush2.xpose.msra.mxu0 0.0
  %1333 = vmatprep.subr.mxu0 0.0
  %1334 = vmatpush2.xpose.msra.mxu0 0.0
  %1335 = vmatprep.subr.mxu0 0.0
  %1336 = vmatpush2.xpose.msra.mxu0 0.0
  %1337 = vmatprep.subr.mxu0 0.0
  %1338 = vmatpush2.xpose.msra.mxu0 0.0
  %1339 = vmatprep.subr.mxu0 0.0
  %1340 = vmatpush2.xpose.msra.mxu0 0.0
  %1341 = vmatprep.subr.mxu0 0.0
  %1342 = vmatpush2.xpose.msra.mxu0 0.0
  %1343 = vmatprep.subr.mxu0 0.0
  %1344 = vmatpush2.xpose.msra.mxu0 0.0
  %1345 = vmatprep.subr.mxu0 0.0
  %1346 = vmatpush2.xpose.msra.mxu0 0.0
  %1347 = vmatprep.subr.mxu0 0.0
  %1348 = vmatpush2.xpose.msra.mxu0 0.0
  %1349 = vmatprep.subr.mxu0 0.0
  %1350 = vmatpush2.xpose.msra.mxu0 0.0
  %1351 = vmatprep.subr.mxu0 0.0
  %1352 = vmatpush2.xpose.msra.mxu0 0.0
  %1353 = vmatprep.mubr.f32.mxu0 0.0
  %1354 = vmatmul.mubr.f32.gmra.mxu0 %v1284
  %v1355 = vpop.f32.mrf.mxu0
  %v1356 = vadd.f32 0.0, %v1355
  %v1357 = vpop.f32.mrf.mxu0
  %1358 = vdwg.mxu0
  %v1360 = vsel %vm1130, %v473, 0
  %v1363 = vsel %vm1130, %v769, 0
  %1365 = vmatprep.subr.mxu0 0.0
  %1366 = vmatpush1.xpose.msra.mxu0 0.0
  %1367 = vmatprep.subr.mxu0 0.0
  %1368 = vmatpush1.xpose.msra.mxu0 0.0
  %1369 = vmatprep.subr.mxu0 0.0
  %1370 = vmatpush1.xpose.msra.mxu0 0.0
  %1371 = vmatprep.subr.mxu0 0.0
  %1372 = vmatpush1.xpose.msra.mxu0 0.0
  %1373 = vmatprep.subr.mxu0 0.0
  %1374 = vmatpush1.xpose.msra.mxu0 0.0
  %1375 = vmatprep.subr.mxu0 0.0
  %1376 = vmatpush1.xpose.msra.mxu0 0.0
  %1377 = vmatprep.subr.mxu0 0.0
  %1378 = vmatpush1.xpose.msra.mxu0 0.0
  %1379 = vmatprep.subr.mxu0 0.0
  %1380 = vmatpush1.xpose.msra.mxu0 0.0
  %1381 = vmatprep.subr.mxu0 0.0
  %1382 = vmatpush1.xpose.msra.mxu0 0.0
  %1383 = vmatprep.subr.mxu0 0.0
  %1384 = vmatpush1.xpose.msra.mxu0 0.0
  %1385 = vmatprep.subr.mxu0 0.0
  %1386 = vmatpush1.xpose.msra.mxu0 0.0
  %1387 = vmatprep.subr.mxu0 0.0
  %1388 = vmatpush1.xpose.msra.mxu0 0.0
  %1389 = vmatprep.subr.mxu0 0.0
  %1390 = vmatpush1.xpose.msra.mxu0 0.0
  %1391 = vmatprep.subr.mxu0 0.0
  %1392 = vmatpush1.xpose.msra.mxu0 0.0
  %1393 = vmatprep.subr.mxu0 0.0
  %1394 = vmatpush1.xpose.msra.mxu0 0.0
  %1395 = vmatprep.subr.mxu0 0.0
  %1396 = vmatpush1.xpose.msra.mxu0 %v1363
  %1397 = vmatprep.subr.mxu0 0.0
  %1398 = vmatpush2.xpose.msra.mxu0 0.0
  %1399 = vmatprep.subr.mxu0 0.0
  %1400 = vmatpush2.xpose.msra.mxu0 0.0
  %1401 = vmatprep.subr.mxu0 0.0
  %1402 = vmatpush2.xpose.msra.mxu0 0.0
  %1403 = vmatprep.subr.mxu0 0.0
  %1404 = vmatpush2.xpose.msra.mxu0 0.0
  %1405 = vmatprep.subr.mxu0 0.0
  %1406 = vmatpush2.xpose.msra.mxu0 0.0
  %1407 = vmatprep.subr.mxu0 0.0
  %1408 = vmatpush2.xpose.msra.mxu0 0.0
  %1409 = vmatprep.subr.mxu0 0.0
  %1410 = vmatpush2.xpose.msra.mxu0 0.0
  %1411 = vmatprep.subr.mxu0 0.0
  %1412 = vmatpush2.xpose.msra.mxu0 0.0
  %1413 = vmatprep.subr.mxu0 0.0
  %1414 = vmatpush2.xpose.msra.mxu0 0.0
  %1415 = vmatprep.subr.mxu0 0.0
  %1416 = vmatpush2.xpose.msra.mxu0 0.0
  %1417 = vmatprep.subr.mxu0 0.0
  %1418 = vmatpush2.xpose.msra.mxu0 0.0
  %1419 = vmatprep.subr.mxu0 0.0
  %1420 = vmatpush2.xpose.msra.mxu0 0.0
  %1421 = vmatprep.subr.mxu0 0.0
  %1422 = vmatpush2.xpose.msra.mxu0 0.0
  %1423 = vmatprep.subr.mxu0 0.0
  %1424 = vmatpush2.xpose.msra.mxu0 0.0
  %1425 = vmatprep.subr.mxu0 0.0
  %1426 = vmatpush2.xpose.msra.mxu0 0.0
  %1427 = vmatprep.subr.mxu0 0.0
  %1428 = vmatpush2.xpose.msra.mxu0 0.0
  %1429 = vmatprep.mubr.f32.mxu0 0.0
  %1430 = vmatmul.mubr.f32.gmra.mxu0 %v1360
  %v1431 = vpop.f32.mrf.mxu0
  %v1432 = vadd.f32 0.0, %v1431
  %v1433 = vpop.f32.mrf.mxu0
  %1434 = vdwg.mxu0
  %v1436 = vsel %vm1130, %v538, 0
  %v1439 = vsel %vm1130, %v834, 0
  %1441 = vmatprep.subr.mxu0 0.0
  %1442 = vmatpush1.xpose.msra.mxu0 0.0
  %1443 = vmatprep.subr.mxu0 0.0
  %1444 = vmatpush1.xpose.msra.mxu0 0.0
  %1445 = vmatprep.subr.mxu0 0.0
  %1446 = vmatpush1.xpose.msra.mxu0 0.0
  %1447 = vmatprep.subr.mxu0 0.0
  %1448 = vmatpush1.xpose.msra.mxu0 0.0
  %1449 = vmatprep.subr.mxu0 0.0
  %1450 = vmatpush1.xpose.msra.mxu0 0.0
  %1451 = vmatprep.subr.mxu0 0.0
  %1452 = vmatpush1.xpose.msra.mxu0 0.0
  %1453 = vmatprep.subr.mxu0 0.0
  %1454 = vmatpush1.xpose.msra.mxu0 0.0
  %1455 = vmatprep.subr.mxu0 0.0
  %1456 = vmatpush1.xpose.msra.mxu0 0.0
  %1457 = vmatprep.subr.mxu0 0.0
  %1458 = vmatpush1.xpose.msra.mxu0 0.0
  %1459 = vmatprep.subr.mxu0 0.0
  %1460 = vmatpush1.xpose.msra.mxu0 0.0
  %1461 = vmatprep.subr.mxu0 0.0
  %1462 = vmatpush1.xpose.msra.mxu0 0.0
  %1463 = vmatprep.subr.mxu0 0.0
  %1464 = vmatpush1.xpose.msra.mxu0 0.0
  %1465 = vmatprep.subr.mxu0 0.0
  %1466 = vmatpush1.xpose.msra.mxu0 0.0
  %1467 = vmatprep.subr.mxu0 0.0
  %1468 = vmatpush1.xpose.msra.mxu0 0.0
  %1469 = vmatprep.subr.mxu0 0.0
  %1470 = vmatpush1.xpose.msra.mxu0 0.0
  %1471 = vmatprep.subr.mxu0 0.0
  %1472 = vmatpush1.xpose.msra.mxu0 %v1439
  %1473 = vmatprep.subr.mxu0 0.0
  %1474 = vmatpush2.xpose.msra.mxu0 0.0
  %1475 = vmatprep.subr.mxu0 0.0
  %1476 = vmatpush2.xpose.msra.mxu0 0.0
  %1477 = vmatprep.subr.mxu0 0.0
  %1478 = vmatpush2.xpose.msra.mxu0 0.0
  %1479 = vmatprep.subr.mxu0 0.0
  %1480 = vmatpush2.xpose.msra.mxu0 0.0
  %1481 = vmatprep.subr.mxu0 0.0
  %1482 = vmatpush2.xpose.msra.mxu0 0.0
  %1483 = vmatprep.subr.mxu0 0.0
  %1484 = vmatpush2.xpose.msra.mxu0 0.0
  %1485 = vmatprep.subr.mxu0 0.0
  %1486 = vmatpush2.xpose.msra.mxu0 0.0
  %1487 = vmatprep.subr.mxu0 0.0
  %1488 = vmatpush2.xpose.msra.mxu0 0.0
  %1489 = vmatprep.subr.mxu0 0.0
  %1490 = vmatpush2.xpose.msra.mxu0 0.0
  %1491 = vmatprep.subr.mxu0 0.0
  %1492 = vmatpush2.xpose.msra.mxu0 0.0
  %1493 = vmatprep.subr.mxu0 0.0
  %1494 = vmatpush2.xpose.msra.mxu0 0.0
  %1495 = vmatprep.subr.mxu0 0.0
  %1496 = vmatpush2.xpose.msra.mxu0 0.0
  %1497 = vmatprep.subr.mxu0 0.0
  %1498 = vmatpush2.xpose.msra.mxu0 0.0
  %1499 = vmatprep.subr.mxu0 0.0
  %1500 = vmatpush2.xpose.msra.mxu0 0.0
  %1501 = vmatprep.subr.mxu0 0.0
  %1502 = vmatpush2.xpose.msra.mxu0 0.0
  %1503 = vmatprep.subr.mxu0 0.0
  %1504 = vmatpush2.xpose.msra.mxu0 0.0
  %1505 = vmatprep.mubr.f32.mxu0 0.0
  %1506 = vmatmul.mubr.f32.gmra.mxu0 %v1436
  %v1507 = vpop.f32.mrf.mxu0
  %v1508 = vadd.f32 0.0, %v1507
  %v1509 = vpop.f32.mrf.mxu0
  %1510 = vdwg.mxu0
  %v1512 = vsel %vm1130, %v539, 0
  %v1515 = vsel %vm1130, %v835, 0
  %1517 = vmatprep.subr.mxu0 0.0
  %1518 = vmatpush1.xpose.msra.mxu0 0.0
  %1519 = vmatprep.subr.mxu0 0.0
  %1520 = vmatpush1.xpose.msra.mxu0 0.0
  %1521 = vmatprep.subr.mxu0 0.0
  %1522 = vmatpush1.xpose.msra.mxu0 0.0
  %1523 = vmatprep.subr.mxu0 0.0
  %1524 = vmatpush1.xpose.msra.mxu0 0.0
  %1525 = vmatprep.subr.mxu0 0.0
  %1526 = vmatpush1.xpose.msra.mxu0 0.0
  %1527 = vmatprep.subr.mxu0 0.0
  %1528 = vmatpush1.xpose.msra.mxu0 0.0
  %1529 = vmatprep.subr.mxu0 0.0
  %1530 = vmatpush1.xpose.msra.mxu0 0.0
  %1531 = vmatprep.subr.mxu0 0.0
  %1532 = vmatpush1.xpose.msra.mxu0 0.0
  %1533 = vmatprep.subr.mxu0 0.0
  %1534 = vmatpush1.xpose.msra.mxu0 0.0
  %1535 = vmatprep.subr.mxu0 0.0
  %1536 = vmatpush1.xpose.msra.mxu0 0.0
  %1537 = vmatprep.subr.mxu0 0.0
  %1538 = vmatpush1.xpose.msra.mxu0 0.0
  %1539 = vmatprep.subr.mxu0 0.0
  %1540 = vmatpush1.xpose.msra.mxu0 0.0
  %1541 = vmatprep.subr.mxu0 0.0
  %1542 = vmatpush1.xpose.msra.mxu0 0.0
  %1543 = vmatprep.subr.mxu0 0.0
  %1544 = vmatpush1.xpose.msra.mxu0 0.0
  %1545 = vmatprep.subr.mxu0 0.0
  %1546 = vmatpush1.xpose.msra.mxu0 0.0
  %1547 = vmatprep.subr.mxu0 0.0
  %1548 = vmatpush1.xpose.msra.mxu0 %v1515
  %1549 = vmatprep.subr.mxu0 0.0
  %1550 = vmatpush2.xpose.msra.mxu0 0.0
  %1551 = vmatprep.subr.mxu0 0.0
  %1552 = vmatpush2.xpose.msra.mxu0 0.0
  %1553 = vmatprep.subr.mxu0 0.0
  %1554 = vmatpush2.xpose.msra.mxu0 0.0
  %1555 = vmatprep.subr.mxu0 0.0
  %1556 = vmatpush2.xpose.msra.mxu0 0.0
  %1557 = vmatprep.subr.mxu0 0.0
  %1558 = vmatpush2.xpose.msra.mxu0 0.0
  %1559 = vmatprep.subr.mxu0 0.0
  %1560 = vmatpush2.xpose.msra.mxu0 0.0
  %1561 = vmatprep.subr.mxu0 0.0
  %1562 = vmatpush2.xpose.msra.mxu0 0.0
  %1563 = vmatprep.subr.mxu0 0.0
  %1564 = vmatpush2.xpose.msra.mxu0 0.0
  %1565 = vmatprep.subr.mxu0 0.0
  %1566 = vmatpush2.xpose.msra.mxu0 0.0
  %1567 = vmatprep.subr.mxu0 0.0
  %1568 = vmatpush2.xpose.msra.mxu0 0.0
  %1569 = vmatprep.subr.mxu0 0.0
  %1570 = vmatpush2.xpose.msra.mxu0 0.0
  %1571 = vmatprep.subr.mxu0 0.0
  %1572 = vmatpush2.xpose.msra.mxu0 0.0
  %1573 = vmatprep.subr.mxu0 0.0
  %1574 = vmatpush2.xpose.msra.mxu0 0.0
  %1575 = vmatprep.subr.mxu0 0.0
  %1576 = vmatpush2.xpose.msra.mxu0 0.0
  %1577 = vmatprep.subr.mxu0 0.0
  %1578 = vmatpush2.xpose.msra.mxu0 0.0
  %1579 = vmatprep.subr.mxu0 0.0
  %1580 = vmatpush2.xpose.msra.mxu0 0.0
  %1581 = vmatprep.mubr.f32.mxu0 0.0
  %1582 = vmatmul.mubr.f32.gmra.mxu0 %v1512
  %v1583 = vpop.f32.mrf.mxu0
  %v1584 = vadd.f32 0.0, %v1583
  %v1585 = vpop.f32.mrf.mxu0
  %1586 = vdwg.mxu0
  %v1588 = vsel %vm1130, %v540, 0
  %v1591 = vsel %vm1130, %v836, 0
  %1593 = vmatprep.subr.mxu0 0.0
  %1594 = vmatpush1.xpose.msra.mxu0 0.0
  %1595 = vmatprep.subr.mxu0 0.0
  %1596 = vmatpush1.xpose.msra.mxu0 0.0
  %1597 = vmatprep.subr.mxu0 0.0
  %1598 = vmatpush1.xpose.msra.mxu0 0.0
  %1599 = vmatprep.subr.mxu0 0.0
  %1600 = vmatpush1.xpose.msra.mxu0 0.0
  %1601 = vmatprep.subr.mxu0 0.0
  %1602 = vmatpush1.xpose.msra.mxu0 0.0
  %1603 = vmatprep.subr.mxu0 0.0
  %1604 = vmatpush1.xpose.msra.mxu0 0.0
  %1605 = vmatprep.subr.mxu0 0.0
  %1606 = vmatpush1.xpose.msra.mxu0 0.0
  %1607 = vmatprep.subr.mxu0 0.0
  %1608 = vmatpush1.xpose.msra.mxu0 0.0
  %1609 = vmatprep.subr.mxu0 0.0
  %1610 = vmatpush1.xpose.msra.mxu0 0.0
  %1611 = vmatprep.subr.mxu0 0.0
  %1612 = vmatpush1.xpose.msra.mxu0 0.0
  %1613 = vmatprep.subr.mxu0 0.0
  %1614 = vmatpush1.xpose.msra.mxu0 0.0
  %1615 = vmatprep.subr.mxu0 0.0
  %1616 = vmatpush1.xpose.msra.mxu0 0.0
  %1617 = vmatprep.subr.mxu0 0.0
  %1618 = vmatpush1.xpose.msra.mxu0 0.0
  %1619 = vmatprep.subr.mxu0 0.0
  %1620 = vmatpush1.xpose.msra.mxu0 0.0
  %1621 = vmatprep.subr.mxu0 0.0
  %1622 = vmatpush1.xpose.msra.mxu0 0.0
  %1623 = vmatprep.subr.mxu0 0.0
  %1624 = vmatpush1.xpose.msra.mxu0 %v1591
  %1625 = vmatprep.subr.mxu0 0.0
  %1626 = vmatpush2.xpose.msra.mxu0 0.0
  %1627 = vmatprep.subr.mxu0 0.0
  %1628 = vmatpush2.xpose.msra.mxu0 0.0
  %1629 = vmatprep.subr.mxu0 0.0
  %1630 = vmatpush2.xpose.msra.mxu0 0.0
  %1631 = vmatprep.subr.mxu0 0.0
  %1632 = vmatpush2.xpose.msra.mxu0 0.0
  %1633 = vmatprep.subr.mxu0 0.0
  %1634 = vmatpush2.xpose.msra.mxu0 0.0
  %1635 = vmatprep.subr.mxu0 0.0
  %1636 = vmatpush2.xpose.msra.mxu0 0.0
  %1637 = vmatprep.subr.mxu0 0.0
  %1638 = vmatpush2.xpose.msra.mxu0 0.0
  %1639 = vmatprep.subr.mxu0 0.0
  %1640 = vmatpush2.xpose.msra.mxu0 0.0
  %1641 = vmatprep.subr.mxu0 0.0
  %1642 = vmatpush2.xpose.msra.mxu0 0.0
  %1643 = vmatprep.subr.mxu0 0.0
  %1644 = vmatpush2.xpose.msra.mxu0 0.0
  %1645 = vmatprep.subr.mxu0 0.0
  %1646 = vmatpush2.xpose.msra.mxu0 0.0
  %1647 = vmatprep.subr.mxu0 0.0
  %1648 = vmatpush2.xpose.msra.mxu0 0.0
  %1649 = vmatprep.subr.mxu0 0.0
  %1650 = vmatpush2.xpose.msra.mxu0 0.0
  %1651 = vmatprep.subr.mxu0 0.0
  %1652 = vmatpush2.xpose.msra.mxu0 0.0
  %1653 = vmatprep.subr.mxu0 0.0
  %1654 = vmatpush2.xpose.msra.mxu0 0.0
  %1655 = vmatprep.subr.mxu0 0.0
  %1656 = vmatpush2.xpose.msra.mxu0 0.0
  %1657 = vmatprep.mubr.f32.mxu0 0.0
  %1658 = vmatmul.mubr.f32.gmra.mxu0 %v1588
  %v1659 = vpop.f32.mrf.mxu0
  %v1660 = vadd.f32 0.0, %v1659
  %v1661 = vpop.f32.mrf.mxu0
  %1662 = vdwg.mxu0
  %v1664 = vsel %vm1130, %v541, 0
  %v1667 = vsel %vm1130, %v837, 0
  %1669 = vmatprep.subr.mxu0 0.0
  %1670 = vmatpush1.xpose.msra.mxu0 0.0
  %1671 = vmatprep.subr.mxu0 0.0
  %1672 = vmatpush1.xpose.msra.mxu0 0.0
  %1673 = vmatprep.subr.mxu0 0.0
  %1674 = vmatpush1.xpose.msra.mxu0 0.0
  %1675 = vmatprep.subr.mxu0 0.0
  %1676 = vmatpush1.xpose.msra.mxu0 0.0
  %1677 = vmatprep.subr.mxu0 0.0
  %1678 = vmatpush1.xpose.msra.mxu0 0.0
  %1679 = vmatprep.subr.mxu0 0.0
  %1680 = vmatpush1.xpose.msra.mxu0 0.0
  %1681 = vmatprep.subr.mxu0 0.0
  %1682 = vmatpush1.xpose.msra.mxu0 0.0
  %1683 = vmatprep.subr.mxu0 0.0
  %1684 = vmatpush1.xpose.msra.mxu0 0.0
  %1685 = vmatprep.subr.mxu0 0.0
  %1686 = vmatpush1.xpose.msra.mxu0 0.0
  %1687 = vmatprep.subr.mxu0 0.0
  %1688 = vmatpush1.xpose.msra.mxu0 0.0
  %1689 = vmatprep.subr.mxu0 0.0
  %1690 = vmatpush1.xpose.msra.mxu0 0.0
  %1691 = vmatprep.subr.mxu0 0.0
  %1692 = vmatpush1.xpose.msra.mxu0 0.0
  %1693 = vmatprep.subr.mxu0 0.0
  %1694 = vmatpush1.xpose.msra.mxu0 0.0
  %1695 = vmatprep.subr.mxu0 0.0
  %1696 = vmatpush1.xpose.msra.mxu0 0.0
  %1697 = vmatprep.subr.mxu0 0.0
  %1698 = vmatpush1.xpose.msra.mxu0 0.0
  %1699 = vmatprep.subr.mxu0 0.0
  %1700 = vmatpush1.xpose.msra.mxu0 %v1667
  %1701 = vmatprep.subr.mxu0 0.0
  %1702 = vmatpush2.xpose.msra.mxu0 0.0
  %1703 = vmatprep.subr.mxu0 0.0
  %1704 = vmatpush2.xpose.msra.mxu0 0.0
  %1705 = vmatprep.subr.mxu0 0.0
  %1706 = vmatpush2.xpose.msra.mxu0 0.0
  %1707 = vmatprep.subr.mxu0 0.0
  %1708 = vmatpush2.xpose.msra.mxu0 0.0
  %1709 = vmatprep.subr.mxu0 0.0
  %1710 = vmatpush2.xpose.msra.mxu0 0.0
  %1711 = vmatprep.subr.mxu0 0.0
  %1712 = vmatpush2.xpose.msra.mxu0 0.0
  %1713 = vmatprep.subr.mxu0 0.0
  %1714 = vmatpush2.xpose.msra.mxu0 0.0
  %1715 = vmatprep.subr.mxu0 0.0
  %1716 = vmatpush2.xpose.msra.mxu0 0.0
  %1717 = vmatprep.subr.mxu0 0.0
  %1718 = vmatpush2.xpose.msra.mxu0 0.0
  %1719 = vmatprep.subr.mxu0 0.0
  %1720 = vmatpush2.xpose.msra.mxu0 0.0
  %1721 = vmatprep.subr.mxu0 0.0
  %1722 = vmatpush2.xpose.msra.mxu0 0.0
  %1723 = vmatprep.subr.mxu0 0.0
  %1724 = vmatpush2.xpose.msra.mxu0 0.0
  %1725 = vmatprep.subr.mxu0 0.0
  %1726 = vmatpush2.xpose.msra.mxu0 0.0
  %1727 = vmatprep.subr.mxu0 0.0
  %1728 = vmatpush2.xpose.msra.mxu0 0.0
  %1729 = vmatprep.subr.mxu0 0.0
  %1730 = vmatpush2.xpose.msra.mxu0 0.0
  %1731 = vmatprep.subr.mxu0 0.0
  %1732 = vmatpush2.xpose.msra.mxu0 0.0
  %1733 = vmatprep.mubr.f32.mxu0 0.0
  %1734 = vmatmul.mubr.f32.gmra.mxu0 %v1664
  %v1735 = vpop.f32.mrf.mxu0
  %v1736 = vadd.f32 0.0, %v1735
  %v1737 = vpop.f32.mrf.mxu0
  %1738 = vdwg.mxu0
  %v1739 = vmul.f32 %v1204, 0.35355338
  %v1740 = vmul.f32 %v1280, 0.35355338
  %v1741 = vmul.f32 %v1356, 0.35355338
  %v1742 = vmul.f32 %v1432, 0.35355338
  %v1743 = vmul.f32 %v1508, 0.35355338
  %v1744 = vmul.f32 %v1584, 0.35355338
  %v1745 = vmul.f32 %v1660, 0.35355338
  %v1746 = vmul.f32 %v1736, 0.35355338
  %v1747 = vsel %vm1130, %v1739, -inf
  %1748 = vmax.xlane.f32.xlu0 %v1747
  %v1749 = vpop.xlane.xlu0 %1748
  %v1750 = vsel %vm1130, %v1740, -inf
  %1751 = vmax.xlane.f32.xlu0 %v1750
  %v1752 = vpop.xlane.xlu0 %1751
  %v1753 = vsel %vm1130, %v1741, -inf
  %1754 = vmax.xlane.f32.xlu0 %v1753
  %v1755 = vpop.xlane.xlu0 %1754
  %v1756 = vsel %vm1130, %v1742, -inf
  %1757 = vmax.xlane.f32.xlu0 %v1756
  %v1758 = vpop.xlane.xlu0 %1757
  %v1759 = vsel %vm1130, %v1743, -inf
  %1760 = vmax.xlane.f32.xlu0 %v1759
  %v1761 = vpop.xlane.xlu0 %1760
  %v1762 = vsel %vm1130, %v1744, -inf
  %1763 = vmax.xlane.f32.xlu0 %v1762
  %v1764 = vpop.xlane.xlu0 %1763
  %v1765 = vsel %vm1130, %v1745, -inf
  %1766 = vmax.xlane.f32.xlu0 %v1765
  %v1767 = vpop.xlane.xlu0 %1766
  %v1768 = vsel %vm1130, %v1746, -inf
  %1769 = vmax.xlane.f32.xlu0 %v1768
  %v1770 = vpop.xlane.xlu0 %1769
  %v1771 = vsub.f32 %v1739, %v1749
  %v1772 = vsub.f32 %v1740, %v1752
  %v1773 = vsub.f32 %v1741, %v1755
  %v1774 = vsub.f32 %v1742, %v1758
  %v1775 = vsub.f32 %v1743, %v1761
  %v1776 = vsub.f32 %v1744, %v1764
  %v1777 = vsub.f32 %v1745, %v1767
  %v1778 = vsub.f32 %v1746, %v1770
  %v1779 = vmul.f32 %v1771, 1.442695
  %v1780 = vpow.pop %v1779
  %v1781 = vmul.f32 %v1772, 1.442695
  %v1782 = vpow.pop %v1781
  %v1783 = vmul.f32 %v1773, 1.442695
  %v1784 = vpow.pop %v1783
  %v1785 = vmul.f32 %v1774, 1.442695
  %v1786 = vpow.pop %v1785
  %v1787 = vmul.f32 %v1775, 1.442695
  %v1788 = vpow.pop %v1787
  %v1789 = vmul.f32 %v1776, 1.442695
  %v1790 = vpow.pop %v1789
  %v1791 = vmul.f32 %v1777, 1.442695
  %v1792 = vpow.pop %v1791
  %v1793 = vmul.f32 %v1778, 1.442695
  %v1794 = vpow.pop %v1793
  %v1795 = vsel %vm1130, %v1780, 0.0
  %1796 = vadd.xlane.f32.xlu0 %v1795
  %v1797 = vpop.xlane.xlu0 %1796
  %v1798 = vsel %vm1130, %v1782, 0.0
  %1799 = vadd.xlane.f32.xlu0 %v1798
  %v1800 = vpop.xlane.xlu0 %1799
  %v1801 = vsel %vm1130, %v1784, 0.0
  %1802 = vadd.xlane.f32.xlu0 %v1801
  %v1803 = vpop.xlane.xlu0 %1802
  %v1804 = vsel %vm1130, %v1786, 0.0
  %1805 = vadd.xlane.f32.xlu0 %v1804
  %v1806 = vpop.xlane.xlu0 %1805
  %v1807 = vsel %vm1130, %v1788, 0.0
  %1808 = vadd.xlane.f32.xlu0 %v1807
  %v1809 = vpop.xlane.xlu0 %1808
  %v1810 = vsel %vm1130, %v1790, 0.0
  %1811 = vadd.xlane.f32.xlu0 %v1810
  %v1812 = vpop.xlane.xlu0 %1811
  %v1813 = vsel %vm1130, %v1792, 0.0
  %1814 = vadd.xlane.f32.xlu0 %v1813
  %v1815 = vpop.xlane.xlu0 %1814
  %v1816 = vsel %vm1130, %v1794, 0.0
  %1817 = vadd.xlane.f32.xlu0 %v1816
  %v1818 = vpop.xlane.xlu0 %1817
  %v1819 = vrcp.pop %v1797
  %v1820 = vrcp.pop %v1800
  %v1821 = vrcp.pop %v1803
  %v1822 = vrcp.pop %v1806
  %v1823 = vrcp.pop %v1809
  %v1824 = vrcp.pop %v1812
  %v1825 = vrcp.pop %v1815
  %v1826 = vrcp.pop %v1818
  %v1827 = vmul.f32 %v1780, %v1819
  %v1828 = vmul.f32 %v1782, %v1820
  %v1829 = vmul.f32 %v1784, %v1821
  %v1830 = vmul.f32 %v1786, %v1822
  %v1831 = vmul.f32 %v1788, %v1823
  %v1832 = vmul.f32 %v1790, %v1824
  %v1833 = vmul.f32 %v1792, %v1825
  %v1834 = vmul.f32 %v1794, %v1826
  %v1836 = vsel %vm1130, %v1827, 0
  %1838 = vmatprep.subr.mxu0 0.0
  %1839 = vmatpush1.msra.mxu0 0.0
  %1840 = vmatprep.subr.mxu0 0.0
  %1841 = vmatpush1.msra.mxu0 0.0
  %1842 = vmatprep.subr.mxu0 0.0
  %1843 = vmatpush1.msra.mxu0 0.0
  %1844 = vmatprep.subr.mxu0 0.0
  %1845 = vmatpush1.msra.mxu0 0.0
  %1846 = vmatprep.subr.mxu0 0.0
  %1847 = vmatpush1.msra.mxu0 0.0
  %1848 = vmatprep.subr.mxu0 0.0
  %1849 = vmatpush1.msra.mxu0 0.0
  %1850 = vmatprep.subr.mxu0 0.0
  %1851 = vmatpush1.msra.mxu0 0.0
  %1852 = vmatprep.subr.mxu0 0.0
  %1853 = vmatpush1.msra.mxu0 0.0
  %1854 = vmatprep.subr.mxu0 0.0
  %1855 = vmatpush1.msra.mxu0 0.0
  %1856 = vmatprep.subr.mxu0 0.0
  %1857 = vmatpush1.msra.mxu0 0.0
  %1858 = vmatprep.subr.mxu0 0.0
  %1859 = vmatpush1.msra.mxu0 0.0
  %1860 = vmatprep.subr.mxu0 0.0
  %1861 = vmatpush1.msra.mxu0 0.0
  %1862 = vmatprep.subr.mxu0 0.0
  %1863 = vmatpush1.msra.mxu0 0.0
  %1864 = vmatprep.subr.mxu0 0.0
  %1865 = vmatpush1.msra.mxu0 0.0
  %1866 = vmatprep.subr.mxu0 0.0
  %1867 = vmatpush1.msra.mxu0 0.0
  %1868 = vmatprep.subr.mxu0 0.0
  %1869 = vmatpush1.msra.mxu0 %v1058
  %1870 = vmatprep.subr.mxu0 0.0
  %1871 = vmatpush2.msra.mxu0 0.0
  %1872 = vmatprep.subr.mxu0 0.0
  %1873 = vmatpush2.msra.mxu0 0.0
  %1874 = vmatprep.subr.mxu0 0.0
  %1875 = vmatpush2.msra.mxu0 0.0
  %1876 = vmatprep.subr.mxu0 0.0
  %1877 = vmatpush2.msra.mxu0 0.0
  %1878 = vmatprep.subr.mxu0 0.0
  %1879 = vmatpush2.msra.mxu0 0.0
  %1880 = vmatprep.subr.mxu0 0.0
  %1881 = vmatpush2.msra.mxu0 0.0
  %1882 = vmatprep.subr.mxu0 0.0
  %1883 = vmatpush2.msra.mxu0 0.0
  %1884 = vmatprep.subr.mxu0 0.0
  %1885 = vmatpush2.msra.mxu0 0.0
  %1886 = vmatprep.subr.mxu0 0.0
  %1887 = vmatpush2.msra.mxu0 0.0
  %1888 = vmatprep.subr.mxu0 0.0
  %1889 = vmatpush2.msra.mxu0 0.0
  %1890 = vmatprep.subr.mxu0 0.0
  %1891 = vmatpush2.msra.mxu0 0.0
  %1892 = vmatprep.subr.mxu0 0.0
  %1893 = vmatpush2.msra.mxu0 0.0
  %1894 = vmatprep.subr.mxu0 0.0
  %1895 = vmatpush2.msra.mxu0 0.0
  %1896 = vmatprep.subr.mxu0 0.0
  %1897 = vmatpush2.msra.mxu0 0.0
  %1898 = vmatprep.subr.mxu0 0.0
  %1899 = vmatpush2.msra.mxu0 0.0
  %1900 = vmatprep.subr.mxu0 0.0
  %1901 = vmatpush2.msra.mxu0 0.0
  %1902 = vmatprep.mubr.f32.mxu0 0.0
  %1903 = vmatmul.mubr.f32.gmra.mxu0 %v1836
  %v1904 = vpop.f32.mrf.mxu0
  %v1905 = vadd.f32 0.0, %v1904
  %v1906 = vpop.f32.mrf.mxu0
  %1907 = vdwg.mxu0
  %v1909 = vsel %vm1130, %v1828, 0
  %1911 = vmatprep.subr.mxu0 0.0
  %1912 = vmatpush1.msra.mxu0 0.0
  %1913 = vmatprep.subr.mxu0 0.0
  %1914 = vmatpush1.msra.mxu0 0.0
  %1915 = vmatprep.subr.mxu0 0.0
  %1916 = vmatpush1.msra.mxu0 0.0
  %1917 = vmatprep.subr.mxu0 0.0
  %1918 = vmatpush1.msra.mxu0 0.0
  %1919 = vmatprep.subr.mxu0 0.0
  %1920 = vmatpush1.msra.mxu0 0.0
  %1921 = vmatprep.subr.mxu0 0.0
  %1922 = vmatpush1.msra.mxu0 0.0
  %1923 = vmatprep.subr.mxu0 0.0
  %1924 = vmatpush1.msra.mxu0 0.0
  %1925 = vmatprep.subr.mxu0 0.0
  %1926 = vmatpush1.msra.mxu0 0.0
  %1927 = vmatprep.subr.mxu0 0.0
  %1928 = vmatpush1.msra.mxu0 0.0
  %1929 = vmatprep.subr.mxu0 0.0
  %1930 = vmatpush1.msra.mxu0 0.0
  %1931 = vmatprep.subr.mxu0 0.0
  %1932 = vmatpush1.msra.mxu0 0.0
  %1933 = vmatprep.subr.mxu0 0.0
  %1934 = vmatpush1.msra.mxu0 0.0
  %1935 = vmatprep.subr.mxu0 0.0
  %1936 = vmatpush1.msra.mxu0 0.0
  %1937 = vmatprep.subr.mxu0 0.0
  %1938 = vmatpush1.msra.mxu0 0.0
  %1939 = vmatprep.subr.mxu0 0.0
  %1940 = vmatpush1.msra.mxu0 0.0
  %1941 = vmatprep.subr.mxu0 0.0
  %1942 = vmatpush1.msra.mxu0 %v1059
  %1943 = vmatprep.subr.mxu0 0.0
  %1944 = vmatpush2.msra.mxu0 0.0
  %1945 = vmatprep.subr.mxu0 0.0
  %1946 = vmatpush2.msra.mxu0 0.0
  %1947 = vmatprep.subr.mxu0 0.0
  %1948 = vmatpush2.msra.mxu0 0.0
  %1949 = vmatprep.subr.mxu0 0.0
  %1950 = vmatpush2.msra.mxu0 0.0
  %1951 = vmatprep.subr.mxu0 0.0
  %1952 = vmatpush2.msra.mxu0 0.0
  %1953 = vmatprep.subr.mxu0 0.0
  %1954 = vmatpush2.msra.mxu0 0.0
  %1955 = vmatprep.subr.mxu0 0.0
  %1956 = vmatpush2.msra.mxu0 0.0
  %1957 = vmatprep.subr.mxu0 0.0
  %1958 = vmatpush2.msra.mxu0 0.0
  %1959 = vmatprep.subr.mxu0 0.0
  %1960 = vmatpush2.msra.mxu0 0.0
  %1961 = vmatprep.subr.mxu0 0.0
  %1962 = vmatpush2.msra.mxu0 0.0
  %1963 = vmatprep.subr.mxu0 0.0
  %1964 = vmatpush2.msra.mxu0 0.0
  %1965 = vmatprep.subr.mxu0 0.0
  %1966 = vmatpush2.msra.mxu0 0.0
  %1967 = vmatprep.subr.mxu0 0.0
  %1968 = vmatpush2.msra.mxu0 0.0
  %1969 = vmatprep.subr.mxu0 0.0
  %1970 = vmatpush2.msra.mxu0 0.0
  %1971 = vmatprep.subr.mxu0 0.0
  %1972 = vmatpush2.msra.mxu0 0.0
  %1973 = vmatprep.subr.mxu0 0.0
  %1974 = vmatpush2.msra.mxu0 0.0
  %1975 = vmatprep.mubr.f32.mxu0 0.0
  %1976 = vmatmul.mubr.f32.gmra.mxu0 %v1909
  %v1977 = vpop.f32.mrf.mxu0
  %v1978 = vadd.f32 0.0, %v1977
  %v1979 = vpop.f32.mrf.mxu0
  %1980 = vdwg.mxu0
  %v1982 = vsel %vm1130, %v1829, 0
  %1984 = vmatprep.subr.mxu0 0.0
  %1985 = vmatpush1.msra.mxu0 0.0
  %1986 = vmatprep.subr.mxu0 0.0
  %1987 = vmatpush1.msra.mxu0 0.0
  %1988 = vmatprep.subr.mxu0 0.0
  %1989 = vmatpush1.msra.mxu0 0.0
  %1990 = vmatprep.subr.mxu0 0.0
  %1991 = vmatpush1.msra.mxu0 0.0
  %1992 = vmatprep.subr.mxu0 0.0
  %1993 = vmatpush1.msra.mxu0 0.0
  %1994 = vmatprep.subr.mxu0 0.0
  %1995 = vmatpush1.msra.mxu0 0.0
  %1996 = vmatprep.subr.mxu0 0.0
  %1997 = vmatpush1.msra.mxu0 0.0
  %1998 = vmatprep.subr.mxu0 0.0
  %1999 = vmatpush1.msra.mxu0 0.0
  %2000 = vmatprep.subr.mxu0 0.0
  %2001 = vmatpush1.msra.mxu0 0.0
  %2002 = vmatprep.subr.mxu0 0.0
  %2003 = vmatpush1.msra.mxu0 0.0
  %2004 = vmatprep.subr.mxu0 0.0
  %2005 = vmatpush1.msra.mxu0 0.0
  %2006 = vmatprep.subr.mxu0 0.0
  %2007 = vmatpush1.msra.mxu0 0.0
  %2008 = vmatprep.subr.mxu0 0.0
  %2009 = vmatpush1.msra.mxu0 0.0
  %2010 = vmatprep.subr.mxu0 0.0
  %2011 = vmatpush1.msra.mxu0 0.0
  %2012 = vmatprep.subr.mxu0 0.0
  %2013 = vmatpush1.msra.mxu0 0.0
  %2014 = vmatprep.subr.mxu0 0.0
  %2015 = vmatpush1.msra.mxu0 %v1060
  %2016 = vmatprep.subr.mxu0 0.0
  %2017 = vmatpush2.msra.mxu0 0.0
  %2018 = vmatprep.subr.mxu0 0.0
  %2019 = vmatpush2.msra.mxu0 0.0
  %2020 = vmatprep.subr.mxu0 0.0
  %2021 = vmatpush2.msra.mxu0 0.0
  %2022 = vmatprep.subr.mxu0 0.0
  %2023 = vmatpush2.msra.mxu0 0.0
  %2024 = vmatprep.subr.mxu0 0.0
  %2025 = vmatpush2.msra.mxu0 0.0
  %2026 = vmatprep.subr.mxu0 0.0
  %2027 = vmatpush2.msra.mxu0 0.0
  %2028 = vmatprep.subr.mxu0 0.0
  %2029 = vmatpush2.msra.mxu0 0.0
  %2030 = vmatprep.subr.mxu0 0.0
  %2031 = vmatpush2.msra.mxu0 0.0
  %2032 = vmatprep.subr.mxu0 0.0
  %2033 = vmatpush2.msra.mxu0 0.0
  %2034 = vmatprep.subr.mxu0 0.0
  %2035 = vmatpush2.msra.mxu0 0.0
  %2036 = vmatprep.subr.mxu0 0.0
  %2037 = vmatpush2.msra.mxu0 0.0
  %2038 = vmatprep.subr.mxu0 0.0
  %2039 = vmatpush2.msra.mxu0 0.0
  %2040 = vmatprep.subr.mxu0 0.0
  %2041 = vmatpush2.msra.mxu0 0.0
  %2042 = vmatprep.subr.mxu0 0.0
  %2043 = vmatpush2.msra.mxu0 0.0
  %2044 = vmatprep.subr.mxu0 0.0
  %2045 = vmatpush2.msra.mxu0 0.0
  %2046 = vmatprep.subr.mxu0 0.0
  %2047 = vmatpush2.msra.mxu0 0.0
  %2048 = vmatprep.mubr.f32.mxu0 0.0
  %2049 = vmatmul.mubr.f32.gmra.mxu0 %v1982
  %v2050 = vpop.f32.mrf.mxu0
  %v2051 = vadd.f32 0.0, %v2050
  %v2052 = vpop.f32.mrf.mxu0
  %2053 = vdwg.mxu0
  %v2055 = vsel %vm1130, %v1830, 0
  %2057 = vmatprep.subr.mxu0 0.0
  %2058 = vmatpush1.msra.mxu0 0.0
  %2059 = vmatprep.subr.mxu0 0.0
  %2060 = vmatpush1.msra.mxu0 0.0
  %2061 = vmatprep.subr.mxu0 0.0
  %2062 = vmatpush1.msra.mxu0 0.0
  %2063 = vmatprep.subr.mxu0 0.0
  %2064 = vmatpush1.msra.mxu0 0.0
  %2065 = vmatprep.subr.mxu0 0.0
  %2066 = vmatpush1.msra.mxu0 0.0
  %2067 = vmatprep.subr.mxu0 0.0
  %2068 = vmatpush1.msra.mxu0 0.0
  %2069 = vmatprep.subr.mxu0 0.0
  %2070 = vmatpush1.msra.mxu0 0.0
  %2071 = vmatprep.subr.mxu0 0.0
  %2072 = vmatpush1.msra.mxu0 0.0
  %2073 = vmatprep.subr.mxu0 0.0
  %2074 = vmatpush1.msra.mxu0 0.0
  %2075 = vmatprep.subr.mxu0 0.0
  %2076 = vmatpush1.msra.mxu0 0.0
  %2077 = vmatprep.subr.mxu0 0.0
  %2078 = vmatpush1.msra.mxu0 0.0
  %2079 = vmatprep.subr.mxu0 0.0
  %2080 = vmatpush1.msra.mxu0 0.0
  %2081 = vmatprep.subr.mxu0 0.0
  %2082 = vmatpush1.msra.mxu0 0.0
  %2083 = vmatprep.subr.mxu0 0.0
  %2084 = vmatpush1.msra.mxu0 0.0
  %2085 = vmatprep.subr.mxu0 0.0
  %2086 = vmatpush1.msra.mxu0 0.0
  %2087 = vmatprep.subr.mxu0 0.0
  %2088 = vmatpush1.msra.mxu0 %v1061
  %2089 = vmatprep.subr.mxu0 0.0
  %2090 = vmatpush2.msra.mxu0 0.0
  %2091 = vmatprep.subr.mxu0 0.0
  %2092 = vmatpush2.msra.mxu0 0.0
  %2093 = vmatprep.subr.mxu0 0.0
  %2094 = vmatpush2.msra.mxu0 0.0
  %2095 = vmatprep.subr.mxu0 0.0
  %2096 = vmatpush2.msra.mxu0 0.0
  %2097 = vmatprep.subr.mxu0 0.0
  %2098 = vmatpush2.msra.mxu0 0.0
  %2099 = vmatprep.subr.mxu0 0.0
  %2100 = vmatpush2.msra.mxu0 0.0
  %2101 = vmatprep.subr.mxu0 0.0
  %2102 = vmatpush2.msra.mxu0 0.0
  %2103 = vmatprep.subr.mxu0 0.0
  %2104 = vmatpush2.msra.mxu0 0.0
  %2105 = vmatprep.subr.mxu0 0.0
  %2106 = vmatpush2.msra.mxu0 0.0
  %2107 = vmatprep.subr.mxu0 0.0
  %2108 = vmatpush2.msra.mxu0 0.0
  %2109 = vmatprep.subr.mxu0 0.0
  %2110 = vmatpush2.msra.mxu0 0.0
  %2111 = vmatprep.subr.mxu0 0.0
  %2112 = vmatpush2.msra.mxu0 0.0
  %2113 = vmatprep.subr.mxu0 0.0
  %2114 = vmatpush2.msra.mxu0 0.0
  %2115 = vmatprep.subr.mxu0 0.0
  %2116 = vmatpush2.msra.mxu0 0.0
  %2117 = vmatprep.subr.mxu0 0.0
  %2118 = vmatpush2.msra.mxu0 0.0
  %2119 = vmatprep.subr.mxu0 0.0
  %2120 = vmatpush2.msra.mxu0 0.0
  %2121 = vmatprep.mubr.f32.mxu0 0.0
  %2122 = vmatmul.mubr.f32.gmra.mxu0 %v2055
  %v2123 = vpop.f32.mrf.mxu0
  %v2124 = vadd.f32 0.0, %v2123
  %v2125 = vpop.f32.mrf.mxu0
  %2126 = vdwg.mxu0
  %v2128 = vsel %vm1130, %v1831, 0
  %2130 = vmatprep.subr.mxu0 0.0
  %2131 = vmatpush1.msra.mxu0 0.0
  %2132 = vmatprep.subr.mxu0 0.0
  %2133 = vmatpush1.msra.mxu0 0.0
  %2134 = vmatprep.subr.mxu0 0.0
  %2135 = vmatpush1.msra.mxu0 0.0
  %2136 = vmatprep.subr.mxu0 0.0
  %2137 = vmatpush1.msra.mxu0 0.0
  %2138 = vmatprep.subr.mxu0 0.0
  %2139 = vmatpush1.msra.mxu0 0.0
  %2140 = vmatprep.subr.mxu0 0.0
  %2141 = vmatpush1.msra.mxu0 0.0
  %2142 = vmatprep.subr.mxu0 0.0
  %2143 = vmatpush1.msra.mxu0 0.0
  %2144 = vmatprep.subr.mxu0 0.0
  %2145 = vmatpush1.msra.mxu0 0.0
  %2146 = vmatprep.subr.mxu0 0.0
  %2147 = vmatpush1.msra.mxu0 0.0
  %2148 = vmatprep.subr.mxu0 0.0
  %2149 = vmatpush1.msra.mxu0 0.0
  %2150 = vmatprep.subr.mxu0 0.0
  %2151 = vmatpush1.msra.mxu0 0.0
  %2152 = vmatprep.subr.mxu0 0.0
  %2153 = vmatpush1.msra.mxu0 0.0
  %2154 = vmatprep.subr.mxu0 0.0
  %2155 = vmatpush1.msra.mxu0 0.0
  %2156 = vmatprep.subr.mxu0 0.0
  %2157 = vmatpush1.msra.mxu0 0.0
  %2158 = vmatprep.subr.mxu0 0.0
  %2159 = vmatpush1.msra.mxu0 0.0
  %2160 = vmatprep.subr.mxu0 0.0
  %2161 = vmatpush1.msra.mxu0 %v1126
  %2162 = vmatprep.subr.mxu0 0.0
  %2163 = vmatpush2.msra.mxu0 0.0
  %2164 = vmatprep.subr.mxu0 0.0
  %2165 = vmatpush2.msra.mxu0 0.0
  %2166 = vmatprep.subr.mxu0 0.0
  %2167 = vmatpush2.msra.mxu0 0.0
  %2168 = vmatprep.subr.mxu0 0.0
  %2169 = vmatpush2.msra.mxu0 0.0
  %2170 = vmatprep.subr.mxu0 0.0
  %2171 = vmatpush2.msra.mxu0 0.0
  %2172 = vmatprep.subr.mxu0 0.0
  %2173 = vmatpush2.msra.mxu0 0.0
  %2174 = vmatprep.subr.mxu0 0.0
  %2175 = vmatpush2.msra.mxu0 0.0
  %2176 = vmatprep.subr.mxu0 0.0
  %2177 = vmatpush2.msra.mxu0 0.0
  %2178 = vmatprep.subr.mxu0 0.0
  %2179 = vmatpush2.msra.mxu0 0.0
  %2180 = vmatprep.subr.mxu0 0.0
  %2181 = vmatpush2.msra.mxu0 0.0
  %2182 = vmatprep.subr.mxu0 0.0
  %2183 = vmatpush2.msra.mxu0 0.0
  %2184 = vmatprep.subr.mxu0 0.0
  %2185 = vmatpush2.msra.mxu0 0.0
  %2186 = vmatprep.subr.mxu0 0.0
  %2187 = vmatpush2.msra.mxu0 0.0
  %2188 = vmatprep.subr.mxu0 0.0
  %2189 = vmatpush2.msra.mxu0 0.0
  %2190 = vmatprep.subr.mxu0 0.0
  %2191 = vmatpush2.msra.mxu0 0.0
  %2192 = vmatprep.subr.mxu0 0.0
  %2193 = vmatpush2.msra.mxu0 0.0
  %2194 = vmatprep.mubr.f32.mxu0 0.0
  %2195 = vmatmul.mubr.f32.gmra.mxu0 %v2128
  %v2196 = vpop.f32.mrf.mxu0
  %v2197 = vadd.f32 0.0, %v2196
  %v2198 = vpop.f32.mrf.mxu0
  %2199 = vdwg.mxu0
  %v2201 = vsel %vm1130, %v1832, 0
  %2203 = vmatprep.subr.mxu0 0.0
  %2204 = vmatpush1.msra.mxu0 0.0
  %2205 = vmatprep.subr.mxu0 0.0
  %2206 = vmatpush1.msra.mxu0 0.0
  %2207 = vmatprep.subr.mxu0 0.0
  %2208 = vmatpush1.msra.mxu0 0.0
  %2209 = vmatprep.subr.mxu0 0.0
  %2210 = vmatpush1.msra.mxu0 0.0
  %2211 = vmatprep.subr.mxu0 0.0
  %2212 = vmatpush1.msra.mxu0 0.0
  %2213 = vmatprep.subr.mxu0 0.0
  %2214 = vmatpush1.msra.mxu0 0.0
  %2215 = vmatprep.subr.mxu0 0.0
  %2216 = vmatpush1.msra.mxu0 0.0
  %2217 = vmatprep.subr.mxu0 0.0
  %2218 = vmatpush1.msra.mxu0 0.0
  %2219 = vmatprep.subr.mxu0 0.0
  %2220 = vmatpush1.msra.mxu0 0.0
  %2221 = vmatprep.subr.mxu0 0.0
  %2222 = vmatpush1.msra.mxu0 0.0
  %2223 = vmatprep.subr.mxu0 0.0
  %2224 = vmatpush1.msra.mxu0 0.0
  %2225 = vmatprep.subr.mxu0 0.0
  %2226 = vmatpush1.msra.mxu0 0.0
  %2227 = vmatprep.subr.mxu0 0.0
  %2228 = vmatpush1.msra.mxu0 0.0
  %2229 = vmatprep.subr.mxu0 0.0
  %2230 = vmatpush1.msra.mxu0 0.0
  %2231 = vmatprep.subr.mxu0 0.0
  %2232 = vmatpush1.msra.mxu0 0.0
  %2233 = vmatprep.subr.mxu0 0.0
  %2234 = vmatpush1.msra.mxu0 %v1127
  %2235 = vmatprep.subr.mxu0 0.0
  %2236 = vmatpush2.msra.mxu0 0.0
  %2237 = vmatprep.subr.mxu0 0.0
  %2238 = vmatpush2.msra.mxu0 0.0
  %2239 = vmatprep.subr.mxu0 0.0
  %2240 = vmatpush2.msra.mxu0 0.0
  %2241 = vmatprep.subr.mxu0 0.0
  %2242 = vmatpush2.msra.mxu0 0.0
  %2243 = vmatprep.subr.mxu0 0.0
  %2244 = vmatpush2.msra.mxu0 0.0
  %2245 = vmatprep.subr.mxu0 0.0
  %2246 = vmatpush2.msra.mxu0 0.0
  %2247 = vmatprep.subr.mxu0 0.0
  %2248 = vmatpush2.msra.mxu0 0.0
  %2249 = vmatprep.subr.mxu0 0.0
  %2250 = vmatpush2.msra.mxu0 0.0
  %2251 = vmatprep.subr.mxu0 0.0
  %2252 = vmatpush2.msra.mxu0 0.0
  %2253 = vmatprep.subr.mxu0 0.0
  %2254 = vmatpush2.msra.mxu0 0.0
  %2255 = vmatprep.subr.mxu0 0.0
  %2256 = vmatpush2.msra.mxu0 0.0
  %2257 = vmatprep.subr.mxu0 0.0
  %2258 = vmatpush2.msra.mxu0 0.0
  %2259 = vmatprep.subr.mxu0 0.0
  %2260 = vmatpush2.msra.mxu0 0.0
  %2261 = vmatprep.subr.mxu0 0.0
  %2262 = vmatpush2.msra.mxu0 0.0
  %2263 = vmatprep.subr.mxu0 0.0
  %2264 = vmatpush2.msra.mxu0 0.0
  %2265 = vmatprep.subr.mxu0 0.0
  %2266 = vmatpush2.msra.mxu0 0.0
  %2267 = vmatprep.mubr.f32.mxu0 0.0
  %2268 = vmatmul.mubr.f32.gmra.mxu0 %v2201
  %v2269 = vpop.f32.mrf.mxu0
  %v2270 = vadd.f32 0.0, %v2269
  %v2271 = vpop.f32.mrf.mxu0
  %2272 = vdwg.mxu0
  %v2274 = vsel %vm1130, %v1833, 0
  %2276 = vmatprep.subr.mxu0 0.0
  %2277 = vmatpush1.msra.mxu0 0.0
  %2278 = vmatprep.subr.mxu0 0.0
  %2279 = vmatpush1.msra.mxu0 0.0
  %2280 = vmatprep.subr.mxu0 0.0
  %2281 = vmatpush1.msra.mxu0 0.0
  %2282 = vmatprep.subr.mxu0 0.0
  %2283 = vmatpush1.msra.mxu0 0.0
  %2284 = vmatprep.subr.mxu0 0.0
  %2285 = vmatpush1.msra.mxu0 0.0
  %2286 = vmatprep.subr.mxu0 0.0
  %2287 = vmatpush1.msra.mxu0 0.0
  %2288 = vmatprep.subr.mxu0 0.0
  %2289 = vmatpush1.msra.mxu0 0.0
  %2290 = vmatprep.subr.mxu0 0.0
  %2291 = vmatpush1.msra.mxu0 0.0
  %2292 = vmatprep.subr.mxu0 0.0
  %2293 = vmatpush1.msra.mxu0 0.0
  %2294 = vmatprep.subr.mxu0 0.0
  %2295 = vmatpush1.msra.mxu0 0.0
  %2296 = vmatprep.subr.mxu0 0.0
  %2297 = vmatpush1.msra.mxu0 0.0
  %2298 = vmatprep.subr.mxu0 0.0
  %2299 = vmatpush1.msra.mxu0 0.0
  %2300 = vmatprep.subr.mxu0 0.0
  %2301 = vmatpush1.msra.mxu0 0.0
  %2302 = vmatprep.subr.mxu0 0.0
  %2303 = vmatpush1.msra.mxu0 0.0
  %2304 = vmatprep.subr.mxu0 0.0
  %2305 = vmatpush1.msra.mxu0 0.0
  %2306 = vmatprep.subr.mxu0 0.0
  %2307 = vmatpush1.msra.mxu0 %v1128
  %2308 = vmatprep.subr.mxu0 0.0
  %2309 = vmatpush2.msra.mxu0 0.0
  %2310 = vmatprep.subr.mxu0 0.0
  %2311 = vmatpush2.msra.mxu0 0.0
  %2312 = vmatprep.subr.mxu0 0.0
  %2313 = vmatpush2.msra.mxu0 0.0
  %2314 = vmatprep.subr.mxu0 0.0
  %2315 = vmatpush2.msra.mxu0 0.0
  %2316 = vmatprep.subr.mxu0 0.0
  %2317 = vmatpush2.msra.mxu0 0.0
  %2318 = vmatprep.subr.mxu0 0.0
  %2319 = vmatpush2.msra.mxu0 0.0
  %2320 = vmatprep.subr.mxu0 0.0
  %2321 = vmatpush2.msra.mxu0 0.0
  %2322 = vmatprep.subr.mxu0 0.0
  %2323 = vmatpush2.msra.mxu0 0.0
  %2324 = vmatprep.subr.mxu0 0.0
  %2325 = vmatpush2.msra.mxu0 0.0
  %2326 = vmatprep.subr.mxu0 0.0
  %2327 = vmatpush2.msra.mxu0 0.0
  %2328 = vmatprep.subr.mxu0 0.0
  %2329 = vmatpush2.msra.mxu0 0.0
  %2330 = vmatprep.subr.mxu0 0.0
  %2331 = vmatpush2.msra.mxu0 0.0
  %2332 = vmatprep.subr.mxu0 0.0
  %2333 = vmatpush2.msra.mxu0 0.0
  %2334 = vmatprep.subr.mxu0 0.0
  %2335 = vmatpush2.msra.mxu0 0.0
  %2336 = vmatprep.subr.mxu0 0.0
  %2337 = vmatpush2.msra.mxu0 0.0
  %2338 = vmatprep.subr.mxu0 0.0
  %2339 = vmatpush2.msra.mxu0 0.0
  %2340 = vmatprep.mubr.f32.mxu0 0.0
  %2341 = vmatmul.mubr.f32.gmra.mxu0 %v2274
  %v2342 = vpop.f32.mrf.mxu0
  %v2343 = vadd.f32 0.0, %v2342
  %v2344 = vpop.f32.mrf.mxu0
  %2345 = vdwg.mxu0
  %v2347 = vsel %vm1130, %v1834, 0
  %2349 = vmatprep.subr.mxu0 0.0
  %2350 = vmatpush1.msra.mxu0 0.0
  %2351 = vmatprep.subr.mxu0 0.0
  %2352 = vmatpush1.msra.mxu0 0.0
  %2353 = vmatprep.subr.mxu0 0.0
  %2354 = vmatpush1.msra.mxu0 0.0
  %2355 = vmatprep.subr.mxu0 0.0
  %2356 = vmatpush1.msra.mxu0 0.0
  %2357 = vmatprep.subr.mxu0 0.0
  %2358 = vmatpush1.msra.mxu0 0.0
  %2359 = vmatprep.subr.mxu0 0.0
  %2360 = vmatpush1.msra.mxu0 0.0
  %2361 = vmatprep.subr.mxu0 0.0
  %2362 = vmatpush1.msra.mxu0 0.0
  %2363 = vmatprep.subr.mxu0 0.0
  %2364 = vmatpush1.msra.mxu0 0.0
  %2365 = vmatprep.subr.mxu0 0.0
  %2366 = vmatpush1.msra.mxu0 0.0
  %2367 = vmatprep.subr.mxu0 0.0
  %2368 = vmatpush1.msra.mxu0 0.0
  %2369 = vmatprep.subr.mxu0 0.0
  %2370 = vmatpush1.msra.mxu0 0.0
  %2371 = vmatprep.subr.mxu0 0.0
  %2372 = vmatpush1.msra.mxu0 0.0
  %2373 = vmatprep.subr.mxu0 0.0
  %2374 = vmatpush1.msra.mxu0 0.0
  %2375 = vmatprep.subr.mxu0 0.0
  %2376 = vmatpush1.msra.mxu0 0.0
  %2377 = vmatprep.subr.mxu0 0.0
  %2378 = vmatpush1.msra.mxu0 0.0
  %2379 = vmatprep.subr.mxu0 0.0
  %2380 = vmatpush1.msra.mxu0 %v1129
  %2381 = vmatprep.subr.mxu0 0.0
  %2382 = vmatpush2.msra.mxu0 0.0
  %2383 = vmatprep.subr.mxu0 0.0
  %2384 = vmatpush2.msra.mxu0 0.0
  %2385 = vmatprep.subr.mxu0 0.0
  %2386 = vmatpush2.msra.mxu0 0.0
  %2387 = vmatprep.subr.mxu0 0.0
  %2388 = vmatpush2.msra.mxu0 0.0
  %2389 = vmatprep.subr.mxu0 0.0
  %2390 = vmatpush2.msra.mxu0 0.0
  %2391 = vmatprep.subr.mxu0 0.0
  %2392 = vmatpush2.msra.mxu0 0.0
  %2393 = vmatprep.subr.mxu0 0.0
  %2394 = vmatpush2.msra.mxu0 0.0
  %2395 = vmatprep.subr.mxu0 0.0
  %2396 = vmatpush2.msra.mxu0 0.0
  %2397 = vmatprep.subr.mxu0 0.0
  %2398 = vmatpush2.msra.mxu0 0.0
  %2399 = vmatprep.subr.mxu0 0.0
  %2400 = vmatpush2.msra.mxu0 0.0
  %2401 = vmatprep.subr.mxu0 0.0
  %2402 = vmatpush2.msra.mxu0 0.0
  %2403 = vmatprep.subr.mxu0 0.0
  %2404 = vmatpush2.msra.mxu0 0.0
  %2405 = vmatprep.subr.mxu0 0.0
  %2406 = vmatpush2.msra.mxu0 0.0
  %2407 = vmatprep.subr.mxu0 0.0
  %2408 = vmatpush2.msra.mxu0 0.0
  %2409 = vmatprep.subr.mxu0 0.0
  %2410 = vmatpush2.msra.mxu0 0.0
  %2411 = vmatprep.subr.mxu0 0.0
  %2412 = vmatpush2.msra.mxu0 0.0
  %2413 = vmatprep.mubr.f32.mxu0 0.0
  %2414 = vmatmul.mubr.f32.gmra.mxu0 %v2347
  %v2415 = vpop.f32.mrf.mxu0
  %v2416 = vadd.f32 0.0, %v2415
  %v2417 = vpop.f32.mrf.mxu0
  %2418 = vdwg.mxu0
  %v2419 = vcombine.low %v1905, %v2051
  %v2420 = vcombine.high %v1905, %v2051
  %v2422 = vunpack.c.l.s4 1983009808
  %v2423 = vunpack.c.0.s8 %v2422
  %v2424 = vlaneseq
  %v2425 = vshrl.u32 %v2424, 7
  %v2426 = vsub.s32 %v2423, %v2425
  %v2427 = vrot.slane %v2419, %v2426
  %v2429 = vunpack.c.l.s4 1983009808
  %v2430 = vunpack.c.0.s8 %v2429
  %v2431 = vlaneseq
  %v2432 = vshrl.u32 %v2431, 7
  %v2433 = vsub.s32 %v2430, %v2432
  %v2434 = vrot.slane %v2420, %v2433
  %v2435 = vcombine.low %v1978, %v2124
  %v2436 = vcombine.high %v1978, %v2124
  %v2438 = vunpack.c.l.s4 1983009808
  %v2439 = vunpack.c.0.s8 %v2438
  %v2440 = vlaneseq
  %v2441 = vshrl.u32 %v2440, 7
  %v2442 = vsub.s32 %v2439, %v2441
  %v2443 = vrot.slane %v2435, %v2442
  %v2445 = vunpack.c.l.s4 1983009808
  %v2446 = vunpack.c.0.s8 %v2445
  %v2447 = vlaneseq
  %v2448 = vshrl.u32 %v2447, 7
  %v2449 = vsub.s32 %v2446, %v2448
  %v2450 = vrot.slane %v2436, %v2449
  %v2451 = vcombine.low %v2427, %v2443
  %v2452 = vcombine.high %v2427, %v2443
  %v2454 = vunpack.c.l.s4 1934713408
  %v2455 = vunpack.c.0.s8 %v2454
  %v2456 = vlaneseq
  %v2457 = vshrl.u32 %v2456, 7
  %v2458 = vsub.s32 %v2455, %v2457
  %v2459 = vrot.slane %v2451, %v2458
  %v2461 = vunpack.c.l.s4 1934713408
  %v2462 = vunpack.c.0.s8 %v2461
  %v2463 = vlaneseq
  %v2464 = vshrl.u32 %v2463, 7
  %v2465 = vsub.s32 %v2462, %v2464
  %v2466 = vrot.slane %v2452, %v2465
  %v2467 = vcombine.low %v2434, %v2450
  %v2468 = vcombine.high %v2434, %v2450
  %v2470 = vunpack.c.l.s4 1934713408
  %v2471 = vunpack.c.0.s8 %v2470
  %v2472 = vlaneseq
  %v2473 = vshrl.u32 %v2472, 7
  %v2474 = vsub.s32 %v2471, %v2473
  %v2475 = vrot.slane %v2467, %v2474
  %v2477 = vunpack.c.l.s4 1934713408
  %v2478 = vunpack.c.0.s8 %v2477
  %v2479 = vlaneseq
  %v2480 = vshrl.u32 %v2479, 7
  %v2481 = vsub.s32 %v2478, %v2480
  %v2482 = vrot.slane %v2468, %v2481
  %v2483 = vcombine.high %v2459, 0.0
  %v2484 = vcombine.high %v2466, 0.0
  %v2485 = vcombine.high %v2475, 0.0
  %v2486 = vcombine.high %v2482, 0.0
  %v2487 = vcombine.low %v2197, %v2343
  %v2488 = vcombine.high %v2197, %v2343
  %v2490 = vunpack.c.l.s4 1983009808
  %v2491 = vunpack.c.0.s8 %v2490
  %v2492 = vlaneseq
  %v2493 = vshrl.u32 %v2492, 7
  %v2494 = vsub.s32 %v2491, %v2493
  %v2495 = vrot.slane %v2487, %v2494
  %v2497 = vunpack.c.l.s4 1983009808
  %v2498 = vunpack.c.0.s8 %v2497
  %v2499 = vlaneseq
  %v2500 = vshrl.u32 %v2499, 7
  %v2501 = vsub.s32 %v2498, %v2500
  %v2502 = vrot.slane %v2488, %v2501
  %v2503 = vcombine.low %v2270, %v2416
  %v2504 = vcombine.high %v2270, %v2416
  %v2506 = vunpack.c.l.s4 1983009808
  %v2507 = vunpack.c.0.s8 %v2506
  %v2508 = vlaneseq
  %v2509 = vshrl.u32 %v2508, 7
  %v2510 = vsub.s32 %v2507, %v2509
  %v2511 = vrot.slane %v2503, %v2510
  %v2513 = vunpack.c.l.s4 1983009808
  %v2514 = vunpack.c.0.s8 %v2513
  %v2515 = vlaneseq
  %v2516 = vshrl.u32 %v2515, 7
  %v2517 = vsub.s32 %v2514, %v2516
  %v2518 = vrot.slane %v2504, %v2517
  %v2519 = vcombine.low %v2495, %v2511
  %v2520 = vcombine.high %v2495, %v2511
  %v2522 = vunpack.c.l.s4 1934713408
  %v2523 = vunpack.c.0.s8 %v2522
  %v2524 = vlaneseq
  %v2525 = vshrl.u32 %v2524, 7
  %v2526 = vsub.s32 %v2523, %v2525
  %v2527 = vrot.slane %v2519, %v2526
  %v2529 = vunpack.c.l.s4 1934713408
  %v2530 = vunpack.c.0.s8 %v2529
  %v2531 = vlaneseq
  %v2532 = vshrl.u32 %v2531, 7
  %v2533 = vsub.s32 %v2530, %v2532
  %v2534 = vrot.slane %v2520, %v2533
  %v2535 = vcombine.low %v2502, %v2518
  %v2536 = vcombine.high %v2502, %v2518
  %v2538 = vunpack.c.l.s4 1934713408
  %v2539 = vunpack.c.0.s8 %v2538
  %v2540 = vlaneseq
  %v2541 = vshrl.u32 %v2540, 7
  %v2542 = vsub.s32 %v2539, %v2541
  %v2543 = vrot.slane %v2535, %v2542
  %v2545 = vunpack.c.l.s4 1934713408
  %v2546 = vunpack.c.0.s8 %v2545
  %v2547 = vlaneseq
  %v2548 = vshrl.u32 %v2547, 7
  %v2549 = vsub.s32 %v2546, %v2548
  %v2550 = vrot.slane %v2536, %v2549
  %v2551 = vcombine.high %v2527, 0.0
  %v2552 = vcombine.high %v2534, 0.0
  %v2553 = vcombine.high %v2543, 0.0
  %v2554 = vcombine.high %v2550, 0.0
  %v2555 = vcombine.low %v2459, %v2466
  %v2557 = vunpack.c.l.s4 1983009808
  %v2558 = vunpack.c.0.s8 %v2557
  %v2559 = vlaneseq
  %v2560 = vshrl.u32 %v2559, 7
  %v2561 = vsub.s32 %v2558, %v2560
  %v2562 = vrot.slane %v2555, %v2561
  %v2563 = vcombine.low %v2483, %v2484
  %v2565 = vunpack.c.l.s4 1983009808
  %v2566 = vunpack.c.0.s8 %v2565
  %v2567 = vlaneseq
  %v2568 = vshrl.u32 %v2567, 7
  %v2569 = vsub.s32 %v2566, %v2568
  %v2570 = vrot.slane %v2563, %v2569
  %v2571 = vcombine.low %v2475, %v2482
  %v2573 = vunpack.c.l.s4 1983009808
  %v2574 = vunpack.c.0.s8 %v2573
  %v2575 = vlaneseq
  %v2576 = vshrl.u32 %v2575, 7
  %v2577 = vsub.s32 %v2574, %v2576
  %v2578 = vrot.slane %v2571, %v2577
  %v2579 = vcombine.low %v2485, %v2486
  %v2581 = vunpack.c.l.s4 1983009808
  %v2582 = vunpack.c.0.s8 %v2581
  %v2583 = vlaneseq
  %v2584 = vshrl.u32 %v2583, 7
  %v2585 = vsub.s32 %v2582, %v2584
  %v2586 = vrot.slane %v2579, %v2585
  %v2587 = vcombine.low %v2562, %v2570
  %v2588 = vcombine.high %v2562, %v2570
  %v2590 = vunpack.c.l.s4 1934713408
  %v2591 = vunpack.c.0.s8 %v2590
  %v2592 = vlaneseq
  %v2593 = vshrl.u32 %v2592, 7
  %v2594 = vsub.s32 %v2591, %v2593
  %v2595 = vrot.slane %v2587, %v2594
  %v2597 = vunpack.c.l.s4 1934713408
  %v2598 = vunpack.c.0.s8 %v2597
  %v2599 = vlaneseq
  %v2600 = vshrl.u32 %v2599, 7
  %v2601 = vsub.s32 %v2598, %v2600
  %v2602 = vrot.slane %v2588, %v2601
  %v2603 = vcombine.low %v2578, %v2586
  %v2604 = vcombine.high %v2578, %v2586
  %v2606 = vunpack.c.l.s4 1934713408
  %v2607 = vunpack.c.0.s8 %v2606
  %v2608 = vlaneseq
  %v2609 = vshrl.u32 %v2608, 7
  %v2610 = vsub.s32 %v2607, %v2609
  %v2611 = vrot.slane %v2603, %v2610
  %v2613 = vunpack.c.l.s4 1934713408
  %v2614 = vunpack.c.0.s8 %v2613
  %v2615 = vlaneseq
  %v2616 = vshrl.u32 %v2615, 7
  %v2617 = vsub.s32 %v2614, %v2616
  %v2618 = vrot.slane %v2604, %v2617
  %v2619 = vcombine.low %v2595, %v2611
  %v2620 = vcombine.high %v2595, %v2611
  %v2621 = vcombine.low %v2602, %v2618
  %v2622 = vcombine.high %v2602, %v2618
  %v2623 = vcombine.low %v2527, %v2534
  %v2625 = vunpack.c.l.s4 1983009808
  %v2626 = vunpack.c.0.s8 %v2625
  %v2627 = vlaneseq
  %v2628 = vshrl.u32 %v2627, 7
  %v2629 = vsub.s32 %v2626, %v2628
  %v2630 = vrot.slane %v2623, %v2629
  %v2631 = vcombine.low %v2551, %v2552
  %v2633 = vunpack.c.l.s4 1983009808
  %v2634 = vunpack.c.0.s8 %v2633
  %v2635 = vlaneseq
  %v2636 = vshrl.u32 %v2635, 7
  %v2637 = vsub.s32 %v2634, %v2636
  %v2638 = vrot.slane %v2631, %v2637
  %v2639 = vcombine.low %v2543, %v2550
  %v2641 = vunpack.c.l.s4 1983009808
  %v2642 = vunpack.c.0.s8 %v2641
  %v2643 = vlaneseq
  %v2644 = vshrl.u32 %v2643, 7
  %v2645 = vsub.s32 %v2642, %v2644
  %v2646 = vrot.slane %v2639, %v2645
  %v2647 = vcombine.low %v2553, %v2554
  %v2649 = vunpack.c.l.s4 1983009808
  %v2650 = vunpack.c.0.s8 %v2649
  %v2651 = vlaneseq
  %v2652 = vshrl.u32 %v2651, 7
  %v2653 = vsub.s32 %v2650, %v2652
  %v2654 = vrot.slane %v2647, %v2653
  %v2655 = vcombine.low %v2630, %v2638
  %v2656 = vcombine.high %v2630, %v2638
  %v2658 = vunpack.c.l.s4 1934713408
  %v2659 = vunpack.c.0.s8 %v2658
  %v2660 = vlaneseq
  %v2661 = vshrl.u32 %v2660, 7
  %v2662 = vsub.s32 %v2659, %v2661
  %v2663 = vrot.slane %v2655, %v2662
  %v2665 = vunpack.c.l.s4 1934713408
  %v2666 = vunpack.c.0.s8 %v2665
  %v2667 = vlaneseq
  %v2668 = vshrl.u32 %v2667, 7
  %v2669 = vsub.s32 %v2666, %v2668
  %v2670 = vrot.slane %v2656, %v2669
  %v2671 = vcombine.low %v2646, %v2654
  %v2672 = vcombine.high %v2646, %v2654
  %v2674 = vunpack.c.l.s4 1934713408
  %v2675 = vunpack.c.0.s8 %v2674
  %v2676 = vlaneseq
  %v2677 = vshrl.u32 %v2676, 7
  %v2678 = vsub.s32 %v2675, %v2677
  %v2679 = vrot.slane %v2671, %v2678
  %v2681 = vunpack.c.l.s4 1934713408
  %v2682 = vunpack.c.0.s8 %v2681
  %v2683 = vlaneseq
  %v2684 = vshrl.u32 %v2683, 7
  %v2685 = vsub.s32 %v2682, %v2684
  %v2686 = vrot.slane %v2672, %v2685
  %v2687 = vcombine.low %v2663, %v2679
  %v2688 = vcombine.high %v2663, %v2679
  %v2689 = vcombine.low %v2670, %v2686
  %v2690 = vcombine.high %v2670, %v2686
  %2693 = vrot.lane.b32.xlu0 %v2620, 8
  %v2694 = vpop.permute.xlu0 %2693
  %2695 = vrot.lane.b32.xlu0 %v2688, 8
  %v2696 = vpop.permute.xlu0 %2695
  %2701 = vrot.lane.b32.xlu0 %v2621, 16
  %v2702 = vpop.permute.xlu0 %2701
  %2703 = vrot.lane.b32.xlu0 %v2689, 16
  %v2704 = vpop.permute.xlu0 %2703
  %2709 = vrot.lane.b32.xlu0 %v2622, 24
  %v2710 = vpop.permute.xlu0 %2709
  %2711 = vrot.lane.b32.xlu0 %v2690, 24
  %v2712 = vpop.permute.xlu0 %2711
  %v2715 = vsel %vm1130, %v2619, %v2694
  %v2716 = vsel %vm1130, %v2687, %v2696
  %vm2717 = vcmask 130048
  %v2718 = vsel %vm2717, %v2715, %v2702
  %v2719 = vsel %vm2717, %v2716, %v2704
  %vm2720 = vcmask 195584
  %v2721 = vsel %vm2720, %v2718, %v2710
  %v2722 = vsel %vm2720, %v2719, %v2712
  %v2723 = vld [vmem:[%s6] sm:$0xff]
  %v2724 = vld [vmem:[%s6 + $0x8] sm:$0xff]
  %v2725 = vld [vmem:[%s6 + $0x10] sm:$0xff]
  %v2726 = vld [vmem:[%s6 + $0x18] sm:$0xff]
  %v2727 = vld [vmem:[%s7] sm:$0x1]
  %v2729 = vlaneseq
  %v2730 = vshrl.u32 %v2729, 7
  %v2731 = vsub.s32 0, %v2730
  %v2732 = vrot.slane %v2727, %v2731
  %v2735 = vsel %vm76, %v2721, 0
  %v2738 = vsel %vm76, %v2722, 0
  %2740 = vmatprep.subr.mxu0 0.0
  %2741 = vmatpush1.msra.mxu0 0.0
  %2742 = vmatprep.subr.mxu0 0.0
  %2743 = vmatpush1.msra.mxu0 0.0
  %2744 = vmatprep.subr.mxu0 0.0
  %2745 = vmatpush1.msra.mxu0 0.0
  %2746 = vmatprep.subr.mxu0 0.0
  %2747 = vmatpush1.msra.mxu0 0.0
  %2748 = vmatprep.subr.mxu0 0.0
  %2749 = vmatpush1.msra.mxu0 0.0
  %2750 = vmatprep.subr.mxu0 0.0
  %2751 = vmatpush1.msra.mxu0 0.0
  %2752 = vmatprep.subr.mxu0 0.0
  %2753 = vmatpush1.msra.mxu0 0.0
  %2754 = vmatprep.subr.mxu0 0.0
  %2755 = vmatpush1.msra.mxu0 0.0
  %2756 = vmatprep.subr.mxu0 0.0
  %2757 = vmatpush1.msra.mxu0 0.0
  %2758 = vmatprep.subr.mxu0 0.0
  %2759 = vmatpush1.msra.mxu0 0.0
  %2760 = vmatprep.subr.mxu0 0.0
  %2761 = vmatpush1.msra.mxu0 0.0
  %2762 = vmatprep.subr.mxu0 0.0
  %2763 = vmatpush1.msra.mxu0 0.0
  %2764 = vmatprep.subr.mxu0 0.0
  %2765 = vmatpush1.msra.mxu0 %v2726
  %2766 = vmatprep.subr.mxu0 0.0
  %2767 = vmatpush1.msra.mxu0 %v2725
  %2768 = vmatprep.subr.mxu0 0.0
  %2769 = vmatpush1.msra.mxu0 %v2724
  %2770 = vmatprep.subr.mxu0 0.0
  %2771 = vmatpush1.msra.mxu0 %v2723
  %2772 = vmatprep.subr.mxu0 0.0
  %2773 = vmatpush2.msra.mxu0 0.0
  %2774 = vmatprep.subr.mxu0 0.0
  %2775 = vmatpush2.msra.mxu0 0.0
  %2776 = vmatprep.subr.mxu0 0.0
  %2777 = vmatpush2.msra.mxu0 0.0
  %2778 = vmatprep.subr.mxu0 0.0
  %2779 = vmatpush2.msra.mxu0 0.0
  %2780 = vmatprep.subr.mxu0 0.0
  %2781 = vmatpush2.msra.mxu0 0.0
  %2782 = vmatprep.subr.mxu0 0.0
  %2783 = vmatpush2.msra.mxu0 0.0
  %2784 = vmatprep.subr.mxu0 0.0
  %2785 = vmatpush2.msra.mxu0 0.0
  %2786 = vmatprep.subr.mxu0 0.0
  %2787 = vmatpush2.msra.mxu0 0.0
  %2788 = vmatprep.subr.mxu0 0.0
  %2789 = vmatpush2.msra.mxu0 0.0
  %2790 = vmatprep.subr.mxu0 0.0
  %2791 = vmatpush2.msra.mxu0 0.0
  %2792 = vmatprep.subr.mxu0 0.0
  %2793 = vmatpush2.msra.mxu0 0.0
  %2794 = vmatprep.subr.mxu0 0.0
  %2795 = vmatpush2.msra.mxu0 0.0
  %2796 = vmatprep.subr.mxu0 0.0
  %2797 = vmatpush2.msra.mxu0 0.0
  %2798 = vmatprep.subr.mxu0 0.0
  %2799 = vmatpush2.msra.mxu0 0.0
  %2800 = vmatprep.subr.mxu0 0.0
  %2801 = vmatpush2.msra.mxu0 0.0
  %2802 = vmatprep.subr.mxu0 0.0
  %2803 = vmatpush2.msra.mxu0 0.0
  %2804 = vmatprep.mubr.f32.mxu0 0.0
  %2805 = vmatmul.mubr.f32.gmra.mxu0 %v2735
  %v2806 = vpop.f32.mrf.mxu0
  %v2807 = vadd.f32 %v2732, %v2806
  %v2808 = vpop.f32.mrf.mxu0
  %2809 = vmatprep.mubr.f32.mxu0 0.0
  %2810 = vmatmul.mubr.f32.gmra.mxu0 %v2738
  %v2811 = vpop.f32.mrf.mxu0
  %v2812 = vadd.f32 %v2732, %v2811
  %v2813 = vpop.f32.mrf.mxu0
  %2814 = vdwg.mxu0
  %v2815 = vadd.f32 %v59, %v2807
  %v2816 = vadd.f32 %v60, %v2812
  %v2817 = vld [vmem:[%s8] sm:$0x1]
  %v2818 = vld [vmem:[%s9] sm:$0x1]
  %v2819 = vsel %vm76, %v2815, 0.0
  %2820 = vadd.xlane.f32.xlu0 %v2819
  %v2821 = vpop.xlane.xlu0 %2820
  %v2822 = vsel %vm76, %v2816, 0.0
  %2823 = vadd.xlane.f32.xlu0 %v2822
  %v2824 = vpop.xlane.xlu0 %2823
  %v2825 = vrcp.pop 32.0
  %v2826 = vmul.f32 %v2821, %v2825
  %v2827 = vmul.f32 %v2824, %v2825
  %v2828 = vsub.f32 %v2815, %v2826
  %v2829 = vsub.f32 %v2816, %v2827
  %v2830 = vmul.f32 %v2828, %v2828
  %v2831 = vmul.f32 %v2829, %v2829
  %v2832 = vsel %vm76, %v2830, 0.0
  %2833 = vadd.xlane.f32.xlu0 %v2832
  %v2834 = vpop.xlane.xlu0 %2833
  %v2835 = vsel %vm76, %v2831, 0.0
  %2836 = vadd.xlane.f32.xlu0 %v2835
  %v2837 = vpop.xlane.xlu0 %2836
  %v2838 = vmul.f32 %v2834, %v2825
  %v2839 = vmul.f32 %v2837, %v2825
  %v2840 = vadd.f32 %v2838, 1e-05
  %v2841 = vadd.f32 %v2839, 1e-05
  %v2842 = vrsqrt.pop %v2840
  %v2843 = vrsqrt.pop %v2841
  %v2844 = vmul.f32 %v2828, %v2842
  %v2845 = vmul.f32 %v2829, %v2843
  %v2847 = vlaneseq
  %v2848 = vshrl.u32 %v2847, 7
  %v2849 = vsub.s32 0, %v2848
  %v2850 = vrot.slane %v2817, %v2849
  %v2852 = vmul.f32 %v2844, %v2850
  %v2853 = vmul.f32 %v2845, %v2850
  %v2855 = vlaneseq
  %v2856 = vshrl.u32 %v2855, 7
  %v2857 = vsub.s32 0, %v2856
  %v2858 = vrot.slane %v2818, %v2857
  %v2860 = vadd.f32 %v2852, %v2858
  %v2861 = vadd.f32 %v2853, %v2858
  %v2862 = vld [vmem:[%s10] sm:$0xff]
  %v2863 = vld [vmem:[%s10 + $0x8] sm:$0xff]
  %v2864 = vld [vmem:[%s10 + $0x10] sm:$0xff]
  %v2865 = vld [vmem:[%s10 + $0x18] sm:$0xff]
  %v2866 = vld [vmem:[%s11] sm:$0x1]
  %v2868 = vlaneseq
  %v2869 = vshrl.u32 %v2868, 7
  %v2870 = vsub.s32 0, %v2869
  %v2871 = vrot.slane %v2866, %v2870
  %v2874 = vsel %vm76, %v2860, 0
  %v2877 = vsel %vm76, %v2861, 0
  %2879 = vmatprep.subr.mxu0 0.0
  %2880 = vmatpush1.msra.mxu0 0.0
  %2881 = vmatprep.subr.mxu0 0.0
  %2882 = vmatpush1.msra.mxu0 0.0
  %2883 = vmatprep.subr.mxu0 0.0
  %2884 = vmatpush1.msra.mxu0 0.0
  %2885 = vmatprep.subr.mxu0 0.0
  %2886 = vmatpush1.msra.mxu0 0.0
  %2887 = vmatprep.subr.mxu0 0.0
  %2888 = vmatpush1.msra.mxu0 0.0
  %2889 = vmatprep.subr.mxu0 0.0
  %2890 = vmatpush1.msra.mxu0 0.0
  %2891 = vmatprep.subr.mxu0 0.0
  %2892 = vmatpush1.msra.mxu0 0.0
  %2893 = vmatprep.subr.mxu0 0.0
  %2894 = vmatpush1.msra.mxu0 0.0
  %2895 = vmatprep.subr.mxu0 0.0
  %2896 = vmatpush1.msra.mxu0 0.0
  %2897 = vmatprep.subr.mxu0 0.0
  %2898 = vmatpush1.msra.mxu0 0.0
  %2899 = vmatprep.subr.mxu0 0.0
  %2900 = vmatpush1.msra.mxu0 0.0
  %2901 = vmatprep.subr.mxu0 0.0
  %2902 = vmatpush1.msra.mxu0 0.0
  %2903 = vmatprep.subr.mxu0 0.0
  %2904 = vmatpush1.msra.mxu0 %v2865
  %2905 = vmatprep.subr.mxu0 0.0
  %2906 = vmatpush1.msra.mxu0 %v2864
  %2907 = vmatprep.subr.mxu0 0.0
  %2908 = vmatpush1.msra.mxu0 %v2863
  %2909 = vmatprep.subr.mxu0 0.0
  %2910 = vmatpush1.msra.mxu0 %v2862
  %2911 = vmatprep.subr.mxu0 0.0
  %2912 = vmatpush2.msra.mxu0 0.0
  %2913 = vmatprep.subr.mxu0 0.0
  %2914 = vmatpush2.msra.mxu0 0.0
  %2915 = vmatprep.subr.mxu0 0.0
  %2916 = vmatpush2.msra.mxu0 0.0
  %2917 = vmatprep.subr.mxu0 0.0
  %2918 = vmatpush2.msra.mxu0 0.0
  %2919 = vmatprep.subr.mxu0 0.0
  %2920 = vmatpush2.msra.mxu0 0.0
  %2921 = vmatprep.subr.mxu0 0.0
  %2922 = vmatpush2.msra.mxu0 0.0
  %2923 = vmatprep.subr.mxu0 0.0
  %2924 = vmatpush2.msra.mxu0 0.0
  %2925 = vmatprep.subr.mxu0 0.0
  %2926 = vmatpush2.msra.mxu0 0.0
  %2927 = vmatprep.subr.mxu0 0.0
  %2928 = vmatpush2.msra.mxu0 0.0
  %2929 = vmatprep.subr.mxu0 0.0
  %2930 = vmatpush2.msra.mxu0 0.0
  %2931 = vmatprep.subr.mxu0 0.0
  %2932 = vmatpush2.msra.mxu0 0.0
  %2933 = vmatprep.subr.mxu0 0.0
  %2934 = vmatpush2.msra.mxu0 0.0
  %2935 = vmatprep.subr.mxu0 0.0
  %2936 = vmatpush2.msra.mxu0 0.0
  %2937 = vmatprep.subr.mxu0 0.0
  %2938 = vmatpush2.msra.mxu0 0.0
  %2939 = vmatprep.subr.mxu0 0.0
  %2940 = vmatpush2.msra.mxu0 0.0
  %2941 = vmatprep.subr.mxu0 0.0
  %2942 = vmatpush2.msra.mxu0 0.0
  %2943 = vmatprep.mubr.f32.mxu0 0.0
  %2944 = vmatmul.mubr.f32.gmra.mxu0 %v2874
  %v2945 = vpop.f32.mrf.mxu0
  %v2946 = vadd.f32 %v2871, %v2945
  %v2947 = vpop.f32.mrf.mxu0
  %2948 = vmatprep.mubr.f32.mxu0 0.0
  %2949 = vmatmul.mubr.f32.gmra.mxu0 %v2877
  %v2950 = vpop.f32.mrf.mxu0
  %v2951 = vadd.f32 %v2871, %v2950
  %v2952 = vpop.f32.mrf.mxu0
  %2953 = vdwg.mxu0
  %v2954 = vmax.f32 %v2946, 0.0
  %v2955 = vmax.f32 %v2951, 0.0
  %v2956 = vld [vmem:[%s12] sm:$0xff]
  %v2957 = vld [vmem:[%s12 + $0x8] sm:$0xff]
  %v2958 = vld [vmem:[%s12 + $0x10] sm:$0xff]
  %v2959 = vld [vmem:[%s12 + $0x18] sm:$0xff]
  %v2960 = vld [vmem:[%s12 + $0x20] sm:$0xff]
  %v2961 = vld [vmem:[%s12 + $0x28] sm:$0xff]
  %v2962 = vld [vmem:[%s12 + $0x30] sm:$0xff]
  %v2963 = vld [vmem:[%s12 + $0x38] sm:$0xff]
  %v2964 = vld [vmem:[%s13] sm:$0x1]
  %v2966 = vlaneseq
  %v2967 = vshrl.u32 %v2966, 7
  %v2968 = vsub.s32 0, %v2967
  %v2969 = vrot.slane %v2964, %v2968
  %vm2971 = vcmask 523264
  %v2973 = vsel %vm2971, %v2954, 0
  %v2976 = vsel %vm2971, %v2955, 0
  %2978 = vmatprep.subr.mxu0 0.0
  %2979 = vmatpush1.msra.mxu0 0.0
  %2980 = vmatprep.subr.mxu0 0.0
  %2981 = vmatpush1.msra.mxu0 0.0
  %2982 = vmatprep.subr.mxu0 0.0
  %2983 = vmatpush1.msra.mxu0 0.0
  %2984 = vmatprep.subr.mxu0 0.0
  %2985 = vmatpush1.msra.mxu0 0.0
  %2986 = vmatprep.subr.mxu0 0.0
  %2987 = vmatpush1.msra.mxu0 0.0
  %2988 = vmatprep.subr.mxu0 0.0
  %2989 = vmatpush1.msra.mxu0 0.0
  %2990 = vmatprep.subr.mxu0 0.0
  %2991 = vmatpush1.msra.mxu0 0.0
  %2992 = vmatprep.subr.mxu0 0.0
  %2993 = vmatpush1.msra.mxu0 0.0
  %2994 = vmatprep.subr.mxu0 0.0
  %2995 = vmatpush1.msra.mxu0 %v2963
  %2996 = vmatprep.subr.mxu0 0.0
  %2997 = vmatpush1.msra.mxu0 %v2962
  %2998 = vmatprep.subr.mxu0 0.0
  %2999 = vmatpush1.msra.mxu0 %v2961
  %3000 = vmatprep.subr.mxu0 0.0
  %3001 = vmatpush1.msra.mxu0 %v2960
  %3002 = vmatprep.subr.mxu0 0.0
  %3003 = vmatpush1.msra.mxu0 %v2959
  %3004 = vmatprep.subr.mxu0 0.0
  %3005 = vmatpush1.msra.mxu0 %v2958
  %3006 = vmatprep.subr.mxu0 0.0
  %3007 = vmatpush1.msra.mxu0 %v2957
  %3008 = vmatprep.subr.mxu0 0.0
  %3009 = vmatpush1.msra.mxu0 %v2956
  %3010 = vmatprep.subr.mxu0 0.0
  %3011 = vmatpush2.msra.mxu0 0.0
  %3012 = vmatprep.subr.mxu0 0.0
  %3013 = vmatpush2.msra.mxu0 0.0
  %3014 = vmatprep.subr.mxu0 0.0
  %3015 = vmatpush2.msra.mxu0 0.0
  %3016 = vmatprep.subr.mxu0 0.0
  %3017 = vmatpush2.msra.mxu0 0.0
  %3018 = vmatprep.subr.mxu0 0.0
  %3019 = vmatpush2.msra.mxu0 0.0
  %3020 = vmatprep.subr.mxu0 0.0
  %3021 = vmatpush2.msra.mxu0 0.0
  %3022 = vmatprep.subr.mxu0 0.0
  %3023 = vmatpush2.msra.mxu0 0.0
  %3024 = vmatprep.subr.mxu0 0.0
  %3025 = vmatpush2.msra.mxu0 0.0
  %3026 = vmatprep.subr.mxu0 0.0
  %3027 = vmatpush2.msra.mxu0 0.0
  %3028 = vmatprep.subr.mxu0 0.0
  %3029 = vmatpush2.msra.mxu0 0.0
  %3030 = vmatprep.subr.mxu0 0.0
  %3031 = vmatpush2.msra.mxu0 0.0
  %3032 = vmatprep.subr.mxu0 0.0
  %3033 = vmatpush2.msra.mxu0 0.0
  %3034 = vmatprep.subr.mxu0 0.0
  %3035 = vmatpush2.msra.mxu0 0.0
  %3036 = vmatprep.subr.mxu0 0.0
  %3037 = vmatpush2.msra.mxu0 0.0
  %3038 = vmatprep.subr.mxu0 0.0
  %3039 = vmatpush2.msra.mxu0 0.0
  %3040 = vmatprep.subr.mxu0 0.0
  %3041 = vmatpush2.msra.mxu0 0.0
  %3042 = vmatprep.mubr.f32.mxu0 0.0
  %3043 = vmatmul.mubr.f32.gmra.mxu0 %v2973
  %v3044 = vpop.f32.mrf.mxu0
  %v3045 = vadd.f32 %v2969, %v3044
  %v3046 = vpop.f32.mrf.mxu0
  %3047 = vmatprep.mubr.f32.mxu0 0.0
  %3048 = vmatmul.mubr.f32.gmra.mxu0 %v2976
  %v3049 = vpop.f32.mrf.mxu0
  %v3050 = vadd.f32 %v2969, %v3049
  %v3051 = vpop.f32.mrf.mxu0
  %3052 = vdwg.mxu0
  %v3053 = vadd.f32 %v2860, %v3045
  %v3054 = vadd.f32 %v2861, %v3050
  %v3055 = vld [vmem:[%s14] sm:$0x1]
  %v3056 = vld [vmem:[%s15] sm:$0x1]
  %v3057 = vsel %vm76, %v3053, 0.0
  %3058 = vadd.xlane.f32.xlu0 %v3057
  %v3059 = vpop.xlane.xlu0 %3058
  %v3060 = vsel %vm76, %v3054, 0.0
  %3061 = vadd.xlane.f32.xlu0 %v3060
  %v3062 = vpop.xlane.xlu0 %3061
  %v3063 = vmul.f32 %v3059, %v2825
  %v3064 = vmul.f32 %v3062, %v2825
  %v3065 = vsub.f32 %v3053, %v3063
  %v3066 = vsub.f32 %v3054, %v3064
  %v3067 = vmul.f32 %v3065, %v3065
  %v3068 = vmul.f32 %v3066, %v3066
  %v3069 = vsel %vm76, %v3067, 0.0
  %3070 = vadd.xlane.f32.xlu0 %v3069
  %v3071 = vpop.xlane.xlu0 %3070
  %v3072 = vsel %vm76, %v3068, 0.0
  %3073 = vadd.xlane.f32.xlu0 %v3072
  %v3074 = vpop.xlane.xlu0 %3073
  %v3075 = vmul.f32 %v3071, %v2825
  %v3076 = vmul.f32 %v3074, %v2825
  %v3077 = vadd.f32 %v3075, 1e-05
  %v3078 = vadd.f32 %v3076, 1e-05
  %v3079 = vrsqrt.pop %v3077
  %v3080 = vrsqrt.pop %v3078
  %v3081 = vmul.f32 %v3065, %v3079
  %v3082 = vmul.f32 %v3066, %v3080
  %v3084 = vlaneseq
  %v3085 = vshrl.u32 %v3084, 7
  %v3086 = vsub.s32 0, %v3085
  %v3087 = vrot.slane %v3055, %v3086
  %v3089 = vmul.f32 %v3081, %v3087
  %v3090 = vmul.f32 %v3082, %v3087
  %v3092 = vlaneseq
  %v3093 = vshrl.u32 %v3092, 7
  %v3094 = vsub.s32 0, %v3093
  %v3095 = vrot.slane %v3056, %v3094
  %v3097 = vadd.f32 %v3089, %v3095
  %v3098 = vadd.f32 %v3090, %v3095
  %v3099 = vadd.f32 %v3097, %v61
  %v3100 = vadd.f32 %v3098, %v62
  %s3101 = scalar_lea.vmem %s2, 32
  %v3102 = vld [vmem:[%s3101] sm:$0xff]
  %v3103 = vld [vmem:[%s3101 + $0x8] sm:$0xff]
  %v3104 = vld [vmem:[%s3101 + $0x10] sm:$0xff]
  %v3105 = vld [vmem:[%s3101 + $0x18] sm:$0xff]
  %s3106 = scalar_lea.vmem %s3, 1
  %v3107 = vld [vmem:[%s3106] sm:$0x1]
  %v3109 = vlaneseq
  %v3110 = vshrl.u32 %v3109, 7
  %v3111 = vsub.s32 0, %v3110
  %v3112 = vrot.slane %v3107, %v3111
  %v3115 = vsel %vm76, %v3099, 0
  %v3118 = vsel %vm76, %v3100, 0
  %3120 = vmatprep.subr.mxu0 0.0
  %3121 = vmatpush1.msra.mxu0 0.0
  %3122 = vmatprep.subr.mxu0 0.0
  %3123 = vmatpush1.msra.mxu0 0.0
  %3124 = vmatprep.subr.mxu0 0.0
  %3125 = vmatpush1.msra.mxu0 0.0
  %3126 = vmatprep.subr.mxu0 0.0
  %3127 = vmatpush1.msra.mxu0 0.0
  %3128 = vmatprep.subr.mxu0 0.0
  %3129 = vmatpush1.msra.mxu0 0.0
  %3130 = vmatprep.subr.mxu0 0.0
  %3131 = vmatpush1.msra.mxu0 0.0
  %3132 = vmatprep.subr.mxu0 0.0
  %3133 = vmatpush1.msra.mxu0 0.0
  %3134 = vmatprep.subr.mxu0 0.0
  %3135 = vmatpush1.msra.mxu0 0.0
  %3136 = vmatprep.subr.mxu0 0.0
  %3137 = vmatpush1.msra.mxu0 0.0
  %3138 = vmatprep.subr.mxu0 0.0
  %3139 = vmatpush1.msra.mxu0 0.0
  %3140 = vmatprep.subr.mxu0 0.0
  %3141 = vmatpush1.msra.mxu0 0.0
  %3142 = vmatprep.subr.mxu0 0.0
  %3143 = vmatpush1.msra.mxu0 0.0
  %3144 = vmatprep.subr.mxu0 0.0
  %3145 = vmatpush1.msra.mxu0 %v3105
  %3146 = vmatprep.subr.mxu0 0.0
  %3147 = vmatpush1.msra.mxu0 %v3104
  %3148 = vmatprep.subr.mxu0 0.0
  %3149 = vmatpush1.msra.mxu0 %v3103
  %3150 = vmatprep.subr.mxu0 0.0
  %3151 = vmatpush1.msra.mxu0 %v3102
  %3152 = vmatprep.subr.mxu0 0.0
  %3153 = vmatpush2.msra.mxu0 0.0
  %3154 = vmatprep.subr.mxu0 0.0
  %3155 = vmatpush2.msra.mxu0 0.0
  %3156 = vmatprep.subr.mxu0 0.0
  %3157 = vmatpush2.msra.mxu0 0.0
  %3158 = vmatprep.subr.mxu0 0.0
  %3159 = vmatpush2.msra.mxu0 0.0
  %3160 = vmatprep.subr.mxu0 0.0
  %3161 = vmatpush2.msra.mxu0 0.0
  %3162 = vmatprep.subr.mxu0 0.0
  %3163 = vmatpush2.msra.mxu0 0.0
  %3164 = vmatprep.subr.mxu0 0.0
  %3165 = vmatpush2.msra.mxu0 0.0
  %3166 = vmatprep.subr.mxu0 0.0
  %3167 = vmatpush2.msra.mxu0 0.0
  %3168 = vmatprep.subr.mxu0 0.0
  %3169 = vmatpush2.msra.mxu0 0.0
  %3170 = vmatprep.subr.mxu0 0.0
  %3171 = vmatpush2.msra.mxu0 0.0
  %3172 = vmatprep.subr.mxu0 0.0
  %3173 = vmatpush2.msra.mxu0 0.0
  %3174 = vmatprep.subr.mxu0 0.0
  %3175 = vmatpush2.msra.mxu0 0.0
  %3176 = vmatprep.subr.mxu0 0.0
  %3177 = vmatpush2.msra.mxu0 0.0
  %3178 = vmatprep.subr.mxu0 0.0
  %3179 = vmatpush2.msra.mxu0 0.0
  %3180 = vmatprep.subr.mxu0 0.0
  %3181 = vmatpush2.msra.mxu0 0.0
  %3182 = vmatprep.subr.mxu0 0.0
  %3183 = vmatpush2.msra.mxu0 0.0
  %3184 = vmatprep.mubr.f32.mxu0 0.0
  %3185 = vmatmul.mubr.f32.gmra.mxu0 %v3115
  %v3186 = vpop.f32.mrf.mxu0
  %v3187 = vadd.f32 %v3112, %v3186
  %v3188 = vpop.f32.mrf.mxu0
  %3189 = vmatprep.mubr.f32.mxu0 0.0
  %3190 = vmatmul.mubr.f32.gmra.mxu0 %v3118
  %v3191 = vpop.f32.mrf.mxu0
  %v3192 = vadd.f32 %v3112, %v3191
  %v3193 = vpop.f32.mrf.mxu0
  %3194 = vdwg.mxu0
  %s3195 = scalar_lea.vmem %s4, 32
  %v3196 = vld [vmem:[%s3195] sm:$0xff]
  %v3197 = vld [vmem:[%s3195 + $0x8] sm:$0xff]
  %v3198 = vld [vmem:[%s3195 + $0x10] sm:$0xff]
  %v3199 = vld [vmem:[%s3195 + $0x18] sm:$0xff]
  %s3200 = scalar_lea.vmem %s5, 1
  %v3201 = vld [vmem:[%s3200] sm:$0x1]
  %v3203 = vlaneseq
  %v3204 = vshrl.u32 %v3203, 7
  %v3205 = vsub.s32 0, %v3204
  %v3206 = vrot.slane %v3201, %v3205
  %v3209 = vsel %vm76, %v3097, 0
  %v3212 = vsel %vm76, %v3098, 0
  %3214 = vmatprep.subr.mxu0 0.0
  %3215 = vmatpush1.msra.mxu0 0.0
  %3216 = vmatprep.subr.mxu0 0.0
  %3217 = vmatpush1.msra.mxu0 0.0
  %3218 = vmatprep.subr.mxu0 0.0
  %3219 = vmatpush1.msra.mxu0 0.0
  %3220 = vmatprep.subr.mxu0 0.0
  %3221 = vmatpush1.msra.mxu0 0.0
  %3222 = vmatprep.subr.mxu0 0.0
  %3223 = vmatpush1.msra.mxu0 0.0
  %3224 = vmatprep.subr.mxu0 0.0
  %3225 = vmatpush1.msra.mxu0 0.0
  %3226 = vmatprep.subr.mxu0 0.0
  %3227 = vmatpush1.msra.mxu0 0.0
  %3228 = vmatprep.subr.mxu0 0.0
  %3229 = vmatpush1.msra.mxu0 0.0
  %3230 = vmatprep.subr.mxu0 0.0
  %3231 = vmatpush1.msra.mxu0 0.0
  %3232 = vmatprep.subr.mxu0 0.0
  %3233 = vmatpush1.msra.mxu0 0.0
  %3234 = vmatprep.subr.mxu0 0.0
  %3235 = vmatpush1.msra.mxu0 0.0
  %3236 = vmatprep.subr.mxu0 0.0
  %3237 = vmatpush1.msra.mxu0 0.0
  %3238 = vmatprep.subr.mxu0 0.0
  %3239 = vmatpush1.msra.mxu0 %v3199
  %3240 = vmatprep.subr.mxu0 0.0
  %3241 = vmatpush1.msra.mxu0 %v3198
  %3242 = vmatprep.subr.mxu0 0.0
  %3243 = vmatpush1.msra.mxu0 %v3197
  %3244 = vmatprep.subr.mxu0 0.0
  %3245 = vmatpush1.msra.mxu0 %v3196
  %3246 = vmatprep.subr.mxu0 0.0
  %3247 = vmatpush2.msra.mxu0 0.0
  %3248 = vmatprep.subr.mxu0 0.0
  %3249 = vmatpush2.msra.mxu0 0.0
  %3250 = vmatprep.subr.mxu0 0.0
  %3251 = vmatpush2.msra.mxu0 0.0
  %3252 = vmatprep.subr.mxu0 0.0
  %3253 = vmatpush2.msra.mxu0 0.0
  %3254 = vmatprep.subr.mxu0 0.0
  %3255 = vmatpush2.msra.mxu0 0.0
  %3256 = vmatprep.subr.mxu0 0.0
  %3257 = vmatpush2.msra.mxu0 0.0
  %3258 = vmatprep.subr.mxu0 0.0
  %3259 = vmatpush2.msra.mxu0 0.0
  %3260 = vmatprep.subr.mxu0 0.0
  %3261 = vmatpush2.msra.mxu0 0.0
  %3262 = vmatprep.subr.mxu0 0.0
  %3263 = vmatpush2.msra.mxu0 0.0
  %3264 = vmatprep.subr.mxu0 0.0
  %3265 = vmatpush2.msra.mxu0 0.0
  %3266 = vmatprep.subr.mxu0 0.0
  %3267 = vmatpush2.msra.mxu0 0.0
  %3268 = vmatprep.subr.mxu0 0.0
  %3269 = vmatpush2.msra.mxu0 0.0
  %3270 = vmatprep.subr.mxu0 0.0
  %3271 = vmatpush2.msra.mxu0 0.0
  %3272 = vmatprep.subr.mxu0 0.0
  %3273 = vmatpush2.msra.mxu0 0.0
  %3274 = vmatprep.subr.mxu0 0.0
  %3275 = vmatpush2.msra.mxu0 0.0
  %3276 = vmatprep.subr.mxu0 0.0
  %3277 = vmatpush2.msra.mxu0 0.0
  %3278 = vmatprep.mubr.f32.mxu0 0.0
  %3279 = vmatmul.mubr.f32.gmra.mxu0 %v3209
  %v3280 = vpop.f32.mrf.mxu0
  %v3281 = vadd.f32 %v3206, %v3280
  %v3282 = vpop.f32.mrf.mxu0
  %3283 = vmatprep.mubr.f32.mxu0 0.0
  %3284 = vmatmul.mubr.f32.gmra.mxu0 %v3212
  %v3285 = vpop.f32.mrf.mxu0
  %v3286 = vadd.f32 %v3206, %v3285
  %v3287 = vpop.f32.mrf.mxu0
  %3288 = vdwg.mxu0
  %3291 = vrot.lane.b32.xlu0 %v3187, 120
  %v3292 = vpop.permute.xlu0 %3291
  %3293 = vrot.lane.b32.xlu0 %v3192, 120
  %v3294 = vpop.permute.xlu0 %3293
  %3297 = vrot.lane.b32.xlu0 %v3187, 112
  %v3298 = vpop.permute.xlu0 %3297
  %3299 = vrot.lane.b32.xlu0 %v3192, 112
  %v3300 = vpop.permute.xlu0 %3299
  %3303 = vrot.lane.b32.xlu0 %v3187, 104
  %v3304 = vpop.permute.xlu0 %3303
  %3305 = vrot.lane.b32.xlu0 %v3192, 104
  %v3306 = vpop.permute.xlu0 %3305
  %v3309 = vcombine.low %v3187, %v3298
  %v3310 = vcombine.high %v3187, %v3298
  %v3312 = vunpack.c.l.s4 1983009808
  %v3313 = vunpack.c.0.s8 %v3312
  %v3314 = vlaneseq
  %v3315 = vshrl.u32 %v3314, 7
  %v3316 = vsub.s32 %v3313, %v3315
  %v3317 = vrot.slane %v3309, %v3316
  %v3319 = vunpack.c.l.s4 1983009808
  %v3320 = vunpack.c.0.s8 %v3319
  %v3321 = vlaneseq
  %v3322 = vshrl.u32 %v3321, 7
  %v3323 = vsub.s32 %v3320, %v3322
  %v3324 = vrot.slane %v3310, %v3323
  %v3325 = vcombine.low %v3292, %v3304
  %v3326 = vcombine.high %v3292, %v3304
  %v3328 = vunpack.c.l.s4 1983009808
  %v3329 = vunpack.c.0.s8 %v3328
  %v3330 = vlaneseq
  %v3331 = vshrl.u32 %v3330, 7
  %v3332 = vsub.s32 %v3329, %v3331
  %v3333 = vrot.slane %v3325, %v3332
  %v3335 = vunpack.c.l.s4 1983009808
  %v3336 = vunpack.c.0.s8 %v3335
  %v3337 = vlaneseq
  %v3338 = vshrl.u32 %v3337, 7
  %v3339 = vsub.s32 %v3336, %v3338
  %v3340 = vrot.slane %v3326, %v3339
  %v3341 = vcombine.low %v3317, %v3333
  %v3342 = vcombine.high %v3317, %v3333
  %v3344 = vunpack.c.l.s4 1934713408
  %v3345 = vunpack.c.0.s8 %v3344
  %v3346 = vlaneseq
  %v3347 = vshrl.u32 %v3346, 7
  %v3348 = vsub.s32 %v3345, %v3347
  %v3349 = vrot.slane %v3341, %v3348
  %v3351 = vunpack.c.l.s4 1934713408
  %v3352 = vunpack.c.0.s8 %v3351
  %v3353 = vlaneseq
  %v3354 = vshrl.u32 %v3353, 7
  %v3355 = vsub.s32 %v3352, %v3354
  %v3356 = vrot.slane %v3342, %v3355
  %v3357 = vcombine.low %v3324, %v3340
  %v3358 = vcombine.high %v3324, %v3340
  %v3360 = vunpack.c.l.s4 1934713408
  %v3361 = vunpack.c.0.s8 %v3360
  %v3362 = vlaneseq
  %v3363 = vshrl.u32 %v3362, 7
  %v3364 = vsub.s32 %v3361, %v3363
  %v3365 = vrot.slane %v3357, %v3364
  %v3367 = vunpack.c.l.s4 1934713408
  %v3368 = vunpack.c.0.s8 %v3367
  %v3369 = vlaneseq
  %v3370 = vshrl.u32 %v3369, 7
  %v3371 = vsub.s32 %v3368, %v3370
  %v3372 = vrot.slane %v3358, %v3371
  %v3373 = vcombine.high %v3349, 0.0
  %v3374 = vcombine.high %v3356, 0.0
  %v3375 = vcombine.high %v3365, 0.0
  %v3376 = vcombine.high %v3372, 0.0
  %v3377 = vcombine.low %v3192, %v3300
  %v3378 = vcombine.high %v3192, %v3300
  %v3380 = vunpack.c.l.s4 1983009808
  %v3381 = vunpack.c.0.s8 %v3380
  %v3382 = vlaneseq
  %v3383 = vshrl.u32 %v3382, 7
  %v3384 = vsub.s32 %v3381, %v3383
  %v3385 = vrot.slane %v3377, %v3384
  %v3387 = vunpack.c.l.s4 1983009808
  %v3388 = vunpack.c.0.s8 %v3387
  %v3389 = vlaneseq
  %v3390 = vshrl.u32 %v3389, 7
  %v3391 = vsub.s32 %v3388, %v3390
  %v3392 = vrot.slane %v3378, %v3391
  %v3393 = vcombine.low %v3294, %v3306
  %v3394 = vcombine.high %v3294, %v3306
  %v3396 = vunpack.c.l.s4 1983009808
  %v3397 = vunpack.c.0.s8 %v3396
  %v3398 = vlaneseq
  %v3399 = vshrl.u32 %v3398, 7
  %v3400 = vsub.s32 %v3397, %v3399
  %v3401 = vrot.slane %v3393, %v3400
  %v3403 = vunpack.c.l.s4 1983009808
  %v3404 = vunpack.c.0.s8 %v3403
  %v3405 = vlaneseq
  %v3406 = vshrl.u32 %v3405, 7
  %v3407 = vsub.s32 %v3404, %v3406
  %v3408 = vrot.slane %v3394, %v3407
  %v3409 = vcombine.low %v3385, %v3401
  %v3410 = vcombine.high %v3385, %v3401
  %v3412 = vunpack.c.l.s4 1934713408
  %v3413 = vunpack.c.0.s8 %v3412
  %v3414 = vlaneseq
  %v3415 = vshrl.u32 %v3414, 7
  %v3416 = vsub.s32 %v3413, %v3415
  %v3417 = vrot.slane %v3409, %v3416
  %v3419 = vunpack.c.l.s4 1934713408
  %v3420 = vunpack.c.0.s8 %v3419
  %v3421 = vlaneseq
  %v3422 = vshrl.u32 %v3421, 7
  %v3423 = vsub.s32 %v3420, %v3422
  %v3424 = vrot.slane %v3410, %v3423
  %v3425 = vcombine.low %v3392, %v3408
  %v3426 = vcombine.high %v3392, %v3408
  %v3428 = vunpack.c.l.s4 1934713408
  %v3429 = vunpack.c.0.s8 %v3428
  %v3430 = vlaneseq
  %v3431 = vshrl.u32 %v3430, 7
  %v3432 = vsub.s32 %v3429, %v3431
  %v3433 = vrot.slane %v3425, %v3432
  %v3435 = vunpack.c.l.s4 1934713408
  %v3436 = vunpack.c.0.s8 %v3435
  %v3437 = vlaneseq
  %v3438 = vshrl.u32 %v3437, 7
  %v3439 = vsub.s32 %v3436, %v3438
  %v3440 = vrot.slane %v3426, %v3439
  %v3441 = vcombine.high %v3417, 0.0
  %v3442 = vcombine.high %v3424, 0.0
  %v3443 = vcombine.high %v3433, 0.0
  %v3444 = vcombine.high %v3440, 0.0
  %v3445 = vcombine.low %v3349, %v3356
  %v3447 = vunpack.c.l.s4 1983009808
  %v3448 = vunpack.c.0.s8 %v3447
  %v3449 = vlaneseq
  %v3450 = vshrl.u32 %v3449, 7
  %v3451 = vsub.s32 %v3448, %v3450
  %v3452 = vrot.slane %v3445, %v3451
  %v3453 = vcombine.low %v3373, %v3374
  %v3455 = vunpack.c.l.s4 1983009808
  %v3456 = vunpack.c.0.s8 %v3455
  %v3457 = vlaneseq
  %v3458 = vshrl.u32 %v3457, 7
  %v3459 = vsub.s32 %v3456, %v3458
  %v3460 = vrot.slane %v3453, %v3459
  %v3461 = vcombine.low %v3365, %v3372
  %v3463 = vunpack.c.l.s4 1983009808
  %v3464 = vunpack.c.0.s8 %v3463
  %v3465 = vlaneseq
  %v3466 = vshrl.u32 %v3465, 7
  %v3467 = vsub.s32 %v3464, %v3466
  %v3468 = vrot.slane %v3461, %v3467
  %v3469 = vcombine.low %v3375, %v3376
  %v3471 = vunpack.c.l.s4 1983009808
  %v3472 = vunpack.c.0.s8 %v3471
  %v3473 = vlaneseq
  %v3474 = vshrl.u32 %v3473, 7
  %v3475 = vsub.s32 %v3472, %v3474
  %v3476 = vrot.slane %v3469, %v3475
  %v3477 = vcombine.low %v3452, %v3460
  %v3478 = vcombine.high %v3452, %v3460
  %v3480 = vunpack.c.l.s4 1934713408
  %v3481 = vunpack.c.0.s8 %v3480
  %v3482 = vlaneseq
  %v3483 = vshrl.u32 %v3482, 7
  %v3484 = vsub.s32 %v3481, %v3483
  %v3485 = vrot.slane %v3477, %v3484
  %v3487 = vunpack.c.l.s4 1934713408
  %v3488 = vunpack.c.0.s8 %v3487
  %v3489 = vlaneseq
  %v3490 = vshrl.u32 %v3489, 7
  %v3491 = vsub.s32 %v3488, %v3490
  %v3492 = vrot.slane %v3478, %v3491
  %v3493 = vcombine.low %v3468, %v3476
  %v3494 = vcombine.high %v3468, %v3476
  %v3496 = vunpack.c.l.s4 1934713408
  %v3497 = vunpack.c.0.s8 %v3496
  %v3498 = vlaneseq
  %v3499 = vshrl.u32 %v3498, 7
  %v3500 = vsub.s32 %v3497, %v3499
  %v3501 = vrot.slane %v3493, %v3500
  %v3503 = vunpack.c.l.s4 1934713408
  %v3504 = vunpack.c.0.s8 %v3503
  %v3505 = vlaneseq
  %v3506 = vshrl.u32 %v3505, 7
  %v3507 = vsub.s32 %v3504, %v3506
  %v3508 = vrot.slane %v3494, %v3507
  %v3509 = vcombine.low %v3485, %v3501
  %v3510 = vcombine.high %v3485, %v3501
  %v3511 = vcombine.low %v3492, %v3508
  %v3512 = vcombine.high %v3492, %v3508
  %v3513 = vcombine.low %v3417, %v3424
  %v3515 = vunpack.c.l.s4 1983009808
  %v3516 = vunpack.c.0.s8 %v3515
  %v3517 = vlaneseq
  %v3518 = vshrl.u32 %v3517, 7
  %v3519 = vsub.s32 %v3516, %v3518
  %v3520 = vrot.slane %v3513, %v3519
  %v3521 = vcombine.low %v3441, %v3442
  %v3523 = vunpack.c.l.s4 1983009808
  %v3524 = vunpack.c.0.s8 %v3523
  %v3525 = vlaneseq
  %v3526 = vshrl.u32 %v3525, 7
  %v3527 = vsub.s32 %v3524, %v3526
  %v3528 = vrot.slane %v3521, %v3527
  %v3529 = vcombine.low %v3433, %v3440
  %v3531 = vunpack.c.l.s4 1983009808
  %v3532 = vunpack.c.0.s8 %v3531
  %v3533 = vlaneseq
  %v3534 = vshrl.u32 %v3533, 7
  %v3535 = vsub.s32 %v3532, %v3534
  %v3536 = vrot.slane %v3529, %v3535
  %v3537 = vcombine.low %v3443, %v3444
  %v3539 = vunpack.c.l.s4 1983009808
  %v3540 = vunpack.c.0.s8 %v3539
  %v3541 = vlaneseq
  %v3542 = vshrl.u32 %v3541, 7
  %v3543 = vsub.s32 %v3540, %v3542
  %v3544 = vrot.slane %v3537, %v3543
  %v3545 = vcombine.low %v3520, %v3528
  %v3546 = vcombine.high %v3520, %v3528
  %v3548 = vunpack.c.l.s4 1934713408
  %v3549 = vunpack.c.0.s8 %v3548
  %v3550 = vlaneseq
  %v3551 = vshrl.u32 %v3550, 7
  %v3552 = vsub.s32 %v3549, %v3551
  %v3553 = vrot.slane %v3545, %v3552
  %v3555 = vunpack.c.l.s4 1934713408
  %v3556 = vunpack.c.0.s8 %v3555
  %v3557 = vlaneseq
  %v3558 = vshrl.u32 %v3557, 7
  %v3559 = vsub.s32 %v3556, %v3558
  %v3560 = vrot.slane %v3546, %v3559
  %v3561 = vcombine.low %v3536, %v3544
  %v3562 = vcombine.high %v3536, %v3544
  %v3564 = vunpack.c.l.s4 1934713408
  %v3565 = vunpack.c.0.s8 %v3564
  %v3566 = vlaneseq
  %v3567 = vshrl.u32 %v3566, 7
  %v3568 = vsub.s32 %v3565, %v3567
  %v3569 = vrot.slane %v3561, %v3568
  %v3571 = vunpack.c.l.s4 1934713408
  %v3572 = vunpack.c.0.s8 %v3571
  %v3573 = vlaneseq
  %v3574 = vshrl.u32 %v3573, 7
  %v3575 = vsub.s32 %v3572, %v3574
  %v3576 = vrot.slane %v3562, %v3575
  %v3577 = vcombine.low %v3553, %v3569
  %v3578 = vcombine.high %v3553, %v3569
  %v3579 = vcombine.low %v3560, %v3576
  %v3580 = vcombine.high %v3560, %v3576
  %3581 = vrot.lane.b32.xlu0 %v3187, 96
  %v3582 = vpop.permute.xlu0 %3581
  %3583 = vrot.lane.b32.xlu0 %v3192, 96
  %v3584 = vpop.permute.xlu0 %3583
  %3585 = vrot.lane.b32.xlu0 %v3292, 96
  %v3586 = vpop.permute.xlu0 %3585
  %3587 = vrot.lane.b32.xlu0 %v3294, 96
  %v3588 = vpop.permute.xlu0 %3587
  %3589 = vrot.lane.b32.xlu0 %v3298, 96
  %v3590 = vpop.permute.xlu0 %3589
  %3591 = vrot.lane.b32.xlu0 %v3300, 96
  %v3592 = vpop.permute.xlu0 %3591
  %3593 = vrot.lane.b32.xlu0 %v3304, 96
  %v3594 = vpop.permute.xlu0 %3593
  %3595 = vrot.lane.b32.xlu0 %v3306, 96
  %v3596 = vpop.permute.xlu0 %3595
  %v3605 = vcombine.low %v3582, %v3590
  %v3606 = vcombine.high %v3582, %v3590
  %v3608 = vunpack.c.l.s4 1983009808
  %v3609 = vunpack.c.0.s8 %v3608
  %v3610 = vlaneseq
  %v3611 = vshrl.u32 %v3610, 7
  %v3612 = vsub.s32 %v3609, %v3611
  %v3613 = vrot.slane %v3605, %v3612
  %v3615 = vunpack.c.l.s4 1983009808
  %v3616 = vunpack.c.0.s8 %v3615
  %v3617 = vlaneseq
  %v3618 = vshrl.u32 %v3617, 7
  %v3619 = vsub.s32 %v3616, %v3618
  %v3620 = vrot.slane %v3606, %v3619
  %v3621 = vcombine.low %v3586, %v3594
  %v3622 = vcombine.high %v3586, %v3594
  %v3624 = vunpack.c.l.s4 1983009808
  %v3625 = vunpack.c.0.s8 %v3624
  %v3626 = vlaneseq
  %v3627 = vshrl.u32 %v3626, 7
  %v3628 = vsub.s32 %v3625, %v3627
  %v3629 = vrot.slane %v3621, %v3628
  %v3631 = vunpack.c.l.s4 1983009808
  %v3632 = vunpack.c.0.s8 %v3631
  %v3633 = vlaneseq
  %v3634 = vshrl.u32 %v3633, 7
  %v3635 = vsub.s32 %v3632, %v3634
  %v3636 = vrot.slane %v3622, %v3635
  %v3637 = vcombine.low %v3613, %v3629
  %v3638 = vcombine.high %v3613, %v3629
  %v3640 = vunpack.c.l.s4 1934713408
  %v3641 = vunpack.c.0.s8 %v3640
  %v3642 = vlaneseq
  %v3643 = vshrl.u32 %v3642, 7
  %v3644 = vsub.s32 %v3641, %v3643
  %v3645 = vrot.slane %v3637, %v3644
  %v3647 = vunpack.c.l.s4 1934713408
  %v3648 = vunpack.c.0.s8 %v3647
  %v3649 = vlaneseq
  %v3650 = vshrl.u32 %v3649, 7
  %v3651 = vsub.s32 %v3648, %v3650
  %v3652 = vrot.slane %v3638, %v3651
  %v3653 = vcombine.low %v3620, %v3636
  %v3654 = vcombine.high %v3620, %v3636
  %v3656 = vunpack.c.l.s4 1934713408
  %v3657 = vunpack.c.0.s8 %v3656
  %v3658 = vlaneseq
  %v3659 = vshrl.u32 %v3658, 7
  %v3660 = vsub.s32 %v3657, %v3659
  %v3661 = vrot.slane %v3653, %v3660
  %v3663 = vunpack.c.l.s4 1934713408
  %v3664 = vunpack.c.0.s8 %v3663
  %v3665 = vlaneseq
  %v3666 = vshrl.u32 %v3665, 7
  %v3667 = vsub.s32 %v3664, %v3666
  %v3668 = vrot.slane %v3654, %v3667
  %v3669 = vcombine.high %v3645, 0.0
  %v3670 = vcombine.high %v3652, 0.0
  %v3671 = vcombine.high %v3661, 0.0
  %v3672 = vcombine.high %v3668, 0.0
  %v3673 = vcombine.low %v3584, %v3592
  %v3674 = vcombine.high %v3584, %v3592
  %v3676 = vunpack.c.l.s4 1983009808
  %v3677 = vunpack.c.0.s8 %v3676
  %v3678 = vlaneseq
  %v3679 = vshrl.u32 %v3678, 7
  %v3680 = vsub.s32 %v3677, %v3679
  %v3681 = vrot.slane %v3673, %v3680
  %v3683 = vunpack.c.l.s4 1983009808
  %v3684 = vunpack.c.0.s8 %v3683
  %v3685 = vlaneseq
  %v3686 = vshrl.u32 %v3685, 7
  %v3687 = vsub.s32 %v3684, %v3686
  %v3688 = vrot.slane %v3674, %v3687
  %v3689 = vcombine.low %v3588, %v3596
  %v3690 = vcombine.high %v3588, %v3596
  %v3692 = vunpack.c.l.s4 1983009808
  %v3693 = vunpack.c.0.s8 %v3692
  %v3694 = vlaneseq
  %v3695 = vshrl.u32 %v3694, 7
  %v3696 = vsub.s32 %v3693, %v3695
  %v3697 = vrot.slane %v3689, %v3696
  %v3699 = vunpack.c.l.s4 1983009808
  %v3700 = vunpack.c.0.s8 %v3699
  %v3701 = vlaneseq
  %v3702 = vshrl.u32 %v3701, 7
  %v3703 = vsub.s32 %v3700, %v3702
  %v3704 = vrot.slane %v3690, %v3703
  %v3705 = vcombine.low %v3681, %v3697
  %v3706 = vcombine.high %v3681, %v3697
  %v3708 = vunpack.c.l.s4 1934713408
  %v3709 = vunpack.c.0.s8 %v3708
  %v3710 = vlaneseq
  %v3711 = vshrl.u32 %v3710, 7
  %v3712 = vsub.s32 %v3709, %v3711
  %v3713 = vrot.slane %v3705, %v3712
  %v3715 = vunpack.c.l.s4 1934713408
  %v3716 = vunpack.c.0.s8 %v3715
  %v3717 = vlaneseq
  %v3718 = vshrl.u32 %v3717, 7
  %v3719 = vsub.s32 %v3716, %v3718
  %v3720 = vrot.slane %v3706, %v3719
  %v3721 = vcombine.low %v3688, %v3704
  %v3722 = vcombine.high %v3688, %v3704
  %v3724 = vunpack.c.l.s4 1934713408
  %v3725 = vunpack.c.0.s8 %v3724
  %v3726 = vlaneseq
  %v3727 = vshrl.u32 %v3726, 7
  %v3728 = vsub.s32 %v3725, %v3727
  %v3729 = vrot.slane %v3721, %v3728
  %v3731 = vunpack.c.l.s4 1934713408
  %v3732 = vunpack.c.0.s8 %v3731
  %v3733 = vlaneseq
  %v3734 = vshrl.u32 %v3733, 7
  %v3735 = vsub.s32 %v3732, %v3734
  %v3736 = vrot.slane %v3722, %v3735
  %v3737 = vcombine.high %v3713, 0.0
  %v3738 = vcombine.high %v3720, 0.0
  %v3739 = vcombine.high %v3729, 0.0
  %v3740 = vcombine.high %v3736, 0.0
  %v3741 = vcombine.low %v3645, %v3652
  %v3743 = vunpack.c.l.s4 1983009808
  %v3744 = vunpack.c.0.s8 %v3743
  %v3745 = vlaneseq
  %v3746 = vshrl.u32 %v3745, 7
  %v3747 = vsub.s32 %v3744, %v3746
  %v3748 = vrot.slane %v3741, %v3747
  %v3749 = vcombine.low %v3669, %v3670
  %v3751 = vunpack.c.l.s4 1983009808
  %v3752 = vunpack.c.0.s8 %v3751
  %v3753 = vlaneseq
  %v3754 = vshrl.u32 %v3753, 7
  %v3755 = vsub.s32 %v3752, %v3754
  %v3756 = vrot.slane %v3749, %v3755
  %v3757 = vcombine.low %v3661, %v3668
  %v3759 = vunpack.c.l.s4 1983009808
  %v3760 = vunpack.c.0.s8 %v3759
  %v3761 = vlaneseq
  %v3762 = vshrl.u32 %v3761, 7
  %v3763 = vsub.s32 %v3760, %v3762
  %v3764 = vrot.slane %v3757, %v3763
  %v3765 = vcombine.low %v3671, %v3672
  %v3767 = vunpack.c.l.s4 1983009808
  %v3768 = vunpack.c.0.s8 %v3767
  %v3769 = vlaneseq
  %v3770 = vshrl.u32 %v3769, 7
  %v3771 = vsub.s32 %v3768, %v3770
  %v3772 = vrot.slane %v3765, %v3771
  %v3773 = vcombine.low %v3748, %v3756
  %v3774 = vcombine.high %v3748, %v3756
  %v3776 = vunpack.c.l.s4 1934713408
  %v3777 = vunpack.c.0.s8 %v3776
  %v3778 = vlaneseq
  %v3779 = vshrl.u32 %v3778, 7
  %v3780 = vsub.s32 %v3777, %v3779
  %v3781 = vrot.slane %v3773, %v3780
  %v3783 = vunpack.c.l.s4 1934713408
  %v3784 = vunpack.c.0.s8 %v3783
  %v3785 = vlaneseq
  %v3786 = vshrl.u32 %v3785, 7
  %v3787 = vsub.s32 %v3784, %v3786
  %v3788 = vrot.slane %v3774, %v3787
  %v3789 = vcombine.low %v3764, %v3772
  %v3790 = vcombine.high %v3764, %v3772
  %v3792 = vunpack.c.l.s4 1934713408
  %v3793 = vunpack.c.0.s8 %v3792
  %v3794 = vlaneseq
  %v3795 = vshrl.u32 %v3794, 7
  %v3796 = vsub.s32 %v3793, %v3795
  %v3797 = vrot.slane %v3789, %v3796
  %v3799 = vunpack.c.l.s4 1934713408
  %v3800 = vunpack.c.0.s8 %v3799
  %v3801 = vlaneseq
  %v3802 = vshrl.u32 %v3801, 7
  %v3803 = vsub.s32 %v3800, %v3802
  %v3804 = vrot.slane %v3790, %v3803
  %v3805 = vcombine.low %v3781, %v3797
  %v3806 = vcombine.high %v3781, %v3797
  %v3807 = vcombine.low %v3788, %v3804
  %v3808 = vcombine.high %v3788, %v3804
  %v3809 = vcombine.low %v3713, %v3720
  %v3811 = vunpack.c.l.s4 1983009808
  %v3812 = vunpack.c.0.s8 %v3811
  %v3813 = vlaneseq
  %v3814 = vshrl.u32 %v3813, 7
  %v3815 = vsub.s32 %v3812, %v3814
  %v3816 = vrot.slane %v3809, %v3815
  %v3817 = vcombine.low %v3737, %v3738
  %v3819 = vunpack.c.l.s4 1983009808
  %v3820 = vunpack.c.0.s8 %v3819
  %v3821 = vlaneseq
  %v3822 = vshrl.u32 %v3821, 7
  %v3823 = vsub.s32 %v3820, %v3822
  %v3824 = vrot.slane %v3817, %v3823
  %v3825 = vcombine.low %v3729, %v3736
  %v3827 = vunpack.c.l.s4 1983009808
  %v3828 = vunpack.c.0.s8 %v3827
  %v3829 = vlaneseq
  %v3830 = vshrl.u32 %v3829, 7
  %v3831 = vsub.s32 %v3828, %v3830
  %v3832 = vrot.slane %v3825, %v3831
  %v3833 = vcombine.low %v3739, %v3740
  %v3835 = vunpack.c.l.s4 1983009808
  %v3836 = vunpack.c.0.s8 %v3835
  %v3837 = vlaneseq
  %v3838 = vshrl.u32 %v3837, 7
  %v3839 = vsub.s32 %v3836, %v3838
  %v3840 = vrot.slane %v3833, %v3839
  %v3841 = vcombine.low %v3816, %v3824
  %v3842 = vcombine.high %v3816, %v3824
  %v3844 = vunpack.c.l.s4 1934713408
  %v3845 = vunpack.c.0.s8 %v3844
  %v3846 = vlaneseq
  %v3847 = vshrl.u32 %v3846, 7
  %v3848 = vsub.s32 %v3845, %v3847
  %v3849 = vrot.slane %v3841, %v3848
  %v3851 = vunpack.c.l.s4 1934713408
  %v3852 = vunpack.c.0.s8 %v3851
  %v3853 = vlaneseq
  %v3854 = vshrl.u32 %v3853, 7
  %v3855 = vsub.s32 %v3852, %v3854
  %v3856 = vrot.slane %v3842, %v3855
  %v3857 = vcombine.low %v3832, %v3840
  %v3858 = vcombine.high %v3832, %v3840
  %v3860 = vunpack.c.l.s4 1934713408
  %v3861 = vunpack.c.0.s8 %v3860
  %v3862 = vlaneseq
  %v3863 = vshrl.u32 %v3862, 7
  %v3864 = vsub.s32 %v3861, %v3863
  %v3865 = vrot.slane %v3857, %v3864
  %v3867 = vunpack.c.l.s4 1934713408
  %v3868 = vunpack.c.0.s8 %v3867
  %v3869 = vlaneseq
  %v3870 = vshrl.u32 %v3869, 7
  %v3871 = vsub.s32 %v3868, %v3870
  %v3872 = vrot.slane %v3858, %v3871
  %v3873 = vcombine.low %v3849, %v3865
  %v3874 = vcombine.high %v3849, %v3865
  %v3875 = vcombine.low %v3856, %v3872
  %v3876 = vcombine.high %v3856, %v3872
  %3879 = vrot.lane.b32.xlu0 %v3281, 120
  %v3880 = vpop.permute.xlu0 %3879
  %3881 = vrot.lane.b32.xlu0 %v3286, 120
  %v3882 = vpop.permute.xlu0 %3881
  %3885 = vrot.lane.b32.xlu0 %v3281, 112
  %v3886 = vpop.permute.xlu0 %3885
  %3887 = vrot.lane.b32.xlu0 %v3286, 112
  %v3888 = vpop.permute.xlu0 %3887
  %3891 = vrot.lane.b32.xlu0 %v3281, 104
  %v3892 = vpop.permute.xlu0 %3891
  %3893 = vrot.lane.b32.xlu0 %v3286, 104
  %v3894 = vpop.permute.xlu0 %3893
  %v3897 = vcombine.low %v3281, %v3886
  %v3898 = vcombine.high %v3281, %v3886
  %v3900 = vunpack.c.l.s4 1983009808
  %v3901 = vunpack.c.0.s8 %v3900
  %v3902 = vlaneseq
  %v3903 = vshrl.u32 %v3902, 7
  %v3904 = vsub.s32 %v3901, %v3903
  %v3905 = vrot.slane %v3897, %v3904
  %v3907 = vunpack.c.l.s4 1983009808
  %v3908 = vunpack.c.0.s8 %v3907
  %v3909 = vlaneseq
  %v3910 = vshrl.u32 %v3909, 7
  %v3911 = vsub.s32 %v3908, %v3910
  %v3912 = vrot.slane %v3898, %v3911
  %v3913 = vcombine.low %v3880, %v3892
  %v3914 = vcombine.high %v3880, %v3892
  %v3916 = vunpack.c.l.s4 1983009808
  %v3917 = vunpack.c.0.s8 %v3916
  %v3918 = vlaneseq
  %v3919 = vshrl.u32 %v3918, 7
  %v3920 = vsub.s32 %v3917, %v3919
  %v3921 = vrot.slane %v3913, %v3920
  %v3923 = vunpack.c.l.s4 1983009808
  %v3924 = vunpack.c.0.s8 %v3923
  %v3925 = vlaneseq
  %v3926 = vshrl.u32 %v3925, 7
  %v3927 = vsub.s32 %v3924, %v3926
  %v3928 = vrot.slane %v3914, %v3927
  %v3929 = vcombine.low %v3905, %v3921
  %v3930 = vcombine.high %v3905, %v3921
  %v3932 = vunpack.c.l.s4 1934713408
  %v3933 = vunpack.c.0.s8 %v3932
  %v3934 = vlaneseq
  %v3935 = vshrl.u32 %v3934, 7
  %v3936 = vsub.s32 %v3933, %v3935
  %v3937 = vrot.slane %v3929, %v3936
  %v3939 = vunpack.c.l.s4 1934713408
  %v3940 = vunpack.c.0.s8 %v3939
  %v3941 = vlaneseq
  %v3942 = vshrl.u32 %v3941, 7
  %v3943 = vsub.s32 %v3940, %v3942
  %v3944 = vrot.slane %v3930, %v3943
  %v3945 = vcombine.low %v3912, %v3928
  %v3946 = vcombine.high %v3912, %v3928
  %v3948 = vunpack.c.l.s4 1934713408
  %v3949 = vunpack.c.0.s8 %v3948
  %v3950 = vlaneseq
  %v3951 = vshrl.u32 %v3950, 7
  %v3952 = vsub.s32 %v3949, %v3951
  %v3953 = vrot.slane %v3945, %v3952
  %v3955 = vunpack.c.l.s4 1934713408
  %v3956 = vunpack.c.0.s8 %v3955
  %v3957 = vlaneseq
  %v3958 = vshrl.u32 %v3957, 7
  %v3959 = vsub.s32 %v3956, %v3958
  %v3960 = vrot.slane %v3946, %v3959
  %v3961 = vcombine.high %v3937, 0.0
  %v3962 = vcombine.high %v3944, 0.0
  %v3963 = vcombine.high %v3953, 0.0
  %v3964 = vcombine.high %v3960, 0.0
  %v3965 = vcombine.low %v3286, %v3888
  %v3966 = vcombine.high %v3286, %v3888
  %v3968 = vunpack.c.l.s4 1983009808
  %v3969 = vunpack.c.0.s8 %v3968
  %v3970 = vlaneseq
  %v3971 = vshrl.u32 %v3970, 7
  %v3972 = vsub.s32 %v3969, %v3971
  %v3973 = vrot.slane %v3965, %v3972
  %v3975 = vunpack.c.l.s4 1983009808
  %v3976 = vunpack.c.0.s8 %v3975
  %v3977 = vlaneseq
  %v3978 = vshrl.u32 %v3977, 7
  %v3979 = vsub.s32 %v3976, %v3978
  %v3980 = vrot.slane %v3966, %v3979
  %v3981 = vcombine.low %v3882, %v3894
  %v3982 = vcombine.high %v3882, %v3894
  %v3984 = vunpack.c.l.s4 1983009808
  %v3985 = vunpack.c.0.s8 %v3984
  %v3986 = vlaneseq
  %v3987 = vshrl.u32 %v3986, 7
  %v3988 = vsub.s32 %v3985, %v3987
  %v3989 = vrot.slane %v3981, %v3988
  %v3991 = vunpack.c.l.s4 1983009808
  %v3992 = vunpack.c.0.s8 %v3991
  %v3993 = vlaneseq
  %v3994 = vshrl.u32 %v3993, 7
  %v3995 = vsub.s32 %v3992, %v3994
  %v3996 = vrot.slane %v3982, %v3995
  %v3997 = vcombine.low %v3973, %v3989
  %v3998 = vcombine.high %v3973, %v3989
  %v4000 = vunpack.c.l.s4 1934713408
  %v4001 = vunpack.c.0.s8 %v4000
  %v4002 = vlaneseq
  %v4003 = vshrl.u32 %v4002, 7
  %v4004 = vsub.s32 %v4001, %v4003
  %v4005 = vrot.slane %v3997, %v4004
  %v4007 = vunpack.c.l.s4 1934713408
  %v4008 = vunpack.c.0.s8 %v4007
  %v4009 = vlaneseq
  %v4010 = vshrl.u32 %v4009, 7
  %v4011 = vsub.s32 %v4008, %v4010
  %v4012 = vrot.slane %v3998, %v4011
  %v4013 = vcombine.low %v3980, %v3996
  %v4014 = vcombine.high %v3980, %v3996
  %v4016 = vunpack.c.l.s4 1934713408
  %v4017 = vunpack.c.0.s8 %v4016
  %v4018 = vlaneseq
  %v4019 = vshrl.u32 %v4018, 7
  %v4020 = vsub.s32 %v4017, %v4019
  %v4021 = vrot.slane %v4013, %v4020
  %v4023 = vunpack.c.l.s4 1934713408
  %v4024 = vunpack.c.0.s8 %v4023
  %v4025 = vlaneseq
  %v4026 = vshrl.u32 %v4025, 7
  %v4027 = vsub.s32 %v4024, %v4026
  %v4028 = vrot.slane %v4014, %v4027
  %v4029 = vcombine.high %v4005, 0.0
  %v4030 = vcombine.high %v4012, 0.0
  %v4031 = vcombine.high %v4021, 0.0
  %v4032 = vcombine.high %v4028, 0.0
  %v4033 = vcombine.low %v3937, %v3944
  %v4035 = vunpack.c.l.s4 1983009808
  %v4036 = vunpack.c.0.s8 %v4035
  %v4037 = vlaneseq
  %v4038 = vshrl.u32 %v4037, 7
  %v4039 = vsub.s32 %v4036, %v4038
  %v4040 = vrot.slane %v4033, %v4039
  %v4041 = vcombine.low %v3961, %v3962
  %v4043 = vunpack.c.l.s4 1983009808
  %v4044 = vunpack.c.0.s8 %v4043
  %v4045 = vlaneseq
  %v4046 = vshrl.u32 %v4045, 7
  %v4047 = vsub.s32 %v4044, %v4046
  %v4048 = vrot.slane %v4041, %v4047
  %v4049 = vcombine.low %v3953, %v3960
  %v4051 = vunpack.c.l.s4 1983009808
  %v4052 = vunpack.c.0.s8 %v4051
  %v4053 = vlaneseq
  %v4054 = vshrl.u32 %v4053, 7
  %v4055 = vsub.s32 %v4052, %v4054
  %v4056 = vrot.slane %v4049, %v4055
  %v4057 = vcombine.low %v3963, %v3964
  %v4059 = vunpack.c.l.s4 1983009808
  %v4060 = vunpack.c.0.s8 %v4059
  %v4061 = vlaneseq
  %v4062 = vshrl.u32 %v4061, 7
  %v4063 = vsub.s32 %v4060, %v4062
  %v4064 = vrot.slane %v4057, %v4063
  %v4065 = vcombine.low %v4040, %v4048
  %v4066 = vcombine.high %v4040, %v4048
  %v4068 = vunpack.c.l.s4 1934713408
  %v4069 = vunpack.c.0.s8 %v4068
  %v4070 = vlaneseq
  %v4071 = vshrl.u32 %v4070, 7
  %v4072 = vsub.s32 %v4069, %v4071
  %v4073 = vrot.slane %v4065, %v4072
  %v4075 = vunpack.c.l.s4 1934713408
  %v4076 = vunpack.c.0.s8 %v4075
  %v4077 = vlaneseq
  %v4078 = vshrl.u32 %v4077, 7
  %v4079 = vsub.s32 %v4076, %v4078
  %v4080 = vrot.slane %v4066, %v4079
  %v4081 = vcombine.low %v4056, %v4064
  %v4082 = vcombine.high %v4056, %v4064
  %v4084 = vunpack.c.l.s4 1934713408
  %v4085 = vunpack.c.0.s8 %v4084
  %v4086 = vlaneseq
  %v4087 = vshrl.u32 %v4086, 7
  %v4088 = vsub.s32 %v4085, %v4087
  %v4089 = vrot.slane %v4081, %v4088
  %v4091 = vunpack.c.l.s4 1934713408
  %v4092 = vunpack.c.0.s8 %v4091
  %v4093 = vlaneseq
  %v4094 = vshrl.u32 %v4093, 7
  %v4095 = vsub.s32 %v4092, %v4094
  %v4096 = vrot.slane %v4082, %v4095
  %v4097 = vcombine.low %v4073, %v4089
  %v4098 = vcombine.high %v4073, %v4089
  %v4099 = vcombine.low %v4080, %v4096
  %v4100 = vcombine.high %v4080, %v4096
  %v4101 = vcombine.low %v4005, %v4012
  %v4103 = vunpack.c.l.s4 1983009808
  %v4104 = vunpack.c.0.s8 %v4103
  %v4105 = vlaneseq
  %v4106 = vshrl.u32 %v4105, 7
  %v4107 = vsub.s32 %v4104, %v4106
  %v4108 = vrot.slane %v4101, %v4107
  %v4109 = vcombine.low %v4029, %v4030
  %v4111 = vunpack.c.l.s4 1983009808
  %v4112 = vunpack.c.0.s8 %v4111
  %v4113 = vlaneseq
  %v4114 = vshrl.u32 %v4113, 7
  %v4115 = vsub.s32 %v4112, %v4114
  %v4116 = vrot.slane %v4109, %v4115
  %v4117 = vcombine.low %v4021, %v4028
  %v4119 = vunpack.c.l.s4 1983009808
  %v4120 = vunpack.c.0.s8 %v4119
  %v4121 = vlaneseq
  %v4122 = vshrl.u32 %v4121, 7
  %v4123 = vsub.s32 %v4120, %v4122
  %v4124 = vrot.slane %v4117, %v4123
  %v4125 = vcombine.low %v4031, %v4032
  %v4127 = vunpack.c.l.s4 1983009808
  %v4128 = vunpack.c.0.s8 %v4127
  %v4129 = vlaneseq
  %v4130 = vshrl.u32 %v4129, 7
  %v4131 = vsub.s32 %v4128, %v4130
  %v4132 = vrot.slane %v4125, %v4131
  %v4133 = vcombine.low %v4108, %v4116
  %v4134 = vcombine.high %v4108, %v4116
  %v4136 = vunpack.c.l.s4 1934713408
  %v4137 = vunpack.c.0.s8 %v4136
  %v4138 = vlaneseq
  %v4139 = vshrl.u32 %v4138, 7
  %v4140 = vsub.s32 %v4137, %v4139
  %v4141 = vrot.slane %v4133, %v4140
  %v4143 = vunpack.c.l.s4 1934713408
  %v4144 = vunpack.c.0.s8 %v4143
  %v4145 = vlaneseq
  %v4146 = vshrl.u32 %v4145, 7
  %v4147 = vsub.s32 %v4144, %v4146
  %v4148 = vrot.slane %v4134, %v4147
  %v4149 = vcombine.low %v4124, %v4132
  %v4150 = vcombine.high %v4124, %v4132
  %v4152 = vunpack.c.l.s4 1934713408
  %v4153 = vunpack.c.0.s8 %v4152
  %v4154 = vlaneseq
  %v4155 = vshrl.u32 %v4154, 7
  %v4156 = vsub.s32 %v4153, %v4155
  %v4157 = vrot.slane %v4149, %v4156
  %v4159 = vunpack.c.l.s4 1934713408
  %v4160 = vunpack.c.0.s8 %v4159
  %v4161 = vlaneseq
  %v4162 = vshrl.u32 %v4161, 7
  %v4163 = vsub.s32 %v4160, %v4162
  %v4164 = vrot.slane %v4150, %v4163
  %v4165 = vcombine.low %v4141, %v4157
  %v4166 = vcombine.high %v4141, %v4157
  %v4167 = vcombine.low %v4148, %v4164
  %v4168 = vcombine.high %v4148, %v4164
  %v4170 = vsel %vm1130, %v3509, 0
  %v4173 = vsel %vm1130, %v3805, 0
  %4175 = vmatprep.subr.mxu0 0.0
  %4176 = vmatpush1.xpose.msra.mxu0 0.0
  %4177 = vmatprep.subr.mxu0 0.0
  %4178 = vmatpush1.xpose.msra.mxu0 0.0
  %4179 = vmatprep.subr.mxu0 0.0
  %4180 = vmatpush1.xpose.msra.mxu0 0.0
  %4181 = vmatprep.subr.mxu0 0.0
  %4182 = vmatpush1.xpose.msra.mxu0 0.0
  %4183 = vmatprep.subr.mxu0 0.0
  %4184 = vmatpush1.xpose.msra.mxu0 0.0
  %4185 = vmatprep.subr.mxu0 0.0
  %4186 = vmatpush1.xpose.msra.mxu0 0.0
  %4187 = vmatprep.subr.mxu0 0.0
  %4188 = vmatpush1.xpose.msra.mxu0 0.0
  %4189 = vmatprep.subr.mxu0 0.0
  %4190 = vmatpush1.xpose.msra.mxu0 0.0
  %4191 = vmatprep.subr.mxu0 0.0
  %4192 = vmatpush1.xpose.msra.mxu0 0.0
  %4193 = vmatprep.subr.mxu0 0.0
  %4194 = vmatpush1.xpose.msra.mxu0 0.0
  %4195 = vmatprep.subr.mxu0 0.0
  %4196 = vmatpush1.xpose.msra.mxu0 0.0
  %4197 = vmatprep.subr.mxu0 0.0
  %4198 = vmatpush1.xpose.msra.mxu0 0.0
  %4199 = vmatprep.subr.mxu0 0.0
  %4200 = vmatpush1.xpose.msra.mxu0 0.0
  %4201 = vmatprep.subr.mxu0 0.0
  %4202 = vmatpush1.xpose.msra.mxu0 0.0
  %4203 = vmatprep.subr.mxu0 0.0
  %4204 = vmatpush1.xpose.msra.mxu0 0.0
  %4205 = vmatprep.subr.mxu0 0.0
  %4206 = vmatpush1.xpose.msra.mxu0 %v4173
  %4207 = vmatprep.subr.mxu0 0.0
  %4208 = vmatpush2.xpose.msra.mxu0 0.0
  %4209 = vmatprep.subr.mxu0 0.0
  %4210 = vmatpush2.xpose.msra.mxu0 0.0
  %4211 = vmatprep.subr.mxu0 0.0
  %4212 = vmatpush2.xpose.msra.mxu0 0.0
  %4213 = vmatprep.subr.mxu0 0.0
  %4214 = vmatpush2.xpose.msra.mxu0 0.0
  %4215 = vmatprep.subr.mxu0 0.0
  %4216 = vmatpush2.xpose.msra.mxu0 0.0
  %4217 = vmatprep.subr.mxu0 0.0
  %4218 = vmatpush2.xpose.msra.mxu0 0.0
  %4219 = vmatprep.subr.mxu0 0.0
  %4220 = vmatpush2.xpose.msra.mxu0 0.0
  %4221 = vmatprep.subr.mxu0 0.0
  %4222 = vmatpush2.xpose.msra.mxu0 0.0
  %4223 = vmatprep.subr.mxu0 0.0
  %4224 = vmatpush2.xpose.msra.mxu0 0.0
  %4225 = vmatprep.subr.mxu0 0.0
  %4226 = vmatpush2.xpose.msra.mxu0 0.0
  %4227 = vmatprep.subr.mxu0 0.0
  %4228 = vmatpush2.xpose.msra.mxu0 0.0
  %4229 = vmatprep.subr.mxu0 0.0
  %4230 = vmatpush2.xpose.msra.mxu0 0.0
  %4231 = vmatprep.subr.mxu0 0.0
  %4232 = vmatpush2.xpose.msra.mxu0 0.0
  %4233 = vmatprep.subr.mxu0 0.0
  %4234 = vmatpush2.xpose.msra.mxu0 0.0
  %4235 = vmatprep.subr.mxu0 0.0
  %4236 = vmatpush2.xpose.msra.mxu0 0.0
  %4237 = vmatprep.subr.mxu0 0.0
  %4238 = vmatpush2.xpose.msra.mxu0 0.0
  %4239 = vmatprep.mubr.f32.mxu0 0.0
  %4240 = vmatmul.mubr.f32.gmra.mxu0 %v4170
  %v4241 = vpop.f32.mrf.mxu0
  %v4242 = vadd.f32 0.0, %v4241
  %v4243 = vpop.f32.mrf.mxu0
  %4244 = vdwg.mxu0
  %v4246 = vsel %vm1130, %v3510, 0
  %v4249 = vsel %vm1130, %v3806, 0
  %4251 = vmatprep.subr.mxu0 0.0
  %4252 = vmatpush1.xpose.msra.mxu0 0.0
  %4253 = vmatprep.subr.mxu0 0.0
  %4254 = vmatpush1.xpose.msra.mxu0 0.0
  %4255 = vmatprep.subr.mxu0 0.0
  %4256 = vmatpush1.xpose.msra.mxu0 0.0
  %4257 = vmatprep.subr.mxu0 0.0
  %4258 = vmatpush1.xpose.msra.mxu0 0.0
  %4259 = vmatprep.subr.mxu0 0.0
  %4260 = vmatpush1.xpose.msra.mxu0 0.0
  %4261 = vmatprep.subr.mxu0 0.0
  %4262 = vmatpush1.xpose.msra.mxu0 0.0
  %4263 = vmatprep.subr.mxu0 0.0
  %4264 = vmatpush1.xpose.msra.mxu0 0.0
  %4265 = vmatprep.subr.mxu0 0.0
  %4266 = vmatpush1.xpose.msra.mxu0 0.0
  %4267 = vmatprep.subr.mxu0 0.0
  %4268 = vmatpush1.xpose.msra.mxu0 0.0
  %4269 = vmatprep.subr.mxu0 0.0
  %4270 = vmatpush1.xpose.msra.mxu0 0.0
  %4271 = vmatprep.subr.mxu0 0.0
  %4272 = vmatpush1.xpose.msra.mxu0 0.0
  %4273 = vmatprep.subr.mxu0 0.0
  %4274 = vmatpush1.xpose.msra.mxu0 0.0
  %4275 = vmatprep.subr.mxu0 0.0
  %4276 = vmatpush1.xpose.msra.mxu0 0.0
  %4277 = vmatprep.subr.mxu0 0.0
  %4278 = vmatpush1.xpose.msra.mxu0 0.0
  %4279 = vmatprep.subr.mxu0 0.0
  %4280 = vmatpush1.xpose.msra.mxu0 0.0
  %4281 = vmatprep.subr.mxu0 0.0
  %4282 = vmatpush1.xpose.msra.mxu0 %v4249
  %4283 = vmatprep.subr.mxu0 0.0
  %4284 = vmatpush2.xpose.msra.mxu0 0.0
  %4285 = vmatprep.subr.mxu0 0.0
  %4286 = vmatpush2.xpose.msra.mxu0 0.0
  %4287 = vmatprep.subr.mxu0 0.0
  %4288 = vmatpush2.xpose.msra.mxu0 0.0
  %4289 = vmatprep.subr.mxu0 0.0
  %4290 = vmatpush2.xpose.msra.mxu0 0.0
  %4291 = vmatprep.subr.mxu0 0.0
  %4292 = vmatpush2.xpose.msra.mxu0 0.0
  %4293 = vmatprep.subr.mxu0 0.0
  %4294 = vmatpush2.xpose.msra.mxu0 0.0
  %4295 = vmatprep.subr.mxu0 0.0
  %4296 = vmatpush2.xpose.msra.mxu0 0.0
  %4297 = vmatprep.subr.mxu0 0.0
  %4298 = vmatpush2.xpose.msra.mxu0 0.0
  %4299 = vmatprep.subr.mxu0 0.0
  %4300 = vmatpush2.xpose.msra.mxu0 0.0
  %4301 = vmatprep.subr.mxu0 0.0
  %4302 = vmatpush2.xpose.msra.mxu0 0.0
  %4303 = vmatprep.subr.mxu0 0.0
  %4304 = vmatpush2.xpose.msra.mxu0 0.0
  %4305 = vmatprep.subr.mxu0 0.0
  %4306 = vmatpush2.xpose.msra.mxu0 0.0
  %4307 = vmatprep.subr.mxu0 0.0
  %4308 = vmatpush2.xpose.msra.mxu0 0.0
  %4309 = vmatprep.subr.mxu0 0.0
  %4310 = vmatpush2.xpose.msra.mxu0 0.0
  %4311 = vmatprep.subr.mxu0 0.0
  %4312 = vmatpush2.xpose.msra.mxu0 0.0
  %4313 = vmatprep.subr.mxu0 0.0
  %4314 = vmatpush2.xpose.msra.mxu0 0.0
  %4315 = vmatprep.mubr.f32.mxu0 0.0
  %4316 = vmatmul.mubr.f32.gmra.mxu0 %v4246
  %v4317 = vpop.f32.mrf.mxu0
  %v4318 = vadd.f32 0.0, %v4317
  %v4319 = vpop.f32.mrf.mxu0
  %4320 = vdwg.mxu0
  %v4322 = vsel %vm1130, %v3511, 0
  %v4325 = vsel %vm1130, %v3807, 0
  %4327 = vmatprep.subr.mxu0 0.0
  %4328 = vmatpush1.xpose.msra.mxu0 0.0
  %4329 = vmatprep.subr.mxu0 0.0
  %4330 = vmatpush1.xpose.msra.mxu0 0.0
  %4331 = vmatprep.subr.mxu0 0.0
  %4332 = vmatpush1.xpose.msra.mxu0 0.0
  %4333 = vmatprep.subr.mxu0 0.0
  %4334 = vmatpush1.xpose.msra.mxu0 0.0
  %4335 = vmatprep.subr.mxu0 0.0
  %4336 = vmatpush1.xpose.msra.mxu0 0.0
  %4337 = vmatprep.subr.mxu0 0.0
  %4338 = vmatpush1.xpose.msra.mxu0 0.0
  %4339 = vmatprep.subr.mxu0 0.0
  %4340 = vmatpush1.xpose.msra.mxu0 0.0
  %4341 = vmatprep.subr.mxu0 0.0
  %4342 = vmatpush1.xpose.msra.mxu0 0.0
  %4343 = vmatprep.subr.mxu0 0.0
  %4344 = vmatpush1.xpose.msra.mxu0 0.0
  %4345 = vmatprep.subr.mxu0 0.0
  %4346 = vmatpush1.xpose.msra.mxu0 0.0
  %4347 = vmatprep.subr.mxu0 0.0
  %4348 = vmatpush1.xpose.msra.mxu0 0.0
  %4349 = vmatprep.subr.mxu0 0.0
  %4350 = vmatpush1.xpose.msra.mxu0 0.0
  %4351 = vmatprep.subr.mxu0 0.0
  %4352 = vmatpush1.xpose.msra.mxu0 0.0
  %4353 = vmatprep.subr.mxu0 0.0
  %4354 = vmatpush1.xpose.msra.mxu0 0.0
  %4355 = vmatprep.subr.mxu0 0.0
  %4356 = vmatpush1.xpose.msra.mxu0 0.0
  %4357 = vmatprep.subr.mxu0 0.0
  %4358 = vmatpush1.xpose.msra.mxu0 %v4325
  %4359 = vmatprep.subr.mxu0 0.0
  %4360 = vmatpush2.xpose.msra.mxu0 0.0
  %4361 = vmatprep.subr.mxu0 0.0
  %4362 = vmatpush2.xpose.msra.mxu0 0.0
  %4363 = vmatprep.subr.mxu0 0.0
  %4364 = vmatpush2.xpose.msra.mxu0 0.0
  %4365 = vmatprep.subr.mxu0 0.0
  %4366 = vmatpush2.xpose.msra.mxu0 0.0
  %4367 = vmatprep.subr.mxu0 0.0
  %4368 = vmatpush2.xpose.msra.mxu0 0.0
  %4369 = vmatprep.subr.mxu0 0.0
  %4370 = vmatpush2.xpose.msra.mxu0 0.0
  %4371 = vmatprep.subr.mxu0 0.0
  %4372 = vmatpush2.xpose.msra.mxu0 0.0
  %4373 = vmatprep.subr.mxu0 0.0
  %4374 = vmatpush2.xpose.msra.mxu0 0.0
  %4375 = vmatprep.subr.mxu0 0.0
  %4376 = vmatpush2.xpose.msra.mxu0 0.0
  %4377 = vmatprep.subr.mxu0 0.0
  %4378 = vmatpush2.xpose.msra.mxu0 0.0
  %4379 = vmatprep.subr.mxu0 0.0
  %4380 = vmatpush2.xpose.msra.mxu0 0.0
  %4381 = vmatprep.subr.mxu0 0.0
  %4382 = vmatpush2.xpose.msra.mxu0 0.0
  %4383 = vmatprep.subr.mxu0 0.0
  %4384 = vmatpush2.xpose.msra.mxu0 0.0
  %4385 = vmatprep.subr.mxu0 0.0
  %4386 = vmatpush2.xpose.msra.mxu0 0.0
  %4387 = vmatprep.subr.mxu0 0.0
  %4388 = vmatpush2.xpose.msra.mxu0 0.0
  %4389 = vmatprep.subr.mxu0 0.0
  %4390 = vmatpush2.xpose.msra.mxu0 0.0
  %4391 = vmatprep.mubr.f32.mxu0 0.0
  %4392 = vmatmul.mubr.f32.gmra.mxu0 %v4322
  %v4393 = vpop.f32.mrf.mxu0
  %v4394 = vadd.f32 0.0, %v4393
  %v4395 = vpop.f32.mrf.mxu0
  %4396 = vdwg.mxu0
  %v4398 = vsel %vm1130, %v3512, 0
  %v4401 = vsel %vm1130, %v3808, 0
  %4403 = vmatprep.subr.mxu0 0.0
  %4404 = vmatpush1.xpose.msra.mxu0 0.0
  %4405 = vmatprep.subr.mxu0 0.0
  %4406 = vmatpush1.xpose.msra.mxu0 0.0
  %4407 = vmatprep.subr.mxu0 0.0
  %4408 = vmatpush1.xpose.msra.mxu0 0.0
  %4409 = vmatprep.subr.mxu0 0.0
  %4410 = vmatpush1.xpose.msra.mxu0 0.0
  %4411 = vmatprep.subr.mxu0 0.0
  %4412 = vmatpush1.xpose.msra.mxu0 0.0
  %4413 = vmatprep.subr.mxu0 0.0
  %4414 = vmatpush1.xpose.msra.mxu0 0.0
  %4415 = vmatprep.subr.mxu0 0.0
  %4416 = vmatpush1.xpose.msra.mxu0 0.0
  %4417 = vmatprep.subr.mxu0 0.0
  %4418 = vmatpush1.xpose.msra.mxu0 0.0
  %4419 = vmatprep.subr.mxu0 0.0
  %4420 = vmatpush1.xpose.msra.mxu0 0.0
  %4421 = vmatprep.subr.mxu0 0.0
  %4422 = vmatpush1.xpose.msra.mxu0 0.0
  %4423 = vmatprep.subr.mxu0 0.0
  %4424 = vmatpush1.xpose.msra.mxu0 0.0
  %4425 = vmatprep.subr.mxu0 0.0
  %4426 = vmatpush1.xpose.msra.mxu0 0.0
  %4427 = vmatprep.subr.mxu0 0.0
  %4428 = vmatpush1.xpose.msra.mxu0 0.0
  %4429 = vmatprep.subr.mxu0 0.0
  %4430 = vmatpush1.xpose.msra.mxu0 0.0
  %4431 = vmatprep.subr.mxu0 0.0
  %4432 = vmatpush1.xpose.msra.mxu0 0.0
  %4433 = vmatprep.subr.mxu0 0.0
  %4434 = vmatpush1.xpose.msra.mxu0 %v4401
  %4435 = vmatprep.subr.mxu0 0.0
  %4436 = vmatpush2.xpose.msra.mxu0 0.0
  %4437 = vmatprep.subr.mxu0 0.0
  %4438 = vmatpush2.xpose.msra.mxu0 0.0
  %4439 = vmatprep.subr.mxu0 0.0
  %4440 = vmatpush2.xpose.msra.mxu0 0.0
  %4441 = vmatprep.subr.mxu0 0.0
  %4442 = vmatpush2.xpose.msra.mxu0 0.0
  %4443 = vmatprep.subr.mxu0 0.0
  %4444 = vmatpush2.xpose.msra.mxu0 0.0
  %4445 = vmatprep.subr.mxu0 0.0
  %4446 = vmatpush2.xpose.msra.mxu0 0.0
  %4447 = vmatprep.subr.mxu0 0.0
  %4448 = vmatpush2.xpose.msra.mxu0 0.0
  %4449 = vmatprep.subr.mxu0 0.0
  %4450 = vmatpush2.xpose.msra.mxu0 0.0
  %4451 = vmatprep.subr.mxu0 0.0
  %4452 = vmatpush2.xpose.msra.mxu0 0.0
  %4453 = vmatprep.subr.mxu0 0.0
  %4454 = vmatpush2.xpose.msra.mxu0 0.0
  %4455 = vmatprep.subr.mxu0 0.0
  %4456 = vmatpush2.xpose.msra.mxu0 0.0
  %4457 = vmatprep.subr.mxu0 0.0
  %4458 = vmatpush2.xpose.msra.mxu0 0.0
  %4459 = vmatprep.subr.mxu0 0.0
  %4460 = vmatpush2.xpose.msra.mxu0 0.0
  %4461 = vmatprep.subr.mxu0 0.0
  %4462 = vmatpush2.xpose.msra.mxu0 0.0
  %4463 = vmatprep.subr.mxu0 0.0
  %4464 = vmatpush2.xpose.msra.mxu0 0.0
  %4465 = vmatprep.subr.mxu0 0.0
  %4466 = vmatpush2.xpose.msra.mxu0 0.0
  %4467 = vmatprep.mubr.f32.mxu0 0.0
  %4468 = vmatmul.mubr.f32.gmra.mxu0 %v4398
  %v4469 = vpop.f32.mrf.mxu0
  %v4470 = vadd.f32 0.0, %v4469
  %v4471 = vpop.f32.mrf.mxu0
  %4472 = vdwg.mxu0
  %v4474 = vsel %vm1130, %v3577, 0
  %v4477 = vsel %vm1130, %v3873, 0
  %4479 = vmatprep.subr.mxu0 0.0
  %4480 = vmatpush1.xpose.msra.mxu0 0.0
  %4481 = vmatprep.subr.mxu0 0.0
  %4482 = vmatpush1.xpose.msra.mxu0 0.0
  %4483 = vmatprep.subr.mxu0 0.0
  %4484 = vmatpush1.xpose.msra.mxu0 0.0
  %4485 = vmatprep.subr.mxu0 0.0
  %4486 = vmatpush1.xpose.msra.mxu0 0.0
  %4487 = vmatprep.subr.mxu0 0.0
  %4488 = vmatpush1.xpose.msra.mxu0 0.0
  %4489 = vmatprep.subr.mxu0 0.0
  %4490 = vmatpush1.xpose.msra.mxu0 0.0
  %4491 = vmatprep.subr.mxu0 0.0
  %4492 = vmatpush1.xpose.msra.mxu0 0.0
  %4493 = vmatprep.subr.mxu0 0.0
  %4494 = vmatpush1.xpose.msra.mxu0 0.0
  %4495 = vmatprep.subr.mxu0 0.0
  %4496 = vmatpush1.xpose.msra.mxu0 0.0
  %4497 = vmatprep.subr.mxu0 0.0
  %4498 = vmatpush1.xpose.msra.mxu0 0.0
  %4499 = vmatprep.subr.mxu0 0.0
  %4500 = vmatpush1.xpose.msra.mxu0 0.0
  %4501 = vmatprep.subr.mxu0 0.0
  %4502 = vmatpush1.xpose.msra.mxu0 0.0
  %4503 = vmatprep.subr.mxu0 0.0
  %4504 = vmatpush1.xpose.msra.mxu0 0.0
  %4505 = vmatprep.subr.mxu0 0.0
  %4506 = vmatpush1.xpose.msra.mxu0 0.0
  %4507 = vmatprep.subr.mxu0 0.0
  %4508 = vmatpush1.xpose.msra.mxu0 0.0
  %4509 = vmatprep.subr.mxu0 0.0
  %4510 = vmatpush1.xpose.msra.mxu0 %v4477
  %4511 = vmatprep.subr.mxu0 0.0
  %4512 = vmatpush2.xpose.msra.mxu0 0.0
  %4513 = vmatprep.subr.mxu0 0.0
  %4514 = vmatpush2.xpose.msra.mxu0 0.0
  %4515 = vmatprep.subr.mxu0 0.0
  %4516 = vmatpush2.xpose.msra.mxu0 0.0
  %4517 = vmatprep.subr.mxu0 0.0
  %4518 = vmatpush2.xpose.msra.mxu0 0.0
  %4519 = vmatprep.subr.mxu0 0.0
  %4520 = vmatpush2.xpose.msra.mxu0 0.0
  %4521 = vmatprep.subr.mxu0 0.0
  %4522 = vmatpush2.xpose.msra.mxu0 0.0
  %4523 = vmatprep.subr.mxu0 0.0
  %4524 = vmatpush2.xpose.msra.mxu0 0.0
  %4525 = vmatprep.subr.mxu0 0.0
  %4526 = vmatpush2.xpose.msra.mxu0 0.0
  %4527 = vmatprep.subr.mxu0 0.0
  %4528 = vmatpush2.xpose.msra.mxu0 0.0
  %4529 = vmatprep.subr.mxu0 0.0
  %4530 = vmatpush2.xpose.msra.mxu0 0.0
  %4531 = vmatprep.subr.mxu0 0.0
  %4532 = vmatpush2.xpose.msra.mxu0 0.0
  %4533 = vmatprep.subr.mxu0 0.0
  %4534 = vmatpush2.xpose.msra.mxu0 0.0
  %4535 = vmatprep.subr.mxu0 0.0
  %4536 = vmatpush2.xpose.msra.mxu0 0.0
  %4537 = vmatprep.subr.mxu0 0.0
  %4538 = vmatpush2.xpose.msra.mxu0 0.0
  %4539 = vmatprep.subr.mxu0 0.0
  %4540 = vmatpush2.xpose.msra.mxu0 0.0
  %4541 = vmatprep.subr.mxu0 0.0
  %4542 = vmatpush2.xpose.msra.mxu0 0.0
  %4543 = vmatprep.mubr.f32.mxu0 0.0
  %4544 = vmatmul.mubr.f32.gmra.mxu0 %v4474
  %v4545 = vpop.f32.mrf.mxu0
  %v4546 = vadd.f32 0.0, %v4545
  %v4547 = vpop.f32.mrf.mxu0
  %4548 = vdwg.mxu0
  %v4550 = vsel %vm1130, %v3578, 0
  %v4553 = vsel %vm1130, %v3874, 0
  %4555 = vmatprep.subr.mxu0 0.0
  %4556 = vmatpush1.xpose.msra.mxu0 0.0
  %4557 = vmatprep.subr.mxu0 0.0
  %4558 = vmatpush1.xpose.msra.mxu0 0.0
  %4559 = vmatprep.subr.mxu0 0.0
  %4560 = vmatpush1.xpose.msra.mxu0 0.0
  %4561 = vmatprep.subr.mxu0 0.0
  %4562 = vmatpush1.xpose.msra.mxu0 0.0
  %4563 = vmatprep.subr.mxu0 0.0
  %4564 = vmatpush1.xpose.msra.mxu0 0.0
  %4565 = vmatprep.subr.mxu0 0.0
  %4566 = vmatpush1.xpose.msra.mxu0 0.0
  %4567 = vmatprep.subr.mxu0 0.0
  %4568 = vmatpush1.xpose.msra.mxu0 0.0
  %4569 = vmatprep.subr.mxu0 0.0
  %4570 = vmatpush1.xpose.msra.mxu0 0.0
  %4571 = vmatprep.subr.mxu0 0.0
  %4572 = vmatpush1.xpose.msra.mxu0 0.0
  %4573 = vmatprep.subr.mxu0 0.0
  %4574 = vmatpush1.xpose.msra.mxu0 0.0
  %4575 = vmatprep.subr.mxu0 0.0
  %4576 = vmatpush1.xpose.msra.mxu0 0.0
  %4577 = vmatprep.subr.mxu0 0.0
  %4578 = vmatpush1.xpose.msra.mxu0 0.0
  %4579 = vmatprep.subr.mxu0 0.0
  %4580 = vmatpush1.xpose.msra.mxu0 0.0
  %4581 = vmatprep.subr.mxu0 0.0
  %4582 = vmatpush1.xpose.msra.mxu0 0.0
  %4583 = vmatprep.subr.mxu0 0.0
  %4584 = vmatpush1.xpose.msra.mxu0 0.0
  %4585 = vmatprep.subr.mxu0 0.0
  %4586 = vmatpush1.xpose.msra.mxu0 %v4553
  %4587 = vmatprep.subr.mxu0 0.0
  %4588 = vmatpush2.xpose.msra.mxu0 0.0
  %4589 = vmatprep.subr.mxu0 0.0
  %4590 = vmatpush2.xpose.msra.mxu0 0.0
  %4591 = vmatprep.subr.mxu0 0.0
  %4592 = vmatpush2.xpose.msra.mxu0 0.0
  %4593 = vmatprep.subr.mxu0 0.0
  %4594 = vmatpush2.xpose.msra.mxu0 0.0
  %4595 = vmatprep.subr.mxu0 0.0
  %4596 = vmatpush2.xpose.msra.mxu0 0.0
  %4597 = vmatprep.subr.mxu0 0.0
  %4598 = vmatpush2.xpose.msra.mxu0 0.0
  %4599 = vmatprep.subr.mxu0 0.0
  %4600 = vmatpush2.xpose.msra.mxu0 0.0
  %4601 = vmatprep.subr.mxu0 0.0
  %4602 = vmatpush2.xpose.msra.mxu0 0.0
  %4603 = vmatprep.subr.mxu0 0.0
  %4604 = vmatpush2.xpose.msra.mxu0 0.0
  %4605 = vmatprep.subr.mxu0 0.0
  %4606 = vmatpush2.xpose.msra.mxu0 0.0
  %4607 = vmatprep.subr.mxu0 0.0
  %4608 = vmatpush2.xpose.msra.mxu0 0.0
  %4609 = vmatprep.subr.mxu0 0.0
  %4610 = vmatpush2.xpose.msra.mxu0 0.0
  %4611 = vmatprep.subr.mxu0 0.0
  %4612 = vmatpush2.xpose.msra.mxu0 0.0
  %4613 = vmatprep.subr.mxu0 0.0
  %4614 = vmatpush2.xpose.msra.mxu0 0.0
  %4615 = vmatprep.subr.mxu0 0.0
  %4616 = vmatpush2.xpose.msra.mxu0 0.0
  %4617 = vmatprep.subr.mxu0 0.0
  %4618 = vmatpush2.xpose.msra.mxu0 0.0
  %4619 = vmatprep.mubr.f32.mxu0 0.0
  %4620 = vmatmul.mubr.f32.gmra.mxu0 %v4550
  %v4621 = vpop.f32.mrf.mxu0
  %v4622 = vadd.f32 0.0, %v4621
  %v4623 = vpop.f32.mrf.mxu0
  %4624 = vdwg.mxu0
  %v4626 = vsel %vm1130, %v3579, 0
  %v4629 = vsel %vm1130, %v3875, 0
  %4631 = vmatprep.subr.mxu0 0.0
  %4632 = vmatpush1.xpose.msra.mxu0 0.0
  %4633 = vmatprep.subr.mxu0 0.0
  %4634 = vmatpush1.xpose.msra.mxu0 0.0
  %4635 = vmatprep.subr.mxu0 0.0
  %4636 = vmatpush1.xpose.msra.mxu0 0.0
  %4637 = vmatprep.subr.mxu0 0.0
  %4638 = vmatpush1.xpose.msra.mxu0 0.0
  %4639 = vmatprep.subr.mxu0 0.0
  %4640 = vmatpush1.xpose.msra.mxu0 0.0
  %4641 = vmatprep.subr.mxu0 0.0
  %4642 = vmatpush1.xpose.msra.mxu0 0.0
  %4643 = vmatprep.subr.mxu0 0.0
  %4644 = vmatpush1.xpose.msra.mxu0 0.0
  %4645 = vmatprep.subr.mxu0 0.0
  %4646 = vmatpush1.xpose.msra.mxu0 0.0
  %4647 = vmatprep.subr.mxu0 0.0
  %4648 = vmatpush1.xpose.msra.mxu0 0.0
  %4649 = vmatprep.subr.mxu0 0.0
  %4650 = vmatpush1.xpose.msra.mxu0 0.0
  %4651 = vmatprep.subr.mxu0 0.0
  %4652 = vmatpush1.xpose.msra.mxu0 0.0
  %4653 = vmatprep.subr.mxu0 0.0
  %4654 = vmatpush1.xpose.msra.mxu0 0.0
  %4655 = vmatprep.subr.mxu0 0.0
  %4656 = vmatpush1.xpose.msra.mxu0 0.0
  %4657 = vmatprep.subr.mxu0 0.0
  %4658 = vmatpush1.xpose.msra.mxu0 0.0
  %4659 = vmatprep.subr.mxu0 0.0
  %4660 = vmatpush1.xpose.msra.mxu0 0.0
  %4661 = vmatprep.subr.mxu0 0.0
  %4662 = vmatpush1.xpose.msra.mxu0 %v4629
  %4663 = vmatprep.subr.mxu0 0.0
  %4664 = vmatpush2.xpose.msra.mxu0 0.0
  %4665 = vmatprep.subr.mxu0 0.0
  %4666 = vmatpush2.xpose.msra.mxu0 0.0
  %4667 = vmatprep.subr.mxu0 0.0
  %4668 = vmatpush2.xpose.msra.mxu0 0.0
  %4669 = vmatprep.subr.mxu0 0.0
  %4670 = vmatpush2.xpose.msra.mxu0 0.0
  %4671 = vmatprep.subr.mxu0 0.0
  %4672 = vmatpush2.xpose.msra.mxu0 0.0
  %4673 = vmatprep.subr.mxu0 0.0
  %4674 = vmatpush2.xpose.msra.mxu0 0.0
  %4675 = vmatprep.subr.mxu0 0.0
  %4676 = vmatpush2.xpose.msra.mxu0 0.0
  %4677 = vmatprep.subr.mxu0 0.0
  %4678 = vmatpush2.xpose.msra.mxu0 0.0
  %4679 = vmatprep.subr.mxu0 0.0
  %4680 = vmatpush2.xpose.msra.mxu0 0.0
  %4681 = vmatprep.subr.mxu0 0.0
  %4682 = vmatpush2.xpose.msra.mxu0 0.0
  %4683 = vmatprep.subr.mxu0 0.0
  %4684 = vmatpush2.xpose.msra.mxu0 0.0
  %4685 = vmatprep.subr.mxu0 0.0
  %4686 = vmatpush2.xpose.msra.mxu0 0.0
  %4687 = vmatprep.subr.mxu0 0.0
  %4688 = vmatpush2.xpose.msra.mxu0 0.0
  %4689 = vmatprep.subr.mxu0 0.0
  %4690 = vmatpush2.xpose.msra.mxu0 0.0
  %4691 = vmatprep.subr.mxu0 0.0
  %4692 = vmatpush2.xpose.msra.mxu0 0.0
  %4693 = vmatprep.subr.mxu0 0.0
  %4694 = vmatpush2.xpose.msra.mxu0 0.0
  %4695 = vmatprep.mubr.f32.mxu0 0.0
  %4696 = vmatmul.mubr.f32.gmra.mxu0 %v4626
  %v4697 = vpop.f32.mrf.mxu0
  %v4698 = vadd.f32 0.0, %v4697
  %v4699 = vpop.f32.mrf.mxu0
  %4700 = vdwg.mxu0
  %v4702 = vsel %vm1130, %v3580, 0
  %v4705 = vsel %vm1130, %v3876, 0
  %4707 = vmatprep.subr.mxu0 0.0
  %4708 = vmatpush1.xpose.msra.mxu0 0.0
  %4709 = vmatprep.subr.mxu0 0.0
  %4710 = vmatpush1.xpose.msra.mxu0 0.0
  %4711 = vmatprep.subr.mxu0 0.0
  %4712 = vmatpush1.xpose.msra.mxu0 0.0
  %4713 = vmatprep.subr.mxu0 0.0
  %4714 = vmatpush1.xpose.msra.mxu0 0.0
  %4715 = vmatprep.subr.mxu0 0.0
  %4716 = vmatpush1.xpose.msra.mxu0 0.0
  %4717 = vmatprep.subr.mxu0 0.0
  %4718 = vmatpush1.xpose.msra.mxu0 0.0
  %4719 = vmatprep.subr.mxu0 0.0
  %4720 = vmatpush1.xpose.msra.mxu0 0.0
  %4721 = vmatprep.subr.mxu0 0.0
  %4722 = vmatpush1.xpose.msra.mxu0 0.0
  %4723 = vmatprep.subr.mxu0 0.0
  %4724 = vmatpush1.xpose.msra.mxu0 0.0
  %4725 = vmatprep.subr.mxu0 0.0
  %4726 = vmatpush1.xpose.msra.mxu0 0.0
  %4727 = vmatprep.subr.mxu0 0.0
  %4728 = vmatpush1.xpose.msra.mxu0 0.0
  %4729 = vmatprep.subr.mxu0 0.0
  %4730 = vmatpush1.xpose.msra.mxu0 0.0
  %4731 = vmatprep.subr.mxu0 0.0
  %4732 = vmatpush1.xpose.msra.mxu0 0.0
  %4733 = vmatprep.subr.mxu0 0.0
  %4734 = vmatpush1.xpose.msra.mxu0 0.0
  %4735 = vmatprep.subr.mxu0 0.0
  %4736 = vmatpush1.xpose.msra.mxu0 0.0
  %4737 = vmatprep.subr.mxu0 0.0
  %4738 = vmatpush1.xpose.msra.mxu0 %v4705
  %4739 = vmatprep.subr.mxu0 0.0
  %4740 = vmatpush2.xpose.msra.mxu0 0.0
  %4741 = vmatprep.subr.mxu0 0.0
  %4742 = vmatpush2.xpose.msra.mxu0 0.0
  %4743 = vmatprep.subr.mxu0 0.0
  %4744 = vmatpush2.xpose.msra.mxu0 0.0
  %4745 = vmatprep.subr.mxu0 0.0
  %4746 = vmatpush2.xpose.msra.mxu0 0.0
  %4747 = vmatprep.subr.mxu0 0.0
  %4748 = vmatpush2.xpose.msra.mxu0 0.0
  %4749 = vmatprep.subr.mxu0 0.0
  %4750 = vmatpush2.xpose.msra.mxu0 0.0
  %4751 = vmatprep.subr.mxu0 0.0
  %4752 = vmatpush2.xpose.msra.mxu0 0.0
  %4753 = vmatprep.subr.mxu0 0.0
  %4754 = vmatpush2.xpose.msra.mxu0 0.0
  %4755 = vmatprep.subr.mxu0 0.0
  %4756 = vmatpush2.xpose.msra.mxu0 0.0
  %4757 = vmatprep.subr.mxu0 0.0
  %4758 = vmatpush2.xpose.msra.mxu0 0.0
  %4759 = vmatprep.subr.mxu0 0.0
  %4760 = vmatpush2.xpose.msra.mxu0 0.0
  %4761 = vmatprep.subr.mxu0 0.0
  %4762 = vmatpush2.xpose.msra.mxu0 0.0
  %4763 = vmatprep.subr.mxu0 0.0
  %4764 = vmatpush2.xpose.msra.mxu0 0.0
  %4765 = vmatprep.subr.mxu0 0.0
  %4766 = vmatpush2.xpose.msra.mxu0 0.0
  %4767 = vmatprep.subr.mxu0 0.0
  %4768 = vmatpush2.xpose.msra.mxu0 0.0
  %4769 = vmatprep.subr.mxu0 0.0
  %4770 = vmatpush2.xpose.msra.mxu0 0.0
  %4771 = vmatprep.mubr.f32.mxu0 0.0
  %4772 = vmatmul.mubr.f32.gmra.mxu0 %v4702
  %v4773 = vpop.f32.mrf.mxu0
  %v4774 = vadd.f32 0.0, %v4773
  %v4775 = vpop.f32.mrf.mxu0
  %4776 = vdwg.mxu0
  %v4777 = vmul.f32 %v4242, 0.35355338
  %v4778 = vmul.f32 %v4318, 0.35355338
  %v4779 = vmul.f32 %v4394, 0.35355338
  %v4780 = vmul.f32 %v4470, 0.35355338
  %v4781 = vmul.f32 %v4546, 0.35355338
  %v4782 = vmul.f32 %v4622, 0.35355338
  %v4783 = vmul.f32 %v4698, 0.35355338
  %v4784 = vmul.f32 %v4774, 0.35355338
  %v4785 = vsel %vm1130, %v4777, -inf
  %4786 = vmax.xlane.f32.xlu0 %v4785
  %v4787 = vpop.xlane.xlu0 %4786
  %v4788 = vsel %vm1130, %v4778, -inf
  %4789 = vmax.xlane.f32.xlu0 %v4788
  %v4790 = vpop.xlane.xlu0 %4789
  %v4791 = vsel %vm1130, %v4779, -inf
  %4792 = vmax.xlane.f32.xlu0 %v4791
  %v4793 = vpop.xlane.xlu0 %4792
  %v4794 = vsel %vm1130, %v4780, -inf
  %4795 = vmax.xlane.f32.xlu0 %v4794
  %v4796 = vpop.xlane.xlu0 %4795
  %v4797 = vsel %vm1130, %v4781, -inf
  %4798 = vmax.xlane.f32.xlu0 %v4797
  %v4799 = vpop.xlane.xlu0 %4798
  %v4800 = vsel %vm1130, %v4782, -inf
  %4801 = vmax.xlane.f32.xlu0 %v4800
  %v4802 = vpop.xlane.xlu0 %4801
  %v4803 = vsel %vm1130, %v4783, -inf
  %4804 = vmax.xlane.f32.xlu0 %v4803
  %v4805 = vpop.xlane.xlu0 %4804
  %v4806 = vsel %vm1130, %v4784, -inf
  %4807 = vmax.xlane.f32.xlu0 %v4806
  %v4808 = vpop.xlane.xlu0 %4807
  %v4809 = vsub.f32 %v4777, %v4787
  %v4810 = vsub.f32 %v4778, %v4790
  %v4811 = vsub.f32 %v4779, %v4793
  %v4812 = vsub.f32 %v4780, %v4796
  %v4813 = vsub.f32 %v4781, %v4799
  %v4814 = vsub.f32 %v4782, %v4802
  %v4815 = vsub.f32 %v4783, %v4805
  %v4816 = vsub.f32 %v4784, %v4808
  %v4817 = vmul.f32 %v4809, 1.442695
  %v4818 = vpow.pop %v4817
  %v4819 = vmul.f32 %v4810, 1.442695
  %v4820 = vpow.pop %v4819
  %v4821 = vmul.f32 %v4811, 1.442695
  %v4822 = vpow.pop %v4821
  %v4823 = vmul.f32 %v4812, 1.442695
  %v4824 = vpow.pop %v4823
  %v4825 = vmul.f32 %v4813, 1.442695
  %v4826 = vpow.pop %v4825
  %v4827 = vmul.f32 %v4814, 1.442695
  %v4828 = vpow.pop %v4827
  %v4829 = vmul.f32 %v4815, 1.442695
  %v4830 = vpow.pop %v4829
  %v4831 = vmul.f32 %v4816, 1.442695
  %v4832 = vpow.pop %v4831
  %v4833 = vsel %vm1130, %v4818, 0.0
  %4834 = vadd.xlane.f32.xlu0 %v4833
  %v4835 = vpop.xlane.xlu0 %4834
  %v4836 = vsel %vm1130, %v4820, 0.0
  %4837 = vadd.xlane.f32.xlu0 %v4836
  %v4838 = vpop.xlane.xlu0 %4837
  %v4839 = vsel %vm1130, %v4822, 0.0
  %4840 = vadd.xlane.f32.xlu0 %v4839
  %v4841 = vpop.xlane.xlu0 %4840
  %v4842 = vsel %vm1130, %v4824, 0.0
  %4843 = vadd.xlane.f32.xlu0 %v4842
  %v4844 = vpop.xlane.xlu0 %4843
  %v4845 = vsel %vm1130, %v4826, 0.0
  %4846 = vadd.xlane.f32.xlu0 %v4845
  %v4847 = vpop.xlane.xlu0 %4846
  %v4848 = vsel %vm1130, %v4828, 0.0
  %4849 = vadd.xlane.f32.xlu0 %v4848
  %v4850 = vpop.xlane.xlu0 %4849
  %v4851 = vsel %vm1130, %v4830, 0.0
  %4852 = vadd.xlane.f32.xlu0 %v4851
  %v4853 = vpop.xlane.xlu0 %4852
  %v4854 = vsel %vm1130, %v4832, 0.0
  %4855 = vadd.xlane.f32.xlu0 %v4854
  %v4856 = vpop.xlane.xlu0 %4855
  %v4857 = vrcp.pop %v4835
  %v4858 = vrcp.pop %v4838
  %v4859 = vrcp.pop %v4841
  %v4860 = vrcp.pop %v4844
  %v4861 = vrcp.pop %v4847
  %v4862 = vrcp.pop %v4850
  %v4863 = vrcp.pop %v4853
  %v4864 = vrcp.pop %v4856
  %v4865 = vmul.f32 %v4818, %v4857
  %v4866 = vmul.f32 %v4820, %v4858
  %v4867 = vmul.f32 %v4822, %v4859
  %v4868 = vmul.f32 %v4824, %v4860
  %v4869 = vmul.f32 %v4826, %v4861
  %v4870 = vmul.f32 %v4828, %v4862
  %v4871 = vmul.f32 %v4830, %v4863
  %v4872 = vmul.f32 %v4832, %v4864
  %v4874 = vsel %vm1130, %v4865, 0
  %4876 = vmatprep.subr.mxu0 0.0
  %4877 = vmatpush1.msra.mxu0 0.0
  %4878 = vmatprep.subr.mxu0 0.0
  %4879 = vmatpush1.msra.mxu0 0.0
  %4880 = vmatprep.subr.mxu0 0.0
  %4881 = vmatpush1.msra.mxu0 0.0
  %4882 = vmatprep.subr.mxu0 0.0
  %4883 = vmatpush1.msra.mxu0 0.0
  %4884 = vmatprep.subr.mxu0 0.0
  %4885 = vmatpush1.msra.mxu0 0.0
  %4886 = vmatprep.subr.mxu0 0.0
  %4887 = vmatpush1.msra.mxu0 0.0
  %4888 = vmatprep.subr.mxu0 0.0
  %4889 = vmatpush1.msra.mxu0 0.0
  %4890 = vmatprep.subr.mxu0 0.0
  %4891 = vmatpush1.msra.mxu0 0.0
  %4892 = vmatprep.subr.mxu0 0.0
  %4893 = vmatpush1.msra.mxu0 0.0
  %4894 = vmatprep.subr.mxu0 0.0
  %4895 = vmatpush1.msra.mxu0 0.0
  %4896 = vmatprep.subr.mxu0 0.0
  %4897 = vmatpush1.msra.mxu0 0.0
  %4898 = vmatprep.subr.mxu0 0.0
  %4899 = vmatpush1.msra.mxu0 0.0
  %4900 = vmatprep.subr.mxu0 0.0
  %4901 = vmatpush1.msra.mxu0 0.0
  %4902 = vmatprep.subr.mxu0 0.0
  %4903 = vmatpush1.msra.mxu0 0.0
  %4904 = vmatprep.subr.mxu0 0.0
  %4905 = vmatpush1.msra.mxu0 0.0
  %4906 = vmatprep.subr.mxu0 0.0
  %4907 = vmatpush1.msra.mxu0 %v4097
  %4908 = vmatprep.subr.mxu0 0.0
  %4909 = vmatpush2.msra.mxu0 0.0
  %4910 = vmatprep.subr.mxu0 0.0
  %4911 = vmatpush2.msra.mxu0 0.0
  %4912 = vmatprep.subr.mxu0 0.0
  %4913 = vmatpush2.msra.mxu0 0.0
  %4914 = vmatprep.subr.mxu0 0.0
  %4915 = vmatpush2.msra.mxu0 0.0
  %4916 = vmatprep.subr.mxu0 0.0
  %4917 = vmatpush2.msra.mxu0 0.0
  %4918 = vmatprep.subr.mxu0 0.0
  %4919 = vmatpush2.msra.mxu0 0.0
  %4920 = vmatprep.subr.mxu0 0.0
  %4921 = vmatpush2.msra.mxu0 0.0
  %4922 = vmatprep.subr.mxu0 0.0
  %4923 = vmatpush2.msra.mxu0 0.0
  %4924 = vmatprep.subr.mxu0 0.0
  %4925 = vmatpush2.msra.mxu0 0.0
  %4926 = vmatprep.subr.mxu0 0.0
  %4927 = vmatpush2.msra.mxu0 0.0
  %4928 = vmatprep.subr.mxu0 0.0
  %4929 = vmatpush2.msra.mxu0 0.0
  %4930 = vmatprep.subr.mxu0 0.0
  %4931 = vmatpush2.msra.mxu0 0.0
  %4932 = vmatprep.subr.mxu0 0.0
  %4933 = vmatpush2.msra.mxu0 0.0
  %4934 = vmatprep.subr.mxu0 0.0
  %4935 = vmatpush2.msra.mxu0 0.0
  %4936 = vmatprep.subr.mxu0 0.0
  %4937 = vmatpush2.msra.mxu0 0.0
  %4938 = vmatprep.subr.mxu0 0.0
  %4939 = vmatpush2.msra.mxu0 0.0
  %4940 = vmatprep.mubr.f32.mxu0 0.0
  %4941 = vmatmul.mubr.f32.gmra.mxu0 %v4874
  %v4942 = vpop.f32.mrf.mxu0
  %v4943 = vadd.f32 0.0, %v4942
  %v4944 = vpop.f32.mrf.mxu0
  %4945 = vdwg.mxu0
  %v4947 = vsel %vm1130, %v4866, 0
  %4949 = vmatprep.subr.mxu0 0.0
  %4950 = vmatpush1.msra.mxu0 0.0
  %4951 = vmatprep.subr.mxu0 0.0
  %4952 = vmatpush1.msra.mxu0 0.0
  %4953 = vmatprep.subr.mxu0 0.0
  %4954 = vmatpush1.msra.mxu0 0.0
  %4955 = vmatprep.subr.mxu0 0.0
  %4956 = vmatpush1.msra.mxu0 0.0
  %4957 = vmatprep.subr.mxu0 0.0
  %4958 = vmatpush1.msra.mxu0 0.0
  %4959 = vmatprep.subr.mxu0 0.0
  %4960 = vmatpush1.msra.mxu0 0.0
  %4961 = vmatprep.subr.mxu0 0.0
  %4962 = vmatpush1.msra.mxu0 0.0
  %4963 = vmatprep.subr.mxu0 0.0
  %4964 = vmatpush1.msra.mxu0 0.0
  %4965 = vmatprep.subr.mxu0 0.0
  %4966 = vmatpush1.msra.mxu0 0.0
  %4967 = vmatprep.subr.mxu0 0.0
  %4968 = vmatpush1.msra.mxu0 0.0
  %4969 = vmatprep.subr.mxu0 0.0
  %4970 = vmatpush1.msra.mxu0 0.0
  %4971 = vmatprep.subr.mxu0 0.0
  %4972 = vmatpush1.msra.mxu0 0.0
  %4973 = vmatprep.subr.mxu0 0.0
  %4974 = vmatpush1.msra.mxu0 0.0
  %4975 = vmatprep.subr.mxu0 0.0
  %4976 = vmatpush1.msra.mxu0 0.0
  %4977 = vmatprep.subr.mxu0 0.0
  %4978 = vmatpush1.msra.mxu0 0.0
  %4979 = vmatprep.subr.mxu0 0.0
  %4980 = vmatpush1.msra.mxu0 %v4098
  %4981 = vmatprep.subr.mxu0 0.0
  %4982 = vmatpush2.msra.mxu0 0.0
  %4983 = vmatprep.subr.mxu0 0.0
  %4984 = vmatpush2.msra.mxu0 0.0
  %4985 = vmatprep.subr.mxu0 0.0
  %4986 = vmatpush2.msra.mxu0 0.0
  %4987 = vmatprep.subr.mxu0 0.0
  %4988 = vmatpush2.msra.mxu0 0.0
  %4989 = vmatprep.subr.mxu0 0.0
  %4990 = vmatpush2.msra.mxu0 0.0
  %4991 = vmatprep.subr.mxu0 0.0
  %4992 = vmatpush2.msra.mxu0 0.0
  %4993 = vmatprep.subr.mxu0 0.0
  %4994 = vmatpush2.msra.mxu0 0.0
  %4995 = vmatprep.subr.mxu0 0.0
  %4996 = vmatpush2.msra.mxu0 0.0
  %4997 = vmatprep.subr.mxu0 0.0
  %4998 = vmatpush2.msra.mxu0 0.0
  %4999 = vmatprep.subr.mxu0 0.0
  %5000 = vmatpush2.msra.mxu0 0.0
  %5001 = vmatprep.subr.mxu0 0.0
  %5002 = vmatpush2.msra.mxu0 0.0
  %5003 = vmatprep.subr.mxu0 0.0
  %5004 = vmatpush2.msra.mxu0 0.0
  %5005 = vmatprep.subr.mxu0 0.0
  %5006 = vmatpush2.msra.mxu0 0.0
  %5007 = vmatprep.subr.mxu0 0.0
  %5008 = vmatpush2.msra.mxu0 0.0
  %5009 = vmatprep.subr.mxu0 0.0
  %5010 = vmatpush2.msra.mxu0 0.0
  %5011 = vmatprep.subr.mxu0 0.0
  %5012 = vmatpush2.msra.mxu0 0.0
  %5013 = vmatprep.mubr.f32.mxu0 0.0
  %5014 = vmatmul.mubr.f32.gmra.mxu0 %v4947
  %v5015 = vpop.f32.mrf.mxu0
  %v5016 = vadd.f32 0.0, %v5015
  %v5017 = vpop.f32.mrf.mxu0
  %5018 = vdwg.mxu0
  %v5020 = vsel %vm1130, %v4867, 0
  %5022 = vmatprep.subr.mxu0 0.0
  %5023 = vmatpush1.msra.mxu0 0.0
  %5024 = vmatprep.subr.mxu0 0.0
  %5025 = vmatpush1.msra.mxu0 0.0
  %5026 = vmatprep.subr.mxu0 0.0
  %5027 = vmatpush1.msra.mxu0 0.0
  %5028 = vmatprep.subr.mxu0 0.0
  %5029 = vmatpush1.msra.mxu0 0.0
  %5030 = vmatprep.subr.mxu0 0.0
  %5031 = vmatpush1.msra.mxu0 0.0
  %5032 = vmatprep.subr.mxu0 0.0
  %5033 = vmatpush1.msra.mxu0 0.0
  %5034 = vmatprep.subr.mxu0 0.0
  %5035 = vmatpush1.msra.mxu0 0.0
  %5036 = vmatprep.subr.mxu0 0.0
  %5037 = vmatpush1.msra.mxu0 0.0
  %5038 = vmatprep.subr.mxu0 0.0
  %5039 = vmatpush1.msra.mxu0 0.0
  %5040 = vmatprep.subr.mxu0 0.0
  %5041 = vmatpush1.msra.mxu0 0.0
  %5042 = vmatprep.subr.mxu0 0.0
  %5043 = vmatpush1.msra.mxu0 0.0
  %5044 = vmatprep.subr.mxu0 0.0
  %5045 = vmatpush1.msra.mxu0 0.0
  %5046 = vmatprep.subr.mxu0 0.0
  %5047 = vmatpush1.msra.mxu0 0.0
  %5048 = vmatprep.subr.mxu0 0.0
  %5049 = vmatpush1.msra.mxu0 0.0
  %5050 = vmatprep.subr.mxu0 0.0
  %5051 = vmatpush1.msra.mxu0 0.0
  %5052 = vmatprep.subr.mxu0 0.0
  %5053 = vmatpush1.msra.mxu0 %v4099
  %5054 = vmatprep.subr.mxu0 0.0
  %5055 = vmatpush2.msra.mxu0 0.0
  %5056 = vmatprep.subr.mxu0 0.0
  %5057 = vmatpush2.msra.mxu0 0.0
  %5058 = vmatprep.subr.mxu0 0.0
  %5059 = vmatpush2.msra.mxu0 0.0
  %5060 = vmatprep.subr.mxu0 0.0
  %5061 = vmatpush2.msra.mxu0 0.0
  %5062 = vmatprep.subr.mxu0 0.0
  %5063 = vmatpush2.msra.mxu0 0.0
  %5064 = vmatprep.subr.mxu0 0.0
  %5065 = vmatpush2.msra.mxu0 0.0
  %5066 = vmatprep.subr.mxu0 0.0
  %5067 = vmatpush2.msra.mxu0 0.0
  %5068 = vmatprep.subr.mxu0 0.0
  %5069 = vmatpush2.msra.mxu0 0.0
  %5070 = vmatprep.subr.mxu0 0.0
  %5071 = vmatpush2.msra.mxu0 0.0
  %5072 = vmatprep.subr.mxu0 0.0
  %5073 = vmatpush2.msra.mxu0 0.0
  %5074 = vmatprep.subr.mxu0 0.0
  %5075 = vmatpush2.msra.mxu0 0.0
  %5076 = vmatprep.subr.mxu0 0.0
  %5077 = vmatpush2.msra.mxu0 0.0
  %5078 = vmatprep.subr.mxu0 0.0
  %5079 = vmatpush2.msra.mxu0 0.0
  %5080 = vmatprep.subr.mxu0 0.0
  %5081 = vmatpush2.msra.mxu0 0.0
  %5082 = vmatprep.subr.mxu0 0.0
  %5083 = vmatpush2.msra.mxu0 0.0
  %5084 = vmatprep.subr.mxu0 0.0
  %5085 = vmatpush2.msra.mxu0 0.0
  %5086 = vmatprep.mubr.f32.mxu0 0.0
  %5087 = vmatmul.mubr.f32.gmra.mxu0 %v5020
  %v5088 = vpop.f32.mrf.mxu0
  %v5089 = vadd.f32 0.0, %v5088
  %v5090 = vpop.f32.mrf.mxu0
  %5091 = vdwg.mxu0
  %v5093 = vsel %vm1130, %v4868, 0
  %5095 = vmatprep.subr.mxu0 0.0
  %5096 = vmatpush1.msra.mxu0 0.0
  %5097 = vmatprep.subr.mxu0 0.0
  %5098 = vmatpush1.msra.mxu0 0.0
  %5099 = vmatprep.subr.mxu0 0.0
  %5100 = vmatpush1.msra.mxu0 0.0
  %5101 = vmatprep.subr.mxu0 0.0
  %5102 = vmatpush1.msra.mxu0 0.0
  %5103 = vmatprep.subr.mxu0 0.0
  %5104 = vmatpush1.msra.mxu0 0.0
  %5105 = vmatprep.subr.mxu0 0.0
  %5106 = vmatpush1.msra.mxu0 0.0
  %5107 = vmatprep.subr.mxu0 0.0
  %5108 = vmatpush1.msra.mxu0 0.0
  %5109 = vmatprep.subr.mxu0 0.0
  %5110 = vmatpush1.msra.mxu0 0.0
  %5111 = vmatprep.subr.mxu0 0.0
  %5112 = vmatpush1.msra.mxu0 0.0
  %5113 = vmatprep.subr.mxu0 0.0
  %5114 = vmatpush1.msra.mxu0 0.0
  %5115 = vmatprep.subr.mxu0 0.0
  %5116 = vmatpush1.msra.mxu0 0.0
  %5117 = vmatprep.subr.mxu0 0.0
  %5118 = vmatpush1.msra.mxu0 0.0
  %5119 = vmatprep.subr.mxu0 0.0
  %5120 = vmatpush1.msra.mxu0 0.0
  %5121 = vmatprep.subr.mxu0 0.0
  %5122 = vmatpush1.msra.mxu0 0.0
  %5123 = vmatprep.subr.mxu0 0.0
  %5124 = vmatpush1.msra.mxu0 0.0
  %5125 = vmatprep.subr.mxu0 0.0
  %5126 = vmatpush1.msra.mxu0 %v4100
  %5127 = vmatprep.subr.mxu0 0.0
  %5128 = vmatpush2.msra.mxu0 0.0
  %5129 = vmatprep.subr.mxu0 0.0
  %5130 = vmatpush2.msra.mxu0 0.0
  %5131 = vmatprep.subr.mxu0 0.0
  %5132 = vmatpush2.msra.mxu0 0.0
  %5133 = vmatprep.subr.mxu0 0.0
  %5134 = vmatpush2.msra.mxu0 0.0
  %5135 = vmatprep.subr.mxu0 0.0
  %5136 = vmatpush2.msra.mxu0 0.0
  %5137 = vmatprep.subr.mxu0 0.0
  %5138 = vmatpush2.msra.mxu0 0.0
  %5139 = vmatprep.subr.mxu0 0.0
  %5140 = vmatpush2.msra.mxu0 0.0
  %5141 = vmatprep.subr.mxu0 0.0
  %5142 = vmatpush2.msra.mxu0 0.0
  %5143 = vmatprep.subr.mxu0 0.0
  %5144 = vmatpush2.msra.mxu0 0.0
  %5145 = vmatprep.subr.mxu0 0.0
  %5146 = vmatpush2.msra.mxu0 0.0
  %5147 = vmatprep.subr.mxu0 0.0
  %5148 = vmatpush2.msra.mxu0 0.0
  %5149 = vmatprep.subr.mxu0 0.0
  %5150 = vmatpush2.msra.mxu0 0.0
  %5151 = vmatprep.subr.mxu0 0.0
  %5152 = vmatpush2.msra.mxu0 0.0
  %5153 = vmatprep.subr.mxu0 0.0
  %5154 = vmatpush2.msra.mxu0 0.0
  %5155 = vmatprep.subr.mxu0 0.0
  %5156 = vmatpush2.msra.mxu0 0.0
  %5157 = vmatprep.subr.mxu0 0.0
  %5158 = vmatpush2.msra.mxu0 0.0
  %5159 = vmatprep.mubr.f32.mxu0 0.0
  %5160 = vmatmul.mubr.f32.gmra.mxu0 %v5093
  %v5161 = vpop.f32.mrf.mxu0
  %v5162 = vadd.f32 0.0, %v5161
  %v5163 = vpop.f32.mrf.mxu0
  %5164 = vdwg.mxu0
  %v5166 = vsel %vm1130, %v4869, 0
  %5168 = vmatprep.subr.mxu0 0.0
  %5169 = vmatpush1.msra.mxu0 0.0
  %5170 = vmatprep.subr.mxu0 0.0
  %5171 = vmatpush1.msra.mxu0 0.0
  %5172 = vmatprep.subr.mxu0 0.0
  %5173 = vmatpush1.msra.mxu0 0.0
  %5174 = vmatprep.subr.mxu0 0.0
  %5175 = vmatpush1.msra.mxu0 0.0
  %5176 = vmatprep.subr.mxu0 0.0
  %5177 = vmatpush1.msra.mxu0 0.0
  %5178 = vmatprep.subr.mxu0 0.0
  %5179 = vmatpush1.msra.mxu0 0.0
  %5180 = vmatprep.subr.mxu0 0.0
  %5181 = vmatpush1.msra.mxu0 0.0
  %5182 = vmatprep.subr.mxu0 0.0
  %5183 = vmatpush1.msra.mxu0 0.0
  %5184 = vmatprep.subr.mxu0 0.0
  %5185 = vmatpush1.msra.mxu0 0.0
  %5186 = vmatprep.subr.mxu0 0.0
  %5187 = vmatpush1.msra.mxu0 0.0
  %5188 = vmatprep.subr.mxu0 0.0
  %5189 = vmatpush1.msra.mxu0 0.0
  %5190 = vmatprep.subr.mxu0 0.0
  %5191 = vmatpush1.msra.mxu0 0.0
  %5192 = vmatprep.subr.mxu0 0.0
  %5193 = vmatpush1.msra.mxu0 0.0
  %5194 = vmatprep.subr.mxu0 0.0
  %5195 = vmatpush1.msra.mxu0 0.0
  %5196 = vmatprep.subr.mxu0 0.0
  %5197 = vmatpush1.msra.mxu0 0.0
  %5198 = vmatprep.subr.mxu0 0.0
  %5199 = vmatpush1.msra.mxu0 %v4165
  %5200 = vmatprep.subr.mxu0 0.0
  %5201 = vmatpush2.msra.mxu0 0.0
  %5202 = vmatprep.subr.mxu0 0.0
  %5203 = vmatpush2.msra.mxu0 0.0
  %5204 = vmatprep.subr.mxu0 0.0
  %5205 = vmatpush2.msra.mxu0 0.0
  %5206 = vmatprep.subr.mxu0 0.0
  %5207 = vmatpush2.msra.mxu0 0.0
  %5208 = vmatprep.subr.mxu0 0.0
  %5209 = vmatpush2.msra.mxu0 0.0
  %5210 = vmatprep.subr.mxu0 0.0
  %5211 = vmatpush2.msra.mxu0 0.0
  %5212 = vmatprep.subr.mxu0 0.0
  %5213 = vmatpush2.msra.mxu0 0.0
  %5214 = vmatprep.subr.mxu0 0.0
  %5215 = vmatpush2.msra.mxu0 0.0
  %5216 = vmatprep.subr.mxu0 0.0
  %5217 = vmatpush2.msra.mxu0 0.0
  %5218 = vmatprep.subr.mxu0 0.0
  %5219 = vmatpush2.msra.mxu0 0.0
  %5220 = vmatprep.subr.mxu0 0.0
  %5221 = vmatpush2.msra.mxu0 0.0
  %5222 = vmatprep.subr.mxu0 0.0
  %5223 = vmatpush2.msra.mxu0 0.0
  %5224 = vmatprep.subr.mxu0 0.0
  %5225 = vmatpush2.msra.mxu0 0.0
  %5226 = vmatprep.subr.mxu0 0.0
  %5227 = vmatpush2.msra.mxu0 0.0
  %5228 = vmatprep.subr.mxu0 0.0
  %5229 = vmatpush2.msra.mxu0 0.0
  %5230 = vmatprep.subr.mxu0 0.0
  %5231 = vmatpush2.msra.mxu0 0.0
  %5232 = vmatprep.mubr.f32.mxu0 0.0
  %5233 = vmatmul.mubr.f32.gmra.mxu0 %v5166
  %v5234 = vpop.f32.mrf.mxu0
  %v5235 = vadd.f32 0.0, %v5234
  %v5236 = vpop.f32.mrf.mxu0
  %5237 = vdwg.mxu0
  %v5239 = vsel %vm1130, %v4870, 0
  %5241 = vmatprep.subr.mxu0 0.0
  %5242 = vmatpush1.msra.mxu0 0.0
  %5243 = vmatprep.subr.mxu0 0.0
  %5244 = vmatpush1.msra.mxu0 0.0
  %5245 = vmatprep.subr.mxu0 0.0
  %5246 = vmatpush1.msra.mxu0 0.0
  %5247 = vmatprep.subr.mxu0 0.0
  %5248 = vmatpush1.msra.mxu0 0.0
  %5249 = vmatprep.subr.mxu0 0.0
  %5250 = vmatpush1.msra.mxu0 0.0
  %5251 = vmatprep.subr.mxu0 0.0
  %5252 = vmatpush1.msra.mxu0 0.0
  %5253 = vmatprep.subr.mxu0 0.0
  %5254 = vmatpush1.msra.mxu0 0.0
  %5255 = vmatprep.subr.mxu0 0.0
  %5256 = vmatpush1.msra.mxu0 0.0
  %5257 = vmatprep.subr.mxu0 0.0
  %5258 = vmatpush1.msra.mxu0 0.0
  %5259 = vmatprep.subr.mxu0 0.0
  %5260 = vmatpush1.msra.mxu0 0.0
  %5261 = vmatprep.subr.mxu0 0.0
  %5262 = vmatpush1.msra.mxu0 0.0
  %5263 = vmatprep.subr.mxu0 0.0
  %5264 = vmatpush1.msra.mxu0 0.0
  %5265 = vmatprep.subr.mxu0 0.0
  %5266 = vmatpush1.msra.mxu0 0.0
  %5267 = vmatprep.subr.mxu0 0.0
  %5268 = vmatpush1.msra.mxu0 0.0
  %5269 = vmatprep.subr.mxu0 0.0
  %5270 = vmatpush1.msra.mxu0 0.0
  %5271 = vmatprep.subr.mxu0 0.0
  %5272 = vmatpush1.msra.mxu0 %v4166
  %5273 = vmatprep.subr.mxu0 0.0
  %5274 = vmatpush2.msra.mxu0 0.0
  %5275 = vmatprep.subr.mxu0 0.0
  %5276 = vmatpush2.msra.mxu0 0.0
  %5277 = vmatprep.subr.mxu0 0.0
  %5278 = vmatpush2.msra.mxu0 0.0
  %5279 = vmatprep.subr.mxu0 0.0
  %5280 = vmatpush2.msra.mxu0 0.0
  %5281 = vmatprep.subr.mxu0 0.0
  %5282 = vmatpush2.msra.mxu0 0.0
  %5283 = vmatprep.subr.mxu0 0.0
  %5284 = vmatpush2.msra.mxu0 0.0
  %5285 = vmatprep.subr.mxu0 0.0
  %5286 = vmatpush2.msra.mxu0 0.0
  %5287 = vmatprep.subr.mxu0 0.0
  %5288 = vmatpush2.msra.mxu0 0.0
  %5289 = vmatprep.subr.mxu0 0.0
  %5290 = vmatpush2.msra.mxu0 0.0
  %5291 = vmatprep.subr.mxu0 0.0
  %5292 = vmatpush2.msra.mxu0 0.0
  %5293 = vmatprep.subr.mxu0 0.0
  %5294 = vmatpush2.msra.mxu0 0.0
  %5295 = vmatprep.subr.mxu0 0.0
  %5296 = vmatpush2.msra.mxu0 0.0
  %5297 = vmatprep.subr.mxu0 0.0
  %5298 = vmatpush2.msra.mxu0 0.0
  %5299 = vmatprep.subr.mxu0 0.0
  %5300 = vmatpush2.msra.mxu0 0.0
  %5301 = vmatprep.subr.mxu0 0.0
  %5302 = vmatpush2.msra.mxu0 0.0
  %5303 = vmatprep.subr.mxu0 0.0
  %5304 = vmatpush2.msra.mxu0 0.0
  %5305 = vmatprep.mubr.f32.mxu0 0.0
  %5306 = vmatmul.mubr.f32.gmra.mxu0 %v5239
  %v5307 = vpop.f32.mrf.mxu0
  %v5308 = vadd.f32 0.0, %v5307
  %v5309 = vpop.f32.mrf.mxu0
  %5310 = vdwg.mxu0
  %v5312 = vsel %vm1130, %v4871, 0
  %5314 = vmatprep.subr.mxu0 0.0
  %5315 = vmatpush1.msra.mxu0 0.0
  %5316 = vmatprep.subr.mxu0 0.0
  %5317 = vmatpush1.msra.mxu0 0.0
  %5318 = vmatprep.subr.mxu0 0.0
  %5319 = vmatpush1.msra.mxu0 0.0
  %5320 = vmatprep.subr.mxu0 0.0
  %5321 = vmatpush1.msra.mxu0 0.0
  %5322 = vmatprep.subr.mxu0 0.0
  %5323 = vmatpush1.msra.mxu0 0.0
  %5324 = vmatprep.subr.mxu0 0.0
  %5325 = vmatpush1.msra.mxu0 0.0
  %5326 = vmatprep.subr.mxu0 0.0
  %5327 = vmatpush1.msra.mxu0 0.0
  %5328 = vmatprep.subr.mxu0 0.0
  %5329 = vmatpush1.msra.mxu0 0.0
  %5330 = vmatprep.subr.mxu0 0.0
  %5331 = vmatpush1.msra.mxu0 0.0
  %5332 = vmatprep.subr.mxu0 0.0
  %5333 = vmatpush1.msra.mxu0 0.0
  %5334 = vmatprep.subr.mxu0 0.0
  %5335 = vmatpush1.msra.mxu0 0.0
  %5336 = vmatprep.subr.mxu0 0.0
  %5337 = vmatpush1.msra.mxu0 0.0
  %5338 = vmatprep.subr.mxu0 0.0
  %5339 = vmatpush1.msra.mxu0 0.0
  %5340 = vmatprep.subr.mxu0 0.0
  %5341 = vmatpush1.msra.mxu0 0.0
  %5342 = vmatprep.subr.mxu0 0.0
  %5343 = vmatpush1.msra.mxu0 0.0
  %5344 = vmatprep.subr.mxu0 0.0
  %5345 = vmatpush1.msra.mxu0 %v4167
  %5346 = vmatprep.subr.mxu0 0.0
  %5347 = vmatpush2.msra.mxu0 0.0
  %5348 = vmatprep.subr.mxu0 0.0
  %5349 = vmatpush2.msra.mxu0 0.0
  %5350 = vmatprep.subr.mxu0 0.0
  %5351 = vmatpush2.msra.mxu0 0.0
  %5352 = vmatprep.subr.mxu0 0.0
  %5353 = vmatpush2.msra.mxu0 0.0
  %5354 = vmatprep.subr.mxu0 0.0
  %5355 = vmatpush2.msra.mxu0 0.0
  %5356 = vmatprep.subr.mxu0 0.0
  %5357 = vmatpush2.msra.mxu0 0.0
  %5358 = vmatprep.subr.mxu0 0.0
  %5359 = vmatpush2.msra.mxu0 0.0
  %5360 = vmatprep.subr.mxu0 0.0
  %5361 = vmatpush2.msra.mxu0 0.0
  %5362 = vmatprep.subr.mxu0 0.0
  %5363 = vmatpush2.msra.mxu0 0.0
  %5364 = vmatprep.subr.mxu0 0.0
  %5365 = vmatpush2.msra.mxu0 0.0
  %5366 = vmatprep.subr.mxu0 0.0
  %5367 = vmatpush2.msra.mxu0 0.0
  %5368 = vmatprep.subr.mxu0 0.0
  %5369 = vmatpush2.msra.mxu0 0.0
  %5370 = vmatprep.subr.mxu0 0.0
  %5371 = vmatpush2.msra.mxu0 0.0
  %5372 = vmatprep.subr.mxu0 0.0
  %5373 = vmatpush2.msra.mxu0 0.0
  %5374 = vmatprep.subr.mxu0 0.0
  %5375 = vmatpush2.msra.mxu0 0.0
  %5376 = vmatprep.subr.mxu0 0.0
  %5377 = vmatpush2.msra.mxu0 0.0
  %5378 = vmatprep.mubr.f32.mxu0 0.0
  %5379 = vmatmul.mubr.f32.gmra.mxu0 %v5312
  %v5380 = vpop.f32.mrf.mxu0
  %v5381 = vadd.f32 0.0, %v5380
  %v5382 = vpop.f32.mrf.mxu0
  %5383 = vdwg.mxu0
  %v5385 = vsel %vm1130, %v4872, 0
  %5387 = vmatprep.subr.mxu0 0.0
  %5388 = vmatpush1.msra.mxu0 0.0
  %5389 = vmatprep.subr.mxu0 0.0
  %5390 = vmatpush1.msra.mxu0 0.0
  %5391 = vmatprep.subr.mxu0 0.0
  %5392 = vmatpush1.msra.mxu0 0.0
  %5393 = vmatprep.subr.mxu0 0.0
  %5394 = vmatpush1.msra.mxu0 0.0
  %5395 = vmatprep.subr.mxu0 0.0
  %5396 = vmatpush1.msra.mxu0 0.0
  %5397 = vmatprep.subr.mxu0 0.0
  %5398 = vmatpush1.msra.mxu0 0.0
  %5399 = vmatprep.subr.mxu0 0.0
  %5400 = vmatpush1.msra.mxu0 0.0
  %5401 = vmatprep.subr.mxu0 0.0
  %5402 = vmatpush1.msra.mxu0 0.0
  %5403 = vmatprep.subr.mxu0 0.0
  %5404 = vmatpush1.msra.mxu0 0.0
  %5405 = vmatprep.subr.mxu0 0.0
  %5406 = vmatpush1.msra.mxu0 0.0
  %5407 = vmatprep.subr.mxu0 0.0
  %5408 = vmatpush1.msra.mxu0 0.0
  %5409 = vmatprep.subr.mxu0 0.0
  %5410 = vmatpush1.msra.mxu0 0.0
  %5411 = vmatprep.subr.mxu0 0.0
  %5412 = vmatpush1.msra.mxu0 0.0
  %5413 = vmatprep.subr.mxu0 0.0
  %5414 = vmatpush1.msra.mxu0 0.0
  %5415 = vmatprep.subr.mxu0 0.0
  %5416 = vmatpush1.msra.mxu0 0.0
  %5417 = vmatprep.subr.mxu0 0.0
  %5418 = vmatpush1.msra.mxu0 %v4168
  %5419 = vmatprep.subr.mxu0 0.0
  %5420 = vmatpush2.msra.mxu0 0.0
  %5421 = vmatprep.subr.mxu0 0.0
  %5422 = vmatpush2.msra.mxu0 0.0
  %5423 = vmatprep.subr.mxu0 0.0
  %5424 = vmatpush2.msra.mxu0 0.0
  %5425 = vmatprep.subr.mxu0 0.0
  %5426 = vmatpush2.msra.mxu0 0.0
  %5427 = vmatprep.subr.mxu0 0.0
  %5428 = vmatpush2.msra.mxu0 0.0
  %5429 = vmatprep.subr.mxu0 0.0
  %5430 = vmatpush2.msra.mxu0 0.0
  %5431 = vmatprep.subr.mxu0 0.0
  %5432 = vmatpush2.msra.mxu0 0.0
  %5433 = vmatprep.subr.mxu0 0.0
  %5434 = vmatpush2.msra.mxu0 0.0
  %5435 = vmatprep.subr.mxu0 0.0
  %5436 = vmatpush2.msra.mxu0 0.0
  %5437 = vmatprep.subr.mxu0 0.0
  %5438 = vmatpush2.msra.mxu0 0.0
  %5439 = vmatprep.subr.mxu0 0.0
  %5440 = vmatpush2.msra.mxu0 0.0
  %5441 = vmatprep.subr.mxu0 0.0
  %5442 = vmatpush2.msra.mxu0 0.0
  %5443 = vmatprep.subr.mxu0 0.0
  %5444 = vmatpush2.msra.mxu0 0.0
  %5445 = vmatprep.subr.mxu0 0.0
  %5446 = vmatpush2.msra.mxu0 0.0
  %5447 = vmatprep.subr.mxu0 0.0
  %5448 = vmatpush2.msra.mxu0 0.0
  %5449 = vmatprep.subr.mxu0 0.0
  %5450 = vmatpush2.msra.mxu0 0.0
  %5451 = vmatprep.mubr.f32.mxu0 0.0
  %5452 = vmatmul.mubr.f32.gmra.mxu0 %v5385
  %v5453 = vpop.f32.mrf.mxu0
  %v5454 = vadd.f32 0.0, %v5453
  %v5455 = vpop.f32.mrf.mxu0
  %5456 = vdwg.mxu0
  %v5457 = vcombine.low %v4943, %v5089
  %v5458 = vcombine.high %v4943, %v5089
  %v5460 = vunpack.c.l.s4 1983009808
  %v5461 = vunpack.c.0.s8 %v5460
  %v5462 = vlaneseq
  %v5463 = vshrl.u32 %v5462, 7
  %v5464 = vsub.s32 %v5461, %v5463
  %v5465 = vrot.slane %v5457, %v5464
  %v5467 = vunpack.c.l.s4 1983009808
  %v5468 = vunpack.c.0.s8 %v5467
  %v5469 = vlaneseq
  %v5470 = vshrl.u32 %v5469, 7
  %v5471 = vsub.s32 %v5468, %v5470
  %v5472 = vrot.slane %v5458, %v5471
  %v5473 = vcombine.low %v5016, %v5162
  %v5474 = vcombine.high %v5016, %v5162
  %v5476 = vunpack.c.l.s4 1983009808
  %v5477 = vunpack.c.0.s8 %v5476
  %v5478 = vlaneseq
  %v5479 = vshrl.u32 %v5478, 7
  %v5480 = vsub.s32 %v5477, %v5479
  %v5481 = vrot.slane %v5473, %v5480
  %v5483 = vunpack.c.l.s4 1983009808
  %v5484 = vunpack.c.0.s8 %v5483
  %v5485 = vlaneseq
  %v5486 = vshrl.u32 %v5485, 7
  %v5487 = vsub.s32 %v5484, %v5486
  %v5488 = vrot.slane %v5474, %v5487
  %v5489 = vcombine.low %v5465, %v5481
  %v5490 = vcombine.high %v5465, %v5481
  %v5492 = vunpack.c.l.s4 1934713408
  %v5493 = vunpack.c.0.s8 %v5492
  %v5494 = vlaneseq
  %v5495 = vshrl.u32 %v5494, 7
  %v5496 = vsub.s32 %v5493, %v5495
  %v5497 = vrot.slane %v5489, %v5496
  %v5499 = vunpack.c.l.s4 1934713408
  %v5500 = vunpack.c.0.s8 %v5499
  %v5501 = vlaneseq
  %v5502 = vshrl.u32 %v5501, 7
  %v5503 = vsub.s32 %v5500, %v5502
  %v5504 = vrot.slane %v5490, %v5503
  %v5505 = vcombine.low %v5472, %v5488
  %v5506 = vcombine.high %v5472, %v5488
  %v5508 = vunpack.c.l.s4 1934713408
  %v5509 = vunpack.c.0.s8 %v5508
  %v5510 = vlaneseq
  %v5511 = vshrl.u32 %v5510, 7
  %v5512 = vsub.s32 %v5509, %v5511
  %v5513 = vrot.slane %v5505, %v5512
  %v5515 = vunpack.c.l.s4 1934713408
  %v5516 = vunpack.c.0.s8 %v5515
  %v5517 = vlaneseq
  %v5518 = vshrl.u32 %v5517, 7
  %v5519 = vsub.s32 %v5516, %v5518
  %v5520 = vrot.slane %v5506, %v5519
  %v5521 = vcombine.high %v5497, 0.0
  %v5522 = vcombine.high %v5504, 0.0
  %v5523 = vcombine.high %v5513, 0.0
  %v5524 = vcombine.high %v5520, 0.0
  %v5525 = vcombine.low %v5235, %v5381
  %v5526 = vcombine.high %v5235, %v5381
  %v5528 = vunpack.c.l.s4 1983009808
  %v5529 = vunpack.c.0.s8 %v5528
  %v5530 = vlaneseq
  %v5531 = vshrl.u32 %v5530, 7
  %v5532 = vsub.s32 %v5529, %v5531
  %v5533 = vrot.slane %v5525, %v5532
  %v5535 = vunpack.c.l.s4 1983009808
  %v5536 = vunpack.c.0.s8 %v5535
  %v5537 = vlaneseq
  %v5538 = vshrl.u32 %v5537, 7
  %v5539 = vsub.s32 %v5536, %v5538
  %v5540 = vrot.slane %v5526, %v5539
  %v5541 = vcombine.low %v5308, %v5454
  %v5542 = vcombine.high %v5308, %v5454
  %v5544 = vunpack.c.l.s4 1983009808
  %v5545 = vunpack.c.0.s8 %v5544
  %v5546 = vlaneseq
  %v5547 = vshrl.u32 %v5546, 7
  %v5548 = vsub.s32 %v5545, %v5547
  %v5549 = vrot.slane %v5541, %v5548
  %v5551 = vunpack.c.l.s4 1983009808
  %v5552 = vunpack.c.0.s8 %v5551
  %v5553 = vlaneseq
  %v5554 = vshrl.u32 %v5553, 7
  %v5555 = vsub.s32 %v5552, %v5554
  %v5556 = vrot.slane %v5542, %v5555
  %v5557 = vcombine.low %v5533, %v5549
  %v5558 = vcombine.high %v5533, %v5549
  %v5560 = vunpack.c.l.s4 1934713408
  %v5561 = vunpack.c.0.s8 %v5560
  %v5562 = vlaneseq
  %v5563 = vshrl.u32 %v5562, 7
  %v5564 = vsub.s32 %v5561, %v5563
  %v5565 = vrot.slane %v5557, %v5564
  %v5567 = vunpack.c.l.s4 1934713408
  %v5568 = vunpack.c.0.s8 %v5567
  %v5569 = vlaneseq
  %v5570 = vshrl.u32 %v5569, 7
  %v5571 = vsub.s32 %v5568, %v5570
  %v5572 = vrot.slane %v5558, %v5571
  %v5573 = vcombine.low %v5540, %v5556
  %v5574 = vcombine.high %v5540, %v5556
  %v5576 = vunpack.c.l.s4 1934713408
  %v5577 = vunpack.c.0.s8 %v5576
  %v5578 = vlaneseq
  %v5579 = vshrl.u32 %v5578, 7
  %v5580 = vsub.s32 %v5577, %v5579
  %v5581 = vrot.slane %v5573, %v5580
  %v5583 = vunpack.c.l.s4 1934713408
  %v5584 = vunpack.c.0.s8 %v5583
  %v5585 = vlaneseq
  %v5586 = vshrl.u32 %v5585, 7
  %v5587 = vsub.s32 %v5584, %v5586
  %v5588 = vrot.slane %v5574, %v5587
  %v5589 = vcombine.high %v5565, 0.0
  %v5590 = vcombine.high %v5572, 0.0
  %v5591 = vcombine.high %v5581, 0.0
  %v5592 = vcombine.high %v5588, 0.0
  %v5593 = vcombine.low %v5497, %v5504
  %v5595 = vunpack.c.l.s4 1983009808
  %v5596 = vunpack.c.0.s8 %v5595
  %v5597 = vlaneseq
  %v5598 = vshrl.u32 %v5597, 7
  %v5599 = vsub.s32 %v5596, %v5598
  %v5600 = vrot.slane %v5593, %v5599
  %v5601 = vcombine.low %v5521, %v5522
  %v5603 = vunpack.c.l.s4 1983009808
  %v5604 = vunpack.c.0.s8 %v5603
  %v5605 = vlaneseq
  %v5606 = vshrl.u32 %v5605, 7
  %v5607 = vsub.s32 %v5604, %v5606
  %v5608 = vrot.slane %v5601, %v5607
  %v5609 = vcombine.low %v5513, %v5520
  %v5611 = vunpack.c.l.s4 1983009808
  %v5612 = vunpack.c.0.s8 %v5611
  %v5613 = vlaneseq
  %v5614 = vshrl.u32 %v5613, 7
  %v5615 = vsub.s32 %v5612, %v5614
  %v5616 = vrot.slane %v5609, %v5615
  %v5617 = vcombine.low %v5523, %v5524
  %v5619 = vunpack.c.l.s4 1983009808
  %v5620 = vunpack.c.0.s8 %v5619
  %v5621 = vlaneseq
  %v5622 = vshrl.u32 %v5621, 7
  %v5623 = vsub.s32 %v5620, %v5622
  %v5624 = vrot.slane %v5617, %v5623
  %v5625 = vcombine.low %v5600, %v5608
  %v5626 = vcombine.high %v5600, %v5608
  %v5628 = vunpack.c.l.s4 1934713408
  %v5629 = vunpack.c.0.s8 %v5628
  %v5630 = vlaneseq
  %v5631 = vshrl.u32 %v5630, 7
  %v5632 = vsub.s32 %v5629, %v5631
  %v5633 = vrot.slane %v5625, %v5632
  %v5635 = vunpack.c.l.s4 1934713408
  %v5636 = vunpack.c.0.s8 %v5635
  %v5637 = vlaneseq
  %v5638 = vshrl.u32 %v5637, 7
  %v5639 = vsub.s32 %v5636, %v5638
  %v5640 = vrot.slane %v5626, %v5639
  %v5641 = vcombine.low %v5616, %v5624
  %v5642 = vcombine.high %v5616, %v5624
  %v5644 = vunpack.c.l.s4 1934713408
  %v5645 = vunpack.c.0.s8 %v5644
  %v5646 = vlaneseq
  %v5647 = vshrl.u32 %v5646, 7
  %v5648 = vsub.s32 %v5645, %v5647
  %v5649 = vrot.slane %v5641, %v5648
  %v5651 = vunpack.c.l.s4 1934713408
  %v5652 = vunpack.c.0.s8 %v5651
  %v5653 = vlaneseq
  %v5654 = vshrl.u32 %v5653, 7
  %v5655 = vsub.s32 %v5652, %v5654
  %v5656 = vrot.slane %v5642, %v5655
  %v5657 = vcombine.low %v5633, %v5649
  %v5658 = vcombine.high %v5633, %v5649
  %v5659 = vcombine.low %v5640, %v5656
  %v5660 = vcombine.high %v5640, %v5656
  %v5661 = vcombine.low %v5565, %v5572
  %v5663 = vunpack.c.l.s4 1983009808
  %v5664 = vunpack.c.0.s8 %v5663
  %v5665 = vlaneseq
  %v5666 = vshrl.u32 %v5665, 7
  %v5667 = vsub.s32 %v5664, %v5666
  %v5668 = vrot.slane %v5661, %v5667
  %v5669 = vcombine.low %v5589, %v5590
  %v5671 = vunpack.c.l.s4 1983009808
  %v5672 = vunpack.c.0.s8 %v5671
  %v5673 = vlaneseq
  %v5674 = vshrl.u32 %v5673, 7
  %v5675 = vsub.s32 %v5672, %v5674
  %v5676 = vrot.slane %v5669, %v5675
  %v5677 = vcombine.low %v5581, %v5588
  %v5679 = vunpack.c.l.s4 1983009808
  %v5680 = vunpack.c.0.s8 %v5679
  %v5681 = vlaneseq
  %v5682 = vshrl.u32 %v5681, 7
  %v5683 = vsub.s32 %v5680, %v5682
  %v5684 = vrot.slane %v5677, %v5683
  %v5685 = vcombine.low %v5591, %v5592
  %v5687 = vunpack.c.l.s4 1983009808
  %v5688 = vunpack.c.0.s8 %v5687
  %v5689 = vlaneseq
  %v5690 = vshrl.u32 %v5689, 7
  %v5691 = vsub.s32 %v5688, %v5690
  %v5692 = vrot.slane %v5685, %v5691
  %v5693 = vcombine.low %v5668, %v5676
  %v5694 = vcombine.high %v5668, %v5676
  %v5696 = vunpack.c.l.s4 1934713408
  %v5697 = vunpack.c.0.s8 %v5696
  %v5698 = vlaneseq
  %v5699 = vshrl.u32 %v5698, 7
  %v5700 = vsub.s32 %v5697, %v5699
  %v5701 = vrot.slane %v5693, %v5700
  %v5703 = vunpack.c.l.s4 1934713408
  %v5704 = vunpack.c.0.s8 %v5703
  %v5705 = vlaneseq
  %v5706 = vshrl.u32 %v5705, 7
  %v5707 = vsub.s32 %v5704, %v5706
  %v5708 = vrot.slane %v5694, %v5707
  %v5709 = vcombine.low %v5684, %v5692
  %v5710 = vcombine.high %v5684, %v5692
  %v5712 = vunpack.c.l.s4 1934713408
  %v5713 = vunpack.c.0.s8 %v5712
  %v5714 = vlaneseq
  %v5715 = vshrl.u32 %v5714, 7
  %v5716 = vsub.s32 %v5713, %v5715
  %v5717 = vrot.slane %v5709, %v5716
  %v5719 = vunpack.c.l.s4 1934713408
  %v5720 = vunpack.c.0.s8 %v5719
  %v5721 = vlaneseq
  %v5722 = vshrl.u32 %v5721, 7
  %v5723 = vsub.s32 %v5720, %v5722
  %v5724 = vrot.slane %v5710, %v5723
  %v5725 = vcombine.low %v5701, %v5717
  %v5726 = vcombine.high %v5701, %v5717
  %v5727 = vcombine.low %v5708, %v5724
  %v5728 = vcombine.high %v5708, %v5724
  %5731 = vrot.lane.b32.xlu0 %v5658, 8
  %v5732 = vpop.permute.xlu0 %5731
  %5733 = vrot.lane.b32.xlu0 %v5726, 8
  %v5734 = vpop.permute.xlu0 %5733
  %5739 = vrot.lane.b32.xlu0 %v5659, 16
  %v5740 = vpop.permute.xlu0 %5739
  %5741 = vrot.lane.b32.xlu0 %v5727, 16
  %v5742 = vpop.permute.xlu0 %5741
  %5747 = vrot.lane.b32.xlu0 %v5660, 24
  %v5748 = vpop.permute.xlu0 %5747
  %5749 = vrot.lane.b32.xlu0 %v5728, 24
  %v5750 = vpop.permute.xlu0 %5749
  %v5753 = vsel %vm1130, %v5657, %v5732
  %v5754 = vsel %vm1130, %v5725, %v5734
  %v5755 = vsel %vm2717, %v5753, %v5740
  %v5756 = vsel %vm2717, %v5754, %v5742
  %v5757 = vsel %vm2720, %v5755, %v5748
  %v5758 = vsel %vm2720, %v5756, %v5750
  %s5759 = scalar_lea.vmem %s6, 32
  %v5760 = vld [vmem:[%s5759] sm:$0xff]
  %v5761 = vld [vmem:[%s5759 + $0x8] sm:$0xff]
  %v5762 = vld [vmem:[%s5759 + $0x10] sm:$0xff]
  %v5763 = vld [vmem:[%s5759 + $0x18] sm:$0xff]
  %s5764 = scalar_lea.vmem %s7, 1
  %v5765 = vld [vmem:[%s5764] sm:$0x1]
  %v5767 = vlaneseq
  %v5768 = vshrl.u32 %v5767, 7
  %v5769 = vsub.s32 0, %v5768
  %v5770 = vrot.slane %v5765, %v5769
  %v5773 = vsel %vm76, %v5757, 0
  %v5776 = vsel %vm76, %v5758, 0
  %5778 = vmatprep.subr.mxu0 0.0
  %5779 = vmatpush1.msra.mxu0 0.0
  %5780 = vmatprep.subr.mxu0 0.0
  %5781 = vmatpush1.msra.mxu0 0.0
  %5782 = vmatprep.subr.mxu0 0.0
  %5783 = vmatpush1.msra.mxu0 0.0
  %5784 = vmatprep.subr.mxu0 0.0
  %5785 = vmatpush1.msra.mxu0 0.0
  %5786 = vmatprep.subr.mxu0 0.0
  %5787 = vmatpush1.msra.mxu0 0.0
  %5788 = vmatprep.subr.mxu0 0.0
  %5789 = vmatpush1.msra.mxu0 0.0
  %5790 = vmatprep.subr.mxu0 0.0
  %5791 = vmatpush1.msra.mxu0 0.0
  %5792 = vmatprep.subr.mxu0 0.0
  %5793 = vmatpush1.msra.mxu0 0.0
  %5794 = vmatprep.subr.mxu0 0.0
  %5795 = vmatpush1.msra.mxu0 0.0
  %5796 = vmatprep.subr.mxu0 0.0
  %5797 = vmatpush1.msra.mxu0 0.0
  %5798 = vmatprep.subr.mxu0 0.0
  %5799 = vmatpush1.msra.mxu0 0.0
  %5800 = vmatprep.subr.mxu0 0.0
  %5801 = vmatpush1.msra.mxu0 0.0
  %5802 = vmatprep.subr.mxu0 0.0
  %5803 = vmatpush1.msra.mxu0 %v5763
  %5804 = vmatprep.subr.mxu0 0.0
  %5805 = vmatpush1.msra.mxu0 %v5762
  %5806 = vmatprep.subr.mxu0 0.0
  %5807 = vmatpush1.msra.mxu0 %v5761
  %5808 = vmatprep.subr.mxu0 0.0
  %5809 = vmatpush1.msra.mxu0 %v5760
  %5810 = vmatprep.subr.mxu0 0.0
  %5811 = vmatpush2.msra.mxu0 0.0
  %5812 = vmatprep.subr.mxu0 0.0
  %5813 = vmatpush2.msra.mxu0 0.0
  %5814 = vmatprep.subr.mxu0 0.0
  %5815 = vmatpush2.msra.mxu0 0.0
  %5816 = vmatprep.subr.mxu0 0.0
  %5817 = vmatpush2.msra.mxu0 0.0
  %5818 = vmatprep.subr.mxu0 0.0
  %5819 = vmatpush2.msra.mxu0 0.0
  %5820 = vmatprep.subr.mxu0 0.0
  %5821 = vmatpush2.msra.mxu0 0.0
  %5822 = vmatprep.subr.mxu0 0.0
  %5823 = vmatpush2.msra.mxu0 0.0
  %5824 = vmatprep.subr.mxu0 0.0
  %5825 = vmatpush2.msra.mxu0 0.0
  %5826 = vmatprep.subr.mxu0 0.0
  %5827 = vmatpush2.msra.mxu0 0.0
  %5828 = vmatprep.subr.mxu0 0.0
  %5829 = vmatpush2.msra.mxu0 0.0
  %5830 = vmatprep.subr.mxu0 0.0
  %5831 = vmatpush2.msra.mxu0 0.0
  %5832 = vmatprep.subr.mxu0 0.0
  %5833 = vmatpush2.msra.mxu0 0.0
  %5834 = vmatprep.subr.mxu0 0.0
  %5835 = vmatpush2.msra.mxu0 0.0
  %5836 = vmatprep.subr.mxu0 0.0
  %5837 = vmatpush2.msra.mxu0 0.0
  %5838 = vmatprep.subr.mxu0 0.0
  %5839 = vmatpush2.msra.mxu0 0.0
  %5840 = vmatprep.subr.mxu0 0.0
  %5841 = vmatpush2.msra.mxu0 0.0
  %5842 = vmatprep.mubr.f32.mxu0 0.0
  %5843 = vmatmul.mubr.f32.gmra.mxu0 %v5773
  %v5844 = vpop.f32.mrf.mxu0
  %v5845 = vadd.f32 %v5770, %v5844
  %v5846 = vpop.f32.mrf.mxu0
  %5847 = vmatprep.mubr.f32.mxu0 0.0
  %5848 = vmatmul.mubr.f32.gmra.mxu0 %v5776
  %v5849 = vpop.f32.mrf.mxu0
  %v5850 = vadd.f32 %v5770, %v5849
  %v5851 = vpop.f32.mrf.mxu0
  %5852 = vdwg.mxu0
  %v5853 = vadd.f32 %v3097, %v5845
  %v5854 = vadd.f32 %v3098, %v5850
  %s5855 = scalar_lea.vmem %s8, 1
  %v5856 = vld [vmem:[%s5855] sm:$0x1]
  %s5857 = scalar_lea.vmem %s9, 1
  %v5858 = vld [vmem:[%s5857] sm:$0x1]
  %v5859 = vsel %vm76, %v5853, 0.0
  %5860 = vadd.xlane.f32.xlu0 %v5859
  %v5861 = vpop.xlane.xlu0 %5860
  %v5862 = vsel %vm76, %v5854, 0.0
  %5863 = vadd.xlane.f32.xlu0 %v5862
  %v5864 = vpop.xlane.xlu0 %5863
  %v5865 = vmul.f32 %v5861, %v2825
  %v5866 = vmul.f32 %v5864, %v2825
  %v5867 = vsub.f32 %v5853, %v5865
  %v5868 = vsub.f32 %v5854, %v5866
  %v5869 = vmul.f32 %v5867, %v5867
  %v5870 = vmul.f32 %v5868, %v5868
  %v5871 = vsel %vm76, %v5869, 0.0
  %5872 = vadd.xlane.f32.xlu0 %v5871
  %v5873 = vpop.xlane.xlu0 %5872
  %v5874 = vsel %vm76, %v5870, 0.0
  %5875 = vadd.xlane.f32.xlu0 %v5874
  %v5876 = vpop.xlane.xlu0 %5875
  %v5877 = vmul.f32 %v5873, %v2825
  %v5878 = vmul.f32 %v5876, %v2825
  %v5879 = vadd.f32 %v5877, 1e-05
  %v5880 = vadd.f32 %v5878, 1e-05
  %v5881 = vrsqrt.pop %v5879
  %v5882 = vrsqrt.pop %v5880
  %v5883 = vmul.f32 %v5867, %v5881
  %v5884 = vmul.f32 %v5868, %v5882
  %v5886 = vlaneseq
  %v5887 = vshrl.u32 %v5886, 7
  %v5888 = vsub.s32 0, %v5887
  %v5889 = vrot.slane %v5856, %v5888
  %v5891 = vmul.f32 %v5883, %v5889
  %v5892 = vmul.f32 %v5884, %v5889
  %v5894 = vlaneseq
  %v5895 = vshrl.u32 %v5894, 7
  %v5896 = vsub.s32 0, %v5895
  %v5897 = vrot.slane %v5858, %v5896
  %v5899 = vadd.f32 %v5891, %v5897
  %v5900 = vadd.f32 %v5892, %v5897
  %s5901 = scalar_lea.vmem %s10, 32
  %v5902 = vld [vmem:[%s5901] sm:$0xff]
  %v5903 = vld [vmem:[%s5901 + $0x8] sm:$0xff]
  %v5904 = vld [vmem:[%s5901 + $0x10] sm:$0xff]
  %v5905 = vld [vmem:[%s5901 + $0x18] sm:$0xff]
  %s5906 = scalar_lea.vmem %s11, 1
  %v5907 = vld [vmem:[%s5906] sm:$0x1]
  %v5909 = vlaneseq
  %v5910 = vshrl.u32 %v5909, 7
  %v5911 = vsub.s32 0, %v5910
  %v5912 = vrot.slane %v5907, %v5911
  %v5915 = vsel %vm76, %v5899, 0
  %v5918 = vsel %vm76, %v5900, 0
  %5920 = vmatprep.subr.mxu0 0.0
  %5921 = vmatpush1.msra.mxu0 0.0
  %5922 = vmatprep.subr.mxu0 0.0
  %5923 = vmatpush1.msra.mxu0 0.0
  %5924 = vmatprep.subr.mxu0 0.0
  %5925 = vmatpush1.msra.mxu0 0.0
  %5926 = vmatprep.subr.mxu0 0.0
  %5927 = vmatpush1.msra.mxu0 0.0
  %5928 = vmatprep.subr.mxu0 0.0
  %5929 = vmatpush1.msra.mxu0 0.0
  %5930 = vmatprep.subr.mxu0 0.0
  %5931 = vmatpush1.msra.mxu0 0.0
  %5932 = vmatprep.subr.mxu0 0.0
  %5933 = vmatpush1.msra.mxu0 0.0
  %5934 = vmatprep.subr.mxu0 0.0
  %5935 = vmatpush1.msra.mxu0 0.0
  %5936 = vmatprep.subr.mxu0 0.0
  %5937 = vmatpush1.msra.mxu0 0.0
  %5938 = vmatprep.subr.mxu0 0.0
  %5939 = vmatpush1.msra.mxu0 0.0
  %5940 = vmatprep.subr.mxu0 0.0
  %5941 = vmatpush1.msra.mxu0 0.0
  %5942 = vmatprep.subr.mxu0 0.0
  %5943 = vmatpush1.msra.mxu0 0.0
  %5944 = vmatprep.subr.mxu0 0.0
  %5945 = vmatpush1.msra.mxu0 %v5905
  %5946 = vmatprep.subr.mxu0 0.0
  %5947 = vmatpush1.msra.mxu0 %v5904
  %5948 = vmatprep.subr.mxu0 0.0
  %5949 = vmatpush1.msra.mxu0 %v5903
  %5950 = vmatprep.subr.mxu0 0.0
  %5951 = vmatpush1.msra.mxu0 %v5902
  %5952 = vmatprep.subr.mxu0 0.0
  %5953 = vmatpush2.msra.mxu0 0.0
  %5954 = vmatprep.subr.mxu0 0.0
  %5955 = vmatpush2.msra.mxu0 0.0
  %5956 = vmatprep.subr.mxu0 0.0
  %5957 = vmatpush2.msra.mxu0 0.0
  %5958 = vmatprep.subr.mxu0 0.0
  %5959 = vmatpush2.msra.mxu0 0.0
  %5960 = vmatprep.subr.mxu0 0.0
  %5961 = vmatpush2.msra.mxu0 0.0
  %5962 = vmatprep.subr.mxu0 0.0
  %5963 = vmatpush2.msra.mxu0 0.0
  %5964 = vmatprep.subr.mxu0 0.0
  %5965 = vmatpush2.msra.mxu0 0.0
  %5966 = vmatprep.subr.mxu0 0.0
  %5967 = vmatpush2.msra.mxu0 0.0
  %5968 = vmatprep.subr.mxu0 0.0
  %5969 = vmatpush2.msra.mxu0 0.0
  %5970 = vmatprep.subr.mxu0 0.0
  %5971 = vmatpush2.msra.mxu0 0.0
  %5972 = vmatprep.subr.mxu0 0.0
  %5973 = vmatpush2.msra.mxu0 0.0
  %5974 = vmatprep.subr.mxu0 0.0
  %5975 = vmatpush2.msra.mxu0 0.0
  %5976 = vmatprep.subr.mxu0 0.0
  %5977 = vmatpush2.msra.mxu0 0.0
  %5978 = vmatprep.subr.mxu0 0.0
  %5979 = vmatpush2.msra.mxu0 0.0
  %5980 = vmatprep.subr.mxu0 0.0
  %5981 = vmatpush2.msra.mxu0 0.0
  %5982 = vmatprep.subr.mxu0 0.0
  %5983 = vmatpush2.msra.mxu0 0.0
  %5984 = vmatprep.mubr.f32.mxu0 0.0
  %5985 = vmatmul.mubr.f32.gmra.mxu0 %v5915
  %v5986 = vpop.f32.mrf.mxu0
  %v5987 = vadd.f32 %v5912, %v5986
  %v5988 = vpop.f32.mrf.mxu0
  %5989 = vmatprep.mubr.f32.mxu0 0.0
  %5990 = vmatmul.mubr.f32.gmra.mxu0 %v5918
  %v5991 = vpop.f32.mrf.mxu0
  %v5992 = vadd.f32 %v5912, %v5991
  %v5993 = vpop.f32.mrf.mxu0
  %5994 = vdwg.mxu0
  %v5995 = vmax.f32 %v5987, 0.0
  %v5996 = vmax.f32 %v5992, 0.0
  %s5997 = scalar_lea.vmem %s12, 64
  %v5998 = vld [vmem:[%s5997] sm:$0xff]
  %v5999 = vld [vmem:[%s5997 + $0x8] sm:$0xff]
  %v6000 = vld [vmem:[%s5997 + $0x10] sm:$0xff]
  %v6001 = vld [vmem:[%s5997 + $0x18] sm:$0xff]
  %v6002 = vld [vmem:[%s5997 + $0x20] sm:$0xff]
  %v6003 = vld [vmem:[%s5997 + $0x28] sm:$0xff]
  %v6004 = vld [vmem:[%s5997 + $0x30] sm:$0xff]
  %v6005 = vld [vmem:[%s5997 + $0x38] sm:$0xff]
  %s6006 = scalar_lea.vmem %s13, 1
  %v6007 = vld [vmem:[%s6006] sm:$0x1]
  %v6009 = vlaneseq
  %v6010 = vshrl.u32 %v6009, 7
  %v6011 = vsub.s32 0, %v6010
  %v6012 = vrot.slane %v6007, %v6011
  %v6015 = vsel %vm2971, %v5995, 0
  %v6018 = vsel %vm2971, %v5996, 0
  %6020 = vmatprep.subr.mxu0 0.0
  %6021 = vmatpush1.msra.mxu0 0.0
  %6022 = vmatprep.subr.mxu0 0.0
  %6023 = vmatpush1.msra.mxu0 0.0
  %6024 = vmatprep.subr.mxu0 0.0
  %6025 = vmatpush1.msra.mxu0 0.0
  %6026 = vmatprep.subr.mxu0 0.0
  %6027 = vmatpush1.msra.mxu0 0.0
  %6028 = vmatprep.subr.mxu0 0.0
  %6029 = vmatpush1.msra.mxu0 0.0
  %6030 = vmatprep.subr.mxu0 0.0
  %6031 = vmatpush1.msra.mxu0 0.0
  %6032 = vmatprep.subr.mxu0 0.0
  %6033 = vmatpush1.msra.mxu0 0.0
  %6034 = vmatprep.subr.mxu0 0.0
  %6035 = vmatpush1.msra.mxu0 0.0
  %6036 = vmatprep.subr.mxu0 0.0
  %6037 = vmatpush1.msra.mxu0 %v6005
  %6038 = vmatprep.subr.mxu0 0.0
  %6039 = vmatpush1.msra.mxu0 %v6004
  %6040 = vmatprep.subr.mxu0 0.0
  %6041 = vmatpush1.msra.mxu0 %v6003
  %6042 = vmatprep.subr.mxu0 0.0
  %6043 = vmatpush1.msra.mxu0 %v6002
  %6044 = vmatprep.subr.mxu0 0.0
  %6045 = vmatpush1.msra.mxu0 %v6001
  %6046 = vmatprep.subr.mxu0 0.0
  %6047 = vmatpush1.msra.mxu0 %v6000
  %6048 = vmatprep.subr.mxu0 0.0
  %6049 = vmatpush1.msra.mxu0 %v5999
  %6050 = vmatprep.subr.mxu0 0.0
  %6051 = vmatpush1.msra.mxu0 %v5998
  %6052 = vmatprep.subr.mxu0 0.0
  %6053 = vmatpush2.msra.mxu0 0.0
  %6054 = vmatprep.subr.mxu0 0.0
  %6055 = vmatpush2.msra.mxu0 0.0
  %6056 = vmatprep.subr.mxu0 0.0
  %6057 = vmatpush2.msra.mxu0 0.0
  %6058 = vmatprep.subr.mxu0 0.0
  %6059 = vmatpush2.msra.mxu0 0.0
  %6060 = vmatprep.subr.mxu0 0.0
  %6061 = vmatpush2.msra.mxu0 0.0
  %6062 = vmatprep.subr.mxu0 0.0
  %6063 = vmatpush2.msra.mxu0 0.0
  %6064 = vmatprep.subr.mxu0 0.0
  %6065 = vmatpush2.msra.mxu0 0.0
  %6066 = vmatprep.subr.mxu0 0.0
  %6067 = vmatpush2.msra.mxu0 0.0
  %6068 = vmatprep.subr.mxu0 0.0
  %6069 = vmatpush2.msra.mxu0 0.0
  %6070 = vmatprep.subr.mxu0 0.0
  %6071 = vmatpush2.msra.mxu0 0.0
  %6072 = vmatprep.subr.mxu0 0.0
  %6073 = vmatpush2.msra.mxu0 0.0
  %6074 = vmatprep.subr.mxu0 0.0
  %6075 = vmatpush2.msra.mxu0 0.0
  %6076 = vmatprep.subr.mxu0 0.0
  %6077 = vmatpush2.msra.mxu0 0.0
  %6078 = vmatprep.subr.mxu0 0.0
  %6079 = vmatpush2.msra.mxu0 0.0
  %6080 = vmatprep.subr.mxu0 0.0
  %6081 = vmatpush2.msra.mxu0 0.0
  %6082 = vmatprep.subr.mxu0 0.0
  %6083 = vmatpush2.msra.mxu0 0.0
  %6084 = vmatprep.mubr.f32.mxu0 0.0
  %6085 = vmatmul.mubr.f32.gmra.mxu0 %v6015
  %v6086 = vpop.f32.mrf.mxu0
  %v6087 = vadd.f32 %v6012, %v6086
  %v6088 = vpop.f32.mrf.mxu0
  %6089 = vmatprep.mubr.f32.mxu0 0.0
  %6090 = vmatmul.mubr.f32.gmra.mxu0 %v6018
  %v6091 = vpop.f32.mrf.mxu0
  %v6092 = vadd.f32 %v6012, %v6091
  %v6093 = vpop.f32.mrf.mxu0
  %6094 = vdwg.mxu0
  %v6095 = vadd.f32 %v5899, %v6087
  %v6096 = vadd.f32 %v5900, %v6092
  %s6097 = scalar_lea.vmem %s14, 1
  %v6098 = vld [vmem:[%s6097] sm:$0x1]
  %s6099 = scalar_lea.vmem %s15, 1
  %v6100 = vld [vmem:[%s6099] sm:$0x1]
  %v6101 = vsel %vm76, %v6095, 0.0
  %6102 = vadd.xlane.f32.xlu0 %v6101
  %v6103 = vpop.xlane.xlu0 %6102
  %v6104 = vsel %vm76, %v6096, 0.0
  %6105 = vadd.xlane.f32.xlu0 %v6104
  %v6106 = vpop.xlane.xlu0 %6105
  %v6107 = vmul.f32 %v6103, %v2825
  %v6108 = vmul.f32 %v6106, %v2825
  %v6109 = vsub.f32 %v6095, %v6107
  %v6110 = vsub.f32 %v6096, %v6108
  %v6111 = vmul.f32 %v6109, %v6109
  %v6112 = vmul.f32 %v6110, %v6110
  %v6113 = vsel %vm76, %v6111, 0.0
  %6114 = vadd.xlane.f32.xlu0 %v6113
  %v6115 = vpop.xlane.xlu0 %6114
  %v6116 = vsel %vm76, %v6112, 0.0
  %6117 = vadd.xlane.f32.xlu0 %v6116
  %v6118 = vpop.xlane.xlu0 %6117
  %v6119 = vmul.f32 %v6115, %v2825
  %v6120 = vmul.f32 %v6118, %v2825
  %v6121 = vadd.f32 %v6119, 1e-05
  %v6122 = vadd.f32 %v6120, 1e-05
  %v6123 = vrsqrt.pop %v6121
  %v6124 = vrsqrt.pop %v6122
  %v6125 = vmul.f32 %v6109, %v6123
  %v6126 = vmul.f32 %v6110, %v6124
  %v6128 = vlaneseq
  %v6129 = vshrl.u32 %v6128, 7
  %v6130 = vsub.s32 0, %v6129
  %v6131 = vrot.slane %v6098, %v6130
  %v6133 = vmul.f32 %v6125, %v6131
  %v6134 = vmul.f32 %v6126, %v6131
  %v6136 = vlaneseq
  %v6137 = vshrl.u32 %v6136, 7
  %v6138 = vsub.s32 0, %v6137
  %v6139 = vrot.slane %v6100, %v6138
  %v6141 = vadd.f32 %v6133, %v6139
  %v6142 = vadd.f32 %v6134, %v6139
  %v6143 = vld [vmem:[%s16] sm:$0x1]
  %v6144 = vld [vmem:[%s17] sm:$0x1]
  %v6145 = vsel %vm76, %v6141, 0.0
  %6146 = vadd.xlane.f32.xlu0 %v6145
  %v6147 = vpop.xlane.xlu0 %6146
  %v6148 = vsel %vm76, %v6142, 0.0
  %6149 = vadd.xlane.f32.xlu0 %v6148
  %v6150 = vpop.xlane.xlu0 %6149
  %v6151 = vmul.f32 %v6147, %v2825
  %v6152 = vmul.f32 %v6150, %v2825
  %v6153 = vsub.f32 %v6141, %v6151
  %v6154 = vsub.f32 %v6142, %v6152
  %v6155 = vmul.f32 %v6153, %v6153
  %v6156 = vmul.f32 %v6154, %v6154
  %v6157 = vsel %vm76, %v6155, 0.0
  %6158 = vadd.xlane.f32.xlu0 %v6157
  %v6159 = vpop.xlane.xlu0 %6158
  %v6160 = vsel %vm76, %v6156, 0.0
  %6161 = vadd.xlane.f32.xlu0 %v6160
  %v6162 = vpop.xlane.xlu0 %6161
  %v6163 = vmul.f32 %v6159, %v2825
  %v6164 = vmul.f32 %v6162, %v2825
  %v6165 = vadd.f32 %v6163, 1e-05
  %v6166 = vadd.f32 %v6164, 1e-05
  %v6167 = vrsqrt.pop %v6165
  %v6168 = vrsqrt.pop %v6166
  %v6169 = vmul.f32 %v6153, %v6167
  %v6170 = vmul.f32 %v6154, %v6168
  %v6172 = vlaneseq
  %v6173 = vshrl.u32 %v6172, 7
  %v6174 = vsub.s32 0, %v6173
  %v6175 = vrot.slane %v6143, %v6174
  %v6177 = vmul.f32 %v6169, %v6175
  %v6178 = vmul.f32 %v6170, %v6175
  %v6180 = vlaneseq
  %v6181 = vshrl.u32 %v6180, 7
  %v6182 = vsub.s32 0, %v6181
  %v6183 = vrot.slane %v6144, %v6182
  %v6185 = vadd.f32 %v6177, %v6183
  %v6186 = vadd.f32 %v6178, %v6183
  %6187 = vst.msk [vmem:[%s18] sm:$0xff] %vm76, %v6185
  %6188 = vst.msk [vmem:[%s18 + $0x8] sm:$0xff] %vm76, %v6186
  // Predicated region
  $region74: #{transformer_encoder.1} parent=0 // pred_check
    _
  $region75: #{transformer_encoder.1} parent=0 // pred_check_branch
    %6190 = sbr.rel (0) target = $region77
  $region76: #{transformer_encoder.1} parent=0 // pred_region
    _
  $region77: #{transformer_encoder.1} parent=0 // pred_fallthru
    _
  // Predicated region
  $region78: #{transformer_encoder.1} parent=0 // pred_check
    _
  $region79: #{transformer_encoder.1} parent=0 // pred_check_branch
    %6192 = sbr.rel (0) target = $region81
  $region80: #{transformer_encoder.1} parent=0 // pred_region
    _
  $region81: #{transformer_encoder.1} parent=0 // pred_fallthru
    _

</llo_original>
